<compile_context>
chip_gen: v7x
topology: tpu7x:2x2x1
jax: 0.10.0
libtpu: 0.0.40
codegen_flags: <defaults>
</compile_context>

<pallas_src>
import functools
import math

import jax
import jax.numpy as jnp
from jax.experimental import pallas as pl
from jax.experimental.pallas import tpu as pltpu


_MIN_PALLAS_BYTES = 2 << 20     # below this, XLA transpose already wins
_MIN_OUT_LANES = 128            # narrower outputs -> masked partial stores; use XLA
_VMEM_LIMIT_CAP = 32 << 20      # <= default scoped VMEM on v6e/v7x, safe on v5e


def _is_multi_tc_chip():
    # v7x has 2 TensorCores per chip; v5e/v6e have 1.
    try:
        kind = jax.devices()[0].device_kind.lower()
    except Exception:
        return False
    return "v7" in kind


def _collapse_dims(shape, dims):
    """Merge runs of input axes that stay contiguous and in-order in the output."""
    groups = []
    for d in dims:
        if groups and groups[-1][-1] + 1 == d:
            groups[-1].append(d)
        else:
            groups.append([d])
    order = sorted(range(len(groups)), key=lambda g: groups[g][0])  # input order
    new_shape = tuple(int(math.prod(shape[a] for a in groups[g])) for g in order)
    pos_of_group = {g: p for p, g in enumerate(order)}
    new_dims = tuple(pos_of_group[g] for g in range(len(groups)))
    return new_shape, new_dims


def _permute_tile_kernel(x_ref, o_ref, *, swap_minor):
    v = x_ref[...]
    if swap_minor:
        # (Batched) minor-two-axes transpose; runs on the XLU.
        # TODO(synk): verify via pl.lower_as_mlir that this does not materialize an
        # extra block-sized VMEM temp; if it does, transpose in 128x128 strips.
        v = jnp.swapaxes(v, -1, -2)
    o_ref[...] = v


def _permute_collapsed(x, dims, multi_tc):
    """Pallas path.  Pre-condition: the input's minor two axes land in the output's
    minor two positions (always swapped after axis collapse)."""
    ndim = x.ndim
    out_shape = tuple(x.shape[d] for d in dims)
    itemsize = jnp.dtype(x.dtype).itemsize
    swap_minor = dims[-2] == ndim - 1  # True for every collapsed non-identity case

    S = x.shape[ndim - 2]               # input sublane-axis size
    L = x.shape[ndim - 1]               # input lane-axis size

    # Tile cap: multiple of 128 (lane) and of all packed sublane counts (8/16/32),
    # so tiles are (8,128)-legal and unmasked on input and transposed-output side.
    tile_cap = 1024 if (multi_tc or itemsize < 4) else 512
    target_block_bytes = (4 << 20) if multi_tc else (2 << 20)

    ts = S if S <= tile_cap else tile_cap
    tl = L if L <= tile_cap else tile_cap

    # Batch the innermost leading input axis so small trailing planes still move
    # a target-sized block per grid step (~0.35 us fixed overhead per step).
    batch_axis = ndim - 3 if ndim >= 3 else None
    plane_bytes = max(ts * tl * itemsize, 1)
    if batch_axis is not None:
        tb = int(max(1, min(x.shape[batch_axis], target_block_bytes // plane_bytes)))
    else:
        tb = 1

    n_lead = ndim - 2

    def grid_total(tb_, ts_, tl_):
        t = pl.cdiv(S, ts_) * pl.cdiv(L, tl_)
        for j in range(n_lead):
            src = dims[j]
            t *= pl.cdiv(x.shape[src], tb_) if src == batch_axis else x.shape[src]
        return t

    # v7x only: make sure both TensorCores get at least one grid step.
    if multi_tc and grid_total(tb, ts, tl) < 2:
        sub_mult = max(32 // itemsize, 8)
        if batch_axis is not None and x.shape[batch_axis] >= 2:
            tb = -(-x.shape[batch_axis] // 2)
        elif L >= 2 * 128:
            tl = (-(-L // 2) + 127) // 128 * 128
        elif S >= 2 * sub_mult:
            ts = (-(-S // 2) + sub_mult - 1) // sub_mult * sub_mult

    # Trailing two grid axes: put the input-sublane tile axis innermost when the
    # plane is transposed, so consecutive steps write adjacent output lane-blocks.
    if swap_minor:
        gl_axis, gs_axis = n_lead, n_lead + 1
    else:
        gs_axis, gl_axis = n_lead, n_lead + 1

    grid = []
    for j in range(n_lead):
        src = dims[j]
        grid.append(pl.cdiv(x.shape[src], tb) if src == batch_axis else x.shape[src])
    trailing = [0, 0]
    trailing[gs_axis - n_lead] = pl.cdiv(S, ts)
    trailing[gl_axis - n_lead] = pl.cdiv(L, tl)
    grid = tuple(grid + trailing)

    out_pos = {ax: dims.index(ax) for ax in range(ndim)}

    # ----- input BlockSpec -----
    in_block = []
    for ax in range(ndim):
        if ax == ndim - 2:
            in_block.append(ts)
        elif ax == ndim - 1:
            in_block.append(tl)
        elif ax == batch_axis:
            in_block.append(tb)
        else:
            in_block.append(pl.Squeezed())
    in_block = tuple(in_block)

    def in_index_map(*g):
        idx = []
        for ax in range(ndim):
            if ax == ndim - 2:
                idx.append(g[gs_axis])
            elif ax == ndim - 1:
                idx.append(g[gl_axis])
            else:
                idx.append(g[out_pos[ax]])
        return tuple(idx)

    # ----- output BlockSpec (trailing block indices swapped when transposing) -----
    out_block = []
    for j in range(ndim):
        if j == ndim - 2:
            out_block.append(tl if swap_minor else ts)
        elif j == ndim - 1:
            out_block.append(ts if swap_minor else tl)
        elif dims[j] == batch_axis:
            out_block.append(tb)
        else:
            out_block.append(pl.Squeezed())
    out_block = tuple(out_block)

    def out_index_map(*g):
        idx = []
        for j in range(ndim):
            if j == ndim - 2:
                idx.append(g[gl_axis] if swap_minor else g[gs_axis])
            elif j == ndim - 1:
                idx.append(g[gs_axis] if swap_minor else g[gl_axis])
            else:
                idx.append(g[j])
        return tuple(idx)

    block_bytes = tb * ts * tl * itemsize
    # in + out, double-buffered (= 4 live blocks) plus headroom; always <= 32 MiB.
    vmem_limit = int(min(max(6 * block_bytes + (2 << 20), 16 << 20), _VMEM_LIMIT_CAP))

    cost = pl.CostEstimate(flops=0, transcendentals=0,
                           bytes_accessed=2 * x.size * itemsize)

    kernel = functools.partial(_permute_tile_kernel, swap_minor=swap_minor)

    return pl.pallas_call(
        kernel,
        out_shape=jax.ShapeDtypeStruct(out_shape, x.dtype),
        grid=grid,
        in_specs=[pl.BlockSpec(in_block, in_index_map)],
        out_specs=pl.BlockSpec(out_block, out_index_map),
        compiler_params=pltpu.CompilerParams(
            dimension_semantics=("parallel",) * len(grid),
            vmem_limit_bytes=vmem_limit),
        cost_estimate=cost,
    )(x)


def permute(x, dims):
    ndim = x.ndim
    dims = tuple(int(d) % ndim for d in dims)
    assert sorted(dims) == list(range(ndim)), "dims must be a permutation of range(ndim)"

    # Fast path: identity permutation => no data movement at all.
    if dims == tuple(range(ndim)):
        return x

    out_shape_full = tuple(x.shape[d] for d in dims)
    itemsize = jnp.dtype(x.dtype).itemsize
    total_bytes = x.size * itemsize

    # Collapse contiguous in-order runs of input axes into single axes (free
    # wrapper-side reshape): fewer grid steps, larger contiguous DMAs.
    c_shape, c_dims = _collapse_dims(x.shape, dims)
    cndim = len(c_shape)
    c_out_shape = tuple(c_shape[d] for d in c_dims)

    # Fallbacks where XLA transpose is already at (or above) what the Pallas path
    # can deliver: tiny tensors, zero-size dims, narrow (<128-lane) outputs, or
    # permutations that move the minor axes into leading output positions.
    exotic = cndim < 2 or {c_dims[-2], c_dims[-1]} != {cndim - 2, cndim - 1}
    if (x.size == 0
            or total_bytes < _MIN_PALLAS_BYTES
            or exotic
            or c_out_shape[-1] < _MIN_OUT_LANES):
        # TODO(synk): permutations that move the lane/sublane axes into leading
        # output positions would need a strided-DMA / multi-pass Pallas design.
        return jnp.transpose(x, dims)

    xc = x.reshape(c_shape) if c_shape != x.shape else x
    y = _permute_collapsed(xc, c_dims, _is_multi_tc_chip())
    return y.reshape(out_shape_full) if y.shape != out_shape_full else y


class Permute:
    """JAX/Pallas port of deep_time_series.layer.Permute."""

    def __init__(self, *dims):
        self.dims = dims

    def __call__(self, x):
        return permute(x, self.dims)


if __name__ == "__main__":
    key = jax.random.PRNGKey(0)
    k1, k2, k3, k4, k5 = jax.random.split(key, 5)

    # 1) Primary DeepTimeSeries use at small (B, T, C): narrow output -> fallback.
    x = jax.random.normal(k1, (2, 8, 32), dtype=jnp.float32)
    y = jax.block_until_ready(Permute(0, 2, 1)(x))
    assert y.shape == (2, 32, 8)
    assert jnp.array_equal(y, jnp.transpose(x, (0, 2, 1)))

    # 2) Small 4-D batched transpose of the trailing two axes -> fallback path.
    x4 = jax.random.normal(k2, (2, 4, 16, 16), dtype=jnp.float32)
    y4 = jax.block_until_ready(Permute(0, 1, 3, 2)(x4))
    assert jnp.array_equal(y4, jnp.transpose(x4, (0, 1, 3, 2)))

    # 3) Pallas path, f32: > 2 MiB plane with non-tile-multiple sizes -> tiled
    #    blocks, swapped trailing block indices, masked edge tiles.
    xt = jax.random.normal(k3, (2, 520, 640), dtype=jnp.float32)
    yt = jax.block_until_ready(Permute(0, 2, 1)(xt))
    assert jnp.array_equal(yt, jnp.transpose(xt, (0, 2, 1)))

    # 4) Pallas path after leading-axis collapse: (B,H,T,C)->(B,H,C,T) runs as
    #    (B*H, T, C) -> (B*H, C, T).
    xc4 = jax.random.normal(k4, (2, 4, 136, 640), dtype=jnp.float32)
    yc4 = jax.block_until_ready(Permute(0, 1, 3, 2)(xc4))
    assert jnp.array_equal(yc4, jnp.transpose(xc4, (0, 1, 3, 2)))

    # 5) Pallas path, packed dtype (bf16) with a sublane size that is not a
    #    multiple of the packing -> masked packed-sublane edge handling.
    xb = jax.random.normal(k5, (4, 530, 640), dtype=jnp.float32).astype(jnp.bfloat16)
    yb = jax.block_until_ready(Permute(0, 2, 1)(xb))
    assert jnp.array_equal(yb, jnp.transpose(xb, (0, 2, 1)))

    # 6) Leading-axis shuffle (XLA fallback after collapse) + identity fast path.
    yl = jax.block_until_ready(Permute(1, 0, 2, 3)(x4))
    assert jnp.array_equal(yl, jnp.transpose(x4, (1, 0, 2, 3)))
    assert Permute(0, 1, 2)(x) is x

    print("KERNEL_OK")
</pallas_src>

<mosaic_0001>
module attributes {stable_mosaic.version = 11 : i64} {
  func.func @_permute_tile_kernel(%arg0: i32, %arg1: i32, %arg2: i32, %arg3: memref<2x512x512xf32, #tpu.memory_space<vmem>>, %arg4: memref<2x512x512xf32, #tpu.memory_space<vmem>>) attributes {dimension_semantics = [#tpu.dimension_semantics<parallel>, #tpu.dimension_semantics<parallel>, #tpu.dimension_semantics<parallel>], iteration_bounds = array<i64: 1, 2, 2>, scalar_prefetch = 0 : i64, scratch_operands = 0 : i64, tpu.core_type = #tpu.core_type<tc>, window_params = [{transform_indices = @transform_0, window_bounds = array<i64: 2, 512, 512>}, {transform_indices = @transform_1, window_bounds = array<i64: 2, 512, 512>}]} {
    %c0 = arith.constant 0 : index
    %c0_0 = arith.constant 0 : index
    %c0_1 = arith.constant 0 : index
    %0 = vector.load %arg3[%c0, %c0_0, %c0_1] : memref<2x512x512xf32, #tpu.memory_space<vmem>>, vector<2x512x512xf32>
    %1 = tpu.transpose %0, [0, 2, 1] : vector<2x512x512xf32> -> vector<2x512x512xf32>
    %c0_2 = arith.constant 0 : index
    %c0_3 = arith.constant 0 : index
    %c0_4 = arith.constant 0 : index
    %2 = vector.load %arg4[%c0_2, %c0_3, %c0_4] : memref<2x512x512xf32, #tpu.memory_space<vmem>>, vector<2x512x512xf32>
    tpu.vector_store %arg4[%c0_2, %c0_3, %c0_4], %1 {strides = array<i32>} : memref<2x512x512xf32, #tpu.memory_space<vmem>>, vector<2x512x512xf32>,
    return
  }
  func.func @transform_0(%arg0: i32, %arg1: i32, %arg2: i32) -> (i32, i32, i32) {
    %c0_i32 = arith.constant 0 : i32
    return %arg0, %arg2, %arg1 : i32, i32, i32
  }
  func.func @transform_1(%arg0: i32, %arg1: i32, %arg2: i32) -> (i32, i32, i32) {
    %c0_i32 = arith.constant 0 : i32
    return %arg0, %arg1, %arg2 : i32, i32, i32
  }
}

</mosaic_0001>

<llo_original>
// kernel: tpu_custom_call.1
$region0: #{tpu_custom_call.1}
  #allocation0 [shape = 'u32[]', space=smem, size = 0x4, offset = 0x4, fixed_abs, tag = 'smem constant byte address 0x4 - core index']
  #allocation1 [shape = 'u32[144,128]{1,0:T(1,128)}', space=vmem, size = 0x12000, scoped, tag = 'internal scratch']
  #allocation5 [shape = 's32[]', space=sflag, size = 0x4, offset = 0, fixed_abs, tag = 'sflag constant byte address 0x0 - dummy sync flag']
  %s0 = inlined_call_operand.hbm [shape: f32[2,520,640], index: 0, kind: input, shape index: {}]
  %s1 = inlined_call_operand.vmem [shape: f32[2,640,520], index: 1, kind: output, shape index: {}]
  %s2 = sld [smem:[#allocation0]]
  $region131: #{tpu_custom_call.1} parent=0
    _
  %s4 = ssub.s32 1, %s2
  %s5 = scalar_select 0, %s4, %s2
  $region1: #{tpu_custom_call.1} parent=0
    #allocation2 [shape = 'u8[4194304]{0}', space=vmem, size = 0x400000, scoped, tag = 'input window, operand 0']
    #allocation3 [shape = 's32[2]{0}', space=sflag, size = 0x8, scoped, tag = 'scoped memory for tpu_custom_call.1']
    #allocation4 [shape = 'u8[4194304]{0}', space=vmem, size = 0x400000, scoped, tag = 'output window, operand 0']
    %6 = vsyncpa [#allocation3], 0
    %s7 = scalar_lea.sflag [#allocation3], 1
    %8 = vsyncpa %s7, 0
    loop: start=0, step=1, limit=6
    $region2: #{tpu_custom_call.1} parent=1 // loop_pre_header
      _
    $region3: #{tpu_custom_call.1} parent=1 // loop_header
      %s10 = sphi 0, %s14
      %p11 = scmp.ge.s32.totalorder %s10, 6
      %s17 = sphi 0, %s36
      %s18 = sphi 0, %s32
      %s19 = sphi 0, %s28
      %s20 = sphi 0, %s17
      %s21 = sphi 0, %s18
      %s22 = sphi 0, %s19
      %s23 = sphi 0, %s20
      %s24 = sphi 0, %s21
      %s25 = sphi 0, %s22
      %s43 = sphi 0, %s45
      %s46 = sphi 0, %s43
      %s47 = sphi 0, %s46
      %s63 = sphi 0, %s47
      %s73 = sphi 0, %s75
      %s76 = sphi 0, %s73
      %s77 = sphi 0, %s76
      %s93 = sphi 0, %s77
    $region4: #{tpu_custom_call.1} parent=1 // loop_header_branch
      %13 = sbr.rel (%p11) target = $region8
    $region5: #{tpu_custom_call.1} parent=1 // loop_body
      %s15 = ssub.s32 %s10, 1
      %s16 = ssub.s32 %s10, 2
      %s26 = sadd.s32 1, %s19
      %p27 = scmp.ge.s32.totalorder %s26, 2
      %s28 = scalar_select %p27, 0, %s26
      %s29 = sadd.s32 1, %s18
      %s30 = scalar_select %p27, %s29, %s18
      %p31 = scmp.ge.s32.totalorder %s30, 2
      %s32 = scalar_select %p31, 0, %s30
      %s33 = sadd.s32 1, %s17
      %s34 = scalar_select %p31, %s33, %s17
      %p35 = scmp.ge.s32.totalorder %s34, 1
      %s36 = scalar_select %p35, 0, %s34
      %s37 = ssub.s32 %s17, %s36
      %s38 = ssub.s32 %s19, %s28
      %s39 = sor.u32 %s37, %s38
      %s40 = ssub.s32 %s18, %s32
      %s41 = sor.u32 %s39, %s40
      %p42 = scmp.eq.s32.totalorder %s41, 0
      %s44 = sadd.s32 %s43, 1
      %s45 = scalar_select %p42, %s43, %s44
      %p48 = pneg %p42
      %p49 = scmp.eq.s32.totalorder %s10, 3
      %p50 = por %p48, %p49
      %p51 = scmp.ne.s32.totalorder %s43, %s46
      %p52 = scmp.eq.s32.totalorder %s10, 0
      %p53 = por %p51, %p52
      %p54 = scmp.ne.s32.totalorder %s43, %s46
      %p55 = scmp.eq.s32.totalorder %s15, 3
      %p56 = por %p54, %p55
      %p57 = scmp.ne.s32.totalorder %s46, %s47
      %p58 = scmp.eq.s32.totalorder %s15, 0
      %p59 = por %p57, %p58
      %p60 = scmp.ne.s32.totalorder %s46, %s47
      %p61 = scmp.eq.s32.totalorder %s16, 3
      %p62 = por %p60, %p61
      %p64 = scmp.ne.s32.totalorder %s47, %s63
      %p65 = scmp.eq.s32.totalorder %s16, 0
      %p66 = por %p64, %p65
      %s67 = ssub.s32 %s17, %s36
      %s68 = ssub.s32 %s18, %s32
      %s69 = sor.u32 %s67, %s68
      %s70 = ssub.s32 %s19, %s28
      %s71 = sor.u32 %s69, %s70
      %p72 = scmp.eq.s32.totalorder %s71, 0
      %s74 = sadd.s32 %s73, 1
      %s75 = scalar_select %p72, %s73, %s74
      %p78 = pneg %p72
      %p79 = scmp.eq.s32.totalorder %s10, 3
      %p80 = por %p78, %p79
      %p81 = scmp.ne.s32.totalorder %s73, %s76
      %p82 = scmp.eq.s32.totalorder %s10, 0
      %p83 = por %p81, %p82
      %p84 = scmp.ne.s32.totalorder %s73, %s76
      %p85 = scmp.eq.s32.totalorder %s15, 3
      %p86 = por %p84, %p85
      %p87 = scmp.ne.s32.totalorder %s76, %s77
      %p88 = scmp.eq.s32.totalorder %s15, 0
      %p89 = por %p87, %p88
      %p90 = scmp.ne.s32.totalorder %s76, %s77
      %p91 = scmp.eq.s32.totalorder %s16, 3
      %p92 = por %p90, %p91
      %p94 = scmp.ne.s32.totalorder %s77, %s93
      %p95 = scmp.eq.s32.totalorder %s16, 0
      %p96 = por %p94, %p95
      %p97 = scmp.le.s32.totalorder 1, %s10
      %p98 = scmp.lt.s32.totalorder %s10, 5
      %p99 = pnand %p97, %p98
      %p100 = pneg %p99
      // Predicated region
      $region9: #{tpu_custom_call.1} parent=5 // pred_check
        _
      $region10: #{tpu_custom_call.1} parent=5 // pred_check_branch
        %102 = sbr.rel (%p99) target = $region12
      $region11: #{tpu_custom_call.1} parent=5 // pred_region
        %s103 = ssub.s32 %s10, 1
      $region12: #{tpu_custom_call.1} parent=5 // pred_fallthru
        _
      %p104 = scmp.lt.s32.totalorder %s10, 4
      // Predicated region
      $region13: #{tpu_custom_call.1} parent=5 // pred_check
        %p105 = pneg %p104
      $region14: #{tpu_custom_call.1} parent=5 // pred_check_branch
        %107 = sbr.rel (%p105) target = $region16
      $region15: #{tpu_custom_call.1} parent=5 // pred_region
        // Predicated region
        $region17: #{tpu_custom_call.1} parent=15 // pred_check
          %p108 = pneg %p53
        $region18: #{tpu_custom_call.1} parent=15 // pred_check_branch
          %110 = sbr.rel (%p108) target = $region20
        $region19: #{tpu_custom_call.1} parent=15 // pred_region
          #allocation6 [shape = 'u32[6]{0}', space=smem, size = 0x18, scoped, tag = 'DMA stride descriptor']
          %s111 = sand.u32 %s43, 1
          %s112 = scalar_lea.sflag [#allocation3], %s111
          %s113 = sand.u32 %s43, 1
          %s114 = smul.addr %s113, 4096
          %s115 = scalar_lea.vmem [#allocation2], %s114
          %s116 = smul.u32 2, %s17
          %s117 = smul.u32 64, %s19
          %s118 = smul.u32 4, %s18
          %s119 = ssub.s32 65, %s117
          %p120 = scmp.lt.s32.totalorder %s119, 64
          %s121 = scalar_select %p120, %s119, 64
          %s122 = smul.u32 256, %s121
          %s123 = ssub.s32 5, %s118
          %p124 = scmp.lt.s32.totalorder %s123, 4
          %s125 = scalar_select %p124, %s123, 4
          %s126 = smul.u32 %s122, %s125
          %s128 = ssub.s32 65536, %s126
          %129 = vsyncadd %s112, %s128
          %p130 = scmp.ne.s32.totalorder 0, %s126
          %s131 = smul.addr %s117, 5
          %s132 = sadd.s32 %s118, %s131
          %s133 = smul.addr %s116, 325
          %s134 = sadd.s32 %s132, %s133
          %s135 = smul.addr %s134, 128
          %s136 = scalar_lea.hbm %s0, %s135
          %s137 = smul.u32 %s125, 8
          %s138 = smul.u32 %s137, %s121
          %s139 = smul.u32 %s138, 2
          %s141 = sshll.u32 1, 14
          %s142 = sxor.u32 4294967295, %s141
          %s144 = sld [smem:[#allocation0]]
          %s145 = sadd.s32 2, %s144
          %s147 = sshll.u32 7, 26
          %s148 = sxor.u32 4294967295, %s147
          %s149 = sand.u32 0, %s148
          %s150 = sshll.u32 %s145, 26
          %s151 = sor.u32 %s149, %s150
          %s152 = sshll.u32 %s115, 4
          %s153 = int_to_ptr.vmem [resolvable:$true] %s152
          %s154 = sshll.u32 %s139, 4
          %159 = sst [smem:[#allocation6]] 41600
          %s160 = scalar_lea.smem [#allocation6], 1
          %161 = sst [smem:[%s160]] 32768
          %s162 = scalar_lea.smem [#allocation6], 2
          %163 = sst [smem:[%s162]] %s121
          %s164 = scalar_lea.smem [#allocation6], 3
          %165 = sst [smem:[%s164]] 640
          %s166 = scalar_lea.smem [#allocation6], 4
          %167 = sst [smem:[%s166]] 512
          %s168 = scalar_lea.smem [#allocation6], 5
          %169 = sst [smem:[%s168]] %s137
          %171 = dma.general (%p130), %s136, %s154, %s153, %s112, [#allocation5], [#allocation6], %s151, 0
        $region20: #{tpu_custom_call.1} parent=15 // pred_fallthru
          _
      $region16: #{tpu_custom_call.1} parent=5 // pred_fallthru
        _
      %p172 = scmp.le.s32.totalorder 1, %s10
      %p173 = scmp.lt.s32.totalorder %s10, 5
      %p174 = pnand %p172, %p173
      %p175 = pneg %p174
      // Predicated region
      $region21: #{tpu_custom_call.1} parent=5 // pred_check
        _
      $region22: #{tpu_custom_call.1} parent=5 // pred_check_branch
        %177 = sbr.rel (%p174) target = $region24
      $region23: #{tpu_custom_call.1} parent=5 // pred_region
        %s178 = ssub.s32 %s10, 1
        %s179 = sand.u32 %s46, 1
        %s180 = scalar_lea.sflag [#allocation3], %s179
        %s181 = sand.u32 %s46, 1
        %s182 = smul.addr %s181, 4096
        %s183 = scalar_lea.vmem [#allocation2], %s182
        // Predicated region
        $region25: #{tpu_custom_call.1} parent=23 // pred_check
          %p184 = pneg %p59
        $region26: #{tpu_custom_call.1} parent=23 // pred_check_branch
          %186 = sbr.rel (%p184) target = $region28
        $region27: #{tpu_custom_call.1} parent=23 // pred_region
          %187 = dma.done %s180, 65536
        $region28: #{tpu_custom_call.1} parent=23 // pred_fallthru
          _
        %s188 = sand.u32 %s46, 1
        %s189 = scalar_lea.sflag [#allocation3], %s188
        %s190 = sand.u32 %s46, 1
        %s191 = smul.addr %s190, 4096
        %s192 = scalar_lea.vmem [#allocation2], %s191
        %p193 = pneg %p59
        %p194 = pneg %p56
        %p195 = pneg %p89
        %p196 = pneg %p86
        %s197 = sand.u32 %s76, 1
        %s198 = sand.u32 %s76, 1
        %s199 = smul.addr %s198, 4096
        %s200 = scalar_lea.vmem [#allocation4], %s199
        %s201 = smul.u32 2, %s20
        %s202 = smul.u32 64, %s22
        %s203 = smul.u32 4, %s21
        %s204 = ssub.s32 65, %s202
        %p205 = scmp.lt.s32.totalorder %s204, 64
        %s206 = scalar_select %p205, %s204, 64
        %s207 = smul.u32 256, %s206
        %s208 = ssub.s32 5, %s203
        %p209 = scmp.lt.s32.totalorder %s208, 4
        %s210 = scalar_select %p209, %s208, 4
        %s211 = smul.u32 %s207, %s210
        %s212 = smul.u32 2, %s20
        %s213 = smul.u32 64, %s21
        %s214 = smul.u32 4, %s22
        %s215 = ssub.s32 80, %s213
        %p216 = scmp.lt.s32.totalorder %s215, 64
        %s217 = scalar_select %p216, %s215, 64
        %s218 = smul.u32 256, %s217
        %s219 = ssub.s32 5, %s214
        %p220 = scmp.lt.s32.totalorder %s219, 4
        %s221 = scalar_select %p220, %s219, 4
        %s222 = smul.u32 %s218, %s221
        %v223 = vld [vmem:[%s183] sm:$0xff]
        %v224 = vld [vmem:[%s183 + $0x8] sm:$0xff]
        %v225 = vld [vmem:[%s183 + $0x10] sm:$0xff]
        %v226 = vld [vmem:[%s183 + $0x18] sm:$0xff]
        %v227 = vld [vmem:[%s183 + $0x20] sm:$0xff]
        %v228 = vld [vmem:[%s183 + $0x28] sm:$0xff]
        %v229 = vld [vmem:[%s183 + $0x30] sm:$0xff]
        %v230 = vld [vmem:[%s183 + $0x38] sm:$0xff]
        %v231 = vld [vmem:[%s183 + $0x40] sm:$0xff]
        %v232 = vld [vmem:[%s183 + $0x48] sm:$0xff]
        %v233 = vld [vmem:[%s183 + $0x50] sm:$0xff]
        %v234 = vld [vmem:[%s183 + $0x58] sm:$0xff]
        %v235 = vld [vmem:[%s183 + $0x60] sm:$0xff]
        %v236 = vld [vmem:[%s183 + $0x68] sm:$0xff]
        %v237 = vld [vmem:[%s183 + $0x70] sm:$0xff]
        %v238 = vld [vmem:[%s183 + $0x78] sm:$0xff]
        %v239 = vld [vmem:[%s183 + $0x80] sm:$0xff]
        %v240 = vld [vmem:[%s183 + $0x88] sm:$0xff]
        %v241 = vld [vmem:[%s183 + $0x90] sm:$0xff]
        %v242 = vld [vmem:[%s183 + $0x98] sm:$0xff]
        %v243 = vld [vmem:[%s183 + $0xa0] sm:$0xff]
        %v244 = vld [vmem:[%s183 + $0xa8] sm:$0xff]
        %v245 = vld [vmem:[%s183 + $0xb0] sm:$0xff]
        %v246 = vld [vmem:[%s183 + $0xb8] sm:$0xff]
        %v247 = vld [vmem:[%s183 + $0xc0] sm:$0xff]
        %v248 = vld [vmem:[%s183 + $0xc8] sm:$0xff]
        %v249 = vld [vmem:[%s183 + $0xd0] sm:$0xff]
        %v250 = vld [vmem:[%s183 + $0xd8] sm:$0xff]
        %v251 = vld [vmem:[%s183 + $0xe0] sm:$0xff]
        %v252 = vld [vmem:[%s183 + $0xe8] sm:$0xff]
        %v253 = vld [vmem:[%s183 + $0xf0] sm:$0xff]
        %v254 = vld [vmem:[%s183 + $0xf8] sm:$0xff]
        %v255 = vld [vmem:[%s183 + $0x100] sm:$0xff]
        %v256 = vld [vmem:[%s183 + $0x108] sm:$0xff]
        %v257 = vld [vmem:[%s183 + $0x110] sm:$0xff]
        %v258 = vld [vmem:[%s183 + $0x118] sm:$0xff]
        %v259 = vld [vmem:[%s183 + $0x120] sm:$0xff]
        %v260 = vld [vmem:[%s183 + $0x128] sm:$0xff]
        %v261 = vld [vmem:[%s183 + $0x130] sm:$0xff]
        %v262 = vld [vmem:[%s183 + $0x138] sm:$0xff]
        %v263 = vld [vmem:[%s183 + $0x140] sm:$0xff]
        %v264 = vld [vmem:[%s183 + $0x148] sm:$0xff]
        %v265 = vld [vmem:[%s183 + $0x150] sm:$0xff]
        %v266 = vld [vmem:[%s183 + $0x158] sm:$0xff]
        %v267 = vld [vmem:[%s183 + $0x160] sm:$0xff]
        %v268 = vld [vmem:[%s183 + $0x168] sm:$0xff]
        %v269 = vld [vmem:[%s183 + $0x170] sm:$0xff]
        %v270 = vld [vmem:[%s183 + $0x178] sm:$0xff]
        %v271 = vld [vmem:[%s183 + $0x180] sm:$0xff]
        %v272 = vld [vmem:[%s183 + $0x188] sm:$0xff]
        %v273 = vld [vmem:[%s183 + $0x190] sm:$0xff]
        %v274 = vld [vmem:[%s183 + $0x198] sm:$0xff]
        %v275 = vld [vmem:[%s183 + $0x1a0] sm:$0xff]
        %v276 = vld [vmem:[%s183 + $0x1a8] sm:$0xff]
        %v277 = vld [vmem:[%s183 + $0x1b0] sm:$0xff]
        %v278 = vld [vmem:[%s183 + $0x1b8] sm:$0xff]
        %v279 = vld [vmem:[%s183 + $0x1c0] sm:$0xff]
        %v280 = vld [vmem:[%s183 + $0x1c8] sm:$0xff]
        %v281 = vld [vmem:[%s183 + $0x1d0] sm:$0xff]
        %v282 = vld [vmem:[%s183 + $0x1d8] sm:$0xff]
        %v283 = vld [vmem:[%s183 + $0x1e0] sm:$0xff]
        %v284 = vld [vmem:[%s183 + $0x1e8] sm:$0xff]
        %v285 = vld [vmem:[%s183 + $0x1f0] sm:$0xff]
        %v286 = vld [vmem:[%s183 + $0x1f8] sm:$0xff]
        %v287 = vld [vmem:[%s183 + $0x200] sm:$0xff]
        %v288 = vld [vmem:[%s183 + $0x208] sm:$0xff]
        %v289 = vld [vmem:[%s183 + $0x210] sm:$0xff]
        %v290 = vld [vmem:[%s183 + $0x218] sm:$0xff]
        %v291 = vld [vmem:[%s183 + $0x220] sm:$0xff]
        %v292 = vld [vmem:[%s183 + $0x228] sm:$0xff]
        %v293 = vld [vmem:[%s183 + $0x230] sm:$0xff]
        %v294 = vld [vmem:[%s183 + $0x238] sm:$0xff]
        %v295 = vld [vmem:[%s183 + $0x240] sm:$0xff]
        %v296 = vld [vmem:[%s183 + $0x248] sm:$0xff]
        %v297 = vld [vmem:[%s183 + $0x250] sm:$0xff]
        %v298 = vld [vmem:[%s183 + $0x258] sm:$0xff]
        %v299 = vld [vmem:[%s183 + $0x260] sm:$0xff]
        %v300 = vld [vmem:[%s183 + $0x268] sm:$0xff]
        %v301 = vld [vmem:[%s183 + $0x270] sm:$0xff]
        %v302 = vld [vmem:[%s183 + $0x278] sm:$0xff]
        %v303 = vld [vmem:[%s183 + $0x280] sm:$0xff]
        %v304 = vld [vmem:[%s183 + $0x288] sm:$0xff]
        %v305 = vld [vmem:[%s183 + $0x290] sm:$0xff]
        %v306 = vld [vmem:[%s183 + $0x298] sm:$0xff]
        %v307 = vld [vmem:[%s183 + $0x2a0] sm:$0xff]
        %v308 = vld [vmem:[%s183 + $0x2a8] sm:$0xff]
        %v309 = vld [vmem:[%s183 + $0x2b0] sm:$0xff]
        %v310 = vld [vmem:[%s183 + $0x2b8] sm:$0xff]
        %v311 = vld [vmem:[%s183 + $0x2c0] sm:$0xff]
        %v312 = vld [vmem:[%s183 + $0x2c8] sm:$0xff]
        %v313 = vld [vmem:[%s183 + $0x2d0] sm:$0xff]
        %v314 = vld [vmem:[%s183 + $0x2d8] sm:$0xff]
        %v315 = vld [vmem:[%s183 + $0x2e0] sm:$0xff]
        %v316 = vld [vmem:[%s183 + $0x2e8] sm:$0xff]
        %v317 = vld [vmem:[%s183 + $0x2f0] sm:$0xff]
        %v318 = vld [vmem:[%s183 + $0x2f8] sm:$0xff]
        %v319 = vld [vmem:[%s183 + $0x300] sm:$0xff]
        %v320 = vld [vmem:[%s183 + $0x308] sm:$0xff]
        %v321 = vld [vmem:[%s183 + $0x310] sm:$0xff]
        %v322 = vld [vmem:[%s183 + $0x318] sm:$0xff]
        %v323 = vld [vmem:[%s183 + $0x320] sm:$0xff]
        %v324 = vld [vmem:[%s183 + $0x328] sm:$0xff]
        %v325 = vld [vmem:[%s183 + $0x330] sm:$0xff]
        %v326 = vld [vmem:[%s183 + $0x338] sm:$0xff]
        %v327 = vld [vmem:[%s183 + $0x340] sm:$0xff]
        %v328 = vld [vmem:[%s183 + $0x348] sm:$0xff]
        %v329 = vld [vmem:[%s183 + $0x350] sm:$0xff]
        %v330 = vld [vmem:[%s183 + $0x358] sm:$0xff]
        %v331 = vld [vmem:[%s183 + $0x360] sm:$0xff]
        %v332 = vld [vmem:[%s183 + $0x368] sm:$0xff]
        %v333 = vld [vmem:[%s183 + $0x370] sm:$0xff]
        %v334 = vld [vmem:[%s183 + $0x378] sm:$0xff]
        %v335 = vld [vmem:[%s183 + $0x380] sm:$0xff]
        %v336 = vld [vmem:[%s183 + $0x388] sm:$0xff]
        %v337 = vld [vmem:[%s183 + $0x390] sm:$0xff]
        %v338 = vld [vmem:[%s183 + $0x398] sm:$0xff]
        %v339 = vld [vmem:[%s183 + $0x3a0] sm:$0xff]
        %v340 = vld [vmem:[%s183 + $0x3a8] sm:$0xff]
        %v341 = vld [vmem:[%s183 + $0x3b0] sm:$0xff]
        %v342 = vld [vmem:[%s183 + $0x3b8] sm:$0xff]
        %v343 = vld [vmem:[%s183 + $0x3c0] sm:$0xff]
        %v344 = vld [vmem:[%s183 + $0x3c8] sm:$0xff]
        %v345 = vld [vmem:[%s183 + $0x3d0] sm:$0xff]
        %v346 = vld [vmem:[%s183 + $0x3d8] sm:$0xff]
        %v347 = vld [vmem:[%s183 + $0x3e0] sm:$0xff]
        %v348 = vld [vmem:[%s183 + $0x3e8] sm:$0xff]
        %v349 = vld [vmem:[%s183 + $0x3f0] sm:$0xff]
        %v350 = vld [vmem:[%s183 + $0x3f8] sm:$0xff]
        %v351 = vld [vmem:[%s183 + $0x400] sm:$0xff]
        %v352 = vld [vmem:[%s183 + $0x408] sm:$0xff]
        %v353 = vld [vmem:[%s183 + $0x410] sm:$0xff]
        %v354 = vld [vmem:[%s183 + $0x418] sm:$0xff]
        %v355 = vld [vmem:[%s183 + $0x420] sm:$0xff]
        %v356 = vld [vmem:[%s183 + $0x428] sm:$0xff]
        %v357 = vld [vmem:[%s183 + $0x430] sm:$0xff]
        %v358 = vld [vmem:[%s183 + $0x438] sm:$0xff]
        %v359 = vld [vmem:[%s183 + $0x440] sm:$0xff]
        %v360 = vld [vmem:[%s183 + $0x448] sm:$0xff]
        %v361 = vld [vmem:[%s183 + $0x450] sm:$0xff]
        %v362 = vld [vmem:[%s183 + $0x458] sm:$0xff]
        %v363 = vld [vmem:[%s183 + $0x460] sm:$0xff]
        %v364 = vld [vmem:[%s183 + $0x468] sm:$0xff]
        %v365 = vld [vmem:[%s183 + $0x470] sm:$0xff]
        %v366 = vld [vmem:[%s183 + $0x478] sm:$0xff]
        %v367 = vld [vmem:[%s183 + $0x480] sm:$0xff]
        %v368 = vld [vmem:[%s183 + $0x488] sm:$0xff]
        %v369 = vld [vmem:[%s183 + $0x490] sm:$0xff]
        %v370 = vld [vmem:[%s183 + $0x498] sm:$0xff]
        %v371 = vld [vmem:[%s183 + $0x4a0] sm:$0xff]
        %v372 = vld [vmem:[%s183 + $0x4a8] sm:$0xff]
        %v373 = vld [vmem:[%s183 + $0x4b0] sm:$0xff]
        %v374 = vld [vmem:[%s183 + $0x4b8] sm:$0xff]
        %v375 = vld [vmem:[%s183 + $0x4c0] sm:$0xff]
        %v376 = vld [vmem:[%s183 + $0x4c8] sm:$0xff]
        %v377 = vld [vmem:[%s183 + $0x4d0] sm:$0xff]
        %v378 = vld [vmem:[%s183 + $0x4d8] sm:$0xff]
        %v379 = vld [vmem:[%s183 + $0x4e0] sm:$0xff]
        %v380 = vld [vmem:[%s183 + $0x4e8] sm:$0xff]
        %v381 = vld [vmem:[%s183 + $0x4f0] sm:$0xff]
        %v382 = vld [vmem:[%s183 + $0x4f8] sm:$0xff]
        %v383 = vld [vmem:[%s183 + $0x500] sm:$0xff]
        %v384 = vld [vmem:[%s183 + $0x508] sm:$0xff]
        %v385 = vld [vmem:[%s183 + $0x510] sm:$0xff]
        %v386 = vld [vmem:[%s183 + $0x518] sm:$0xff]
        %v387 = vld [vmem:[%s183 + $0x520] sm:$0xff]
        %v388 = vld [vmem:[%s183 + $0x528] sm:$0xff]
        %v389 = vld [vmem:[%s183 + $0x530] sm:$0xff]
        %v390 = vld [vmem:[%s183 + $0x538] sm:$0xff]
        %v391 = vld [vmem:[%s183 + $0x540] sm:$0xff]
        %v392 = vld [vmem:[%s183 + $0x548] sm:$0xff]
        %v393 = vld [vmem:[%s183 + $0x550] sm:$0xff]
        %v394 = vld [vmem:[%s183 + $0x558] sm:$0xff]
        %v395 = vld [vmem:[%s183 + $0x560] sm:$0xff]
        %v396 = vld [vmem:[%s183 + $0x568] sm:$0xff]
        %v397 = vld [vmem:[%s183 + $0x570] sm:$0xff]
        %v398 = vld [vmem:[%s183 + $0x578] sm:$0xff]
        %v399 = vld [vmem:[%s183 + $0x580] sm:$0xff]
        %v400 = vld [vmem:[%s183 + $0x588] sm:$0xff]
        %v401 = vld [vmem:[%s183 + $0x590] sm:$0xff]
        %v402 = vld [vmem:[%s183 + $0x598] sm:$0xff]
        %v403 = vld [vmem:[%s183 + $0x5a0] sm:$0xff]
        %v404 = vld [vmem:[%s183 + $0x5a8] sm:$0xff]
        %v405 = vld [vmem:[%s183 + $0x5b0] sm:$0xff]
        %v406 = vld [vmem:[%s183 + $0x5b8] sm:$0xff]
        %v407 = vld [vmem:[%s183 + $0x5c0] sm:$0xff]
        %v408 = vld [vmem:[%s183 + $0x5c8] sm:$0xff]
        %v409 = vld [vmem:[%s183 + $0x5d0] sm:$0xff]
        %v410 = vld [vmem:[%s183 + $0x5d8] sm:$0xff]
        %v411 = vld [vmem:[%s183 + $0x5e0] sm:$0xff]
        %v412 = vld [vmem:[%s183 + $0x5e8] sm:$0xff]
        %v413 = vld [vmem:[%s183 + $0x5f0] sm:$0xff]
        %v414 = vld [vmem:[%s183 + $0x5f8] sm:$0xff]
        %v415 = vld [vmem:[%s183 + $0x600] sm:$0xff]
        %v416 = vld [vmem:[%s183 + $0x608] sm:$0xff]
        %v417 = vld [vmem:[%s183 + $0x610] sm:$0xff]
        %v418 = vld [vmem:[%s183 + $0x618] sm:$0xff]
        %v419 = vld [vmem:[%s183 + $0x620] sm:$0xff]
        %v420 = vld [vmem:[%s183 + $0x628] sm:$0xff]
        %v421 = vld [vmem:[%s183 + $0x630] sm:$0xff]
        %v422 = vld [vmem:[%s183 + $0x638] sm:$0xff]
        %v423 = vld [vmem:[%s183 + $0x640] sm:$0xff]
        %v424 = vld [vmem:[%s183 + $0x648] sm:$0xff]
        %v425 = vld [vmem:[%s183 + $0x650] sm:$0xff]
        %v426 = vld [vmem:[%s183 + $0x658] sm:$0xff]
        %v427 = vld [vmem:[%s183 + $0x660] sm:$0xff]
        %v428 = vld [vmem:[%s183 + $0x668] sm:$0xff]
        %v429 = vld [vmem:[%s183 + $0x670] sm:$0xff]
        %v430 = vld [vmem:[%s183 + $0x678] sm:$0xff]
        %v431 = vld [vmem:[%s183 + $0x680] sm:$0xff]
        %v432 = vld [vmem:[%s183 + $0x688] sm:$0xff]
        %v433 = vld [vmem:[%s183 + $0x690] sm:$0xff]
        %v434 = vld [vmem:[%s183 + $0x698] sm:$0xff]
        %v435 = vld [vmem:[%s183 + $0x6a0] sm:$0xff]
        %v436 = vld [vmem:[%s183 + $0x6a8] sm:$0xff]
        %v437 = vld [vmem:[%s183 + $0x6b0] sm:$0xff]
        %v438 = vld [vmem:[%s183 + $0x6b8] sm:$0xff]
        %v439 = vld [vmem:[%s183 + $0x6c0] sm:$0xff]
        %v440 = vld [vmem:[%s183 + $0x6c8] sm:$0xff]
        %v441 = vld [vmem:[%s183 + $0x6d0] sm:$0xff]
        %v442 = vld [vmem:[%s183 + $0x6d8] sm:$0xff]
        %v443 = vld [vmem:[%s183 + $0x6e0] sm:$0xff]
        %v444 = vld [vmem:[%s183 + $0x6e8] sm:$0xff]
        %v445 = vld [vmem:[%s183 + $0x6f0] sm:$0xff]
        %v446 = vld [vmem:[%s183 + $0x6f8] sm:$0xff]
        %v447 = vld [vmem:[%s183 + $0x700] sm:$0xff]
        %v448 = vld [vmem:[%s183 + $0x708] sm:$0xff]
        %v449 = vld [vmem:[%s183 + $0x710] sm:$0xff]
        %v450 = vld [vmem:[%s183 + $0x718] sm:$0xff]
        %v451 = vld [vmem:[%s183 + $0x720] sm:$0xff]
        %v452 = vld [vmem:[%s183 + $0x728] sm:$0xff]
        %v453 = vld [vmem:[%s183 + $0x730] sm:$0xff]
        %v454 = vld [vmem:[%s183 + $0x738] sm:$0xff]
        %v455 = vld [vmem:[%s183 + $0x740] sm:$0xff]
        %v456 = vld [vmem:[%s183 + $0x748] sm:$0xff]
        %v457 = vld [vmem:[%s183 + $0x750] sm:$0xff]
        %v458 = vld [vmem:[%s183 + $0x758] sm:$0xff]
        %v459 = vld [vmem:[%s183 + $0x760] sm:$0xff]
        %v460 = vld [vmem:[%s183 + $0x768] sm:$0xff]
        %v461 = vld [vmem:[%s183 + $0x770] sm:$0xff]
        %v462 = vld [vmem:[%s183 + $0x778] sm:$0xff]
        %v463 = vld [vmem:[%s183 + $0x780] sm:$0xff]
        %v464 = vld [vmem:[%s183 + $0x788] sm:$0xff]
        %v465 = vld [vmem:[%s183 + $0x790] sm:$0xff]
        %v466 = vld [vmem:[%s183 + $0x798] sm:$0xff]
        %v467 = vld [vmem:[%s183 + $0x7a0] sm:$0xff]
        %v468 = vld [vmem:[%s183 + $0x7a8] sm:$0xff]
        %v469 = vld [vmem:[%s183 + $0x7b0] sm:$0xff]
        %v470 = vld [vmem:[%s183 + $0x7b8] sm:$0xff]
        %v471 = vld [vmem:[%s183 + $0x7c0] sm:$0xff]
        %v472 = vld [vmem:[%s183 + $0x7c8] sm:$0xff]
        %v473 = vld [vmem:[%s183 + $0x7d0] sm:$0xff]
        %v474 = vld [vmem:[%s183 + $0x7d8] sm:$0xff]
        %v475 = vld [vmem:[%s183 + $0x7e0] sm:$0xff]
        %v476 = vld [vmem:[%s183 + $0x7e8] sm:$0xff]
        %v477 = vld [vmem:[%s183 + $0x7f0] sm:$0xff]
        %v478 = vld [vmem:[%s183 + $0x7f8] sm:$0xff]
        %v479 = vld [vmem:[%s183 + $0x800] sm:$0xff]
        %v480 = vld [vmem:[%s183 + $0x808] sm:$0xff]
        %v481 = vld [vmem:[%s183 + $0x810] sm:$0xff]
        %v482 = vld [vmem:[%s183 + $0x818] sm:$0xff]
        %v483 = vld [vmem:[%s183 + $0x820] sm:$0xff]
        %v484 = vld [vmem:[%s183 + $0x828] sm:$0xff]
        %v485 = vld [vmem:[%s183 + $0x830] sm:$0xff]
        %v486 = vld [vmem:[%s183 + $0x838] sm:$0xff]
        %v487 = vld [vmem:[%s183 + $0x840] sm:$0xff]
        %v488 = vld [vmem:[%s183 + $0x848] sm:$0xff]
        %v489 = vld [vmem:[%s183 + $0x850] sm:$0xff]
        %v490 = vld [vmem:[%s183 + $0x858] sm:$0xff]
        %v491 = vld [vmem:[%s183 + $0x860] sm:$0xff]
        %v492 = vld [vmem:[%s183 + $0x868] sm:$0xff]
        %v493 = vld [vmem:[%s183 + $0x870] sm:$0xff]
        %v494 = vld [vmem:[%s183 + $0x878] sm:$0xff]
        %v495 = vld [vmem:[%s183 + $0x880] sm:$0xff]
        %v496 = vld [vmem:[%s183 + $0x888] sm:$0xff]
        %v497 = vld [vmem:[%s183 + $0x890] sm:$0xff]
        %v498 = vld [vmem:[%s183 + $0x898] sm:$0xff]
        %v499 = vld [vmem:[%s183 + $0x8a0] sm:$0xff]
        %v500 = vld [vmem:[%s183 + $0x8a8] sm:$0xff]
        %v501 = vld [vmem:[%s183 + $0x8b0] sm:$0xff]
        %v502 = vld [vmem:[%s183 + $0x8b8] sm:$0xff]
        %v503 = vld [vmem:[%s183 + $0x8c0] sm:$0xff]
        %v504 = vld [vmem:[%s183 + $0x8c8] sm:$0xff]
        %v505 = vld [vmem:[%s183 + $0x8d0] sm:$0xff]
        %v506 = vld [vmem:[%s183 + $0x8d8] sm:$0xff]
        %v507 = vld [vmem:[%s183 + $0x8e0] sm:$0xff]
        %v508 = vld [vmem:[%s183 + $0x8e8] sm:$0xff]
        %v509 = vld [vmem:[%s183 + $0x8f0] sm:$0xff]
        %v510 = vld [vmem:[%s183 + $0x8f8] sm:$0xff]
        %v511 = vld [vmem:[%s183 + $0x900] sm:$0xff]
        %v512 = vld [vmem:[%s183 + $0x908] sm:$0xff]
        %v513 = vld [vmem:[%s183 + $0x910] sm:$0xff]
        %v514 = vld [vmem:[%s183 + $0x918] sm:$0xff]
        %v515 = vld [vmem:[%s183 + $0x920] sm:$0xff]
        %v516 = vld [vmem:[%s183 + $0x928] sm:$0xff]
        %v517 = vld [vmem:[%s183 + $0x930] sm:$0xff]
        %v518 = vld [vmem:[%s183 + $0x938] sm:$0xff]
        %v519 = vld [vmem:[%s183 + $0x940] sm:$0xff]
        %v520 = vld [vmem:[%s183 + $0x948] sm:$0xff]
        %v521 = vld [vmem:[%s183 + $0x950] sm:$0xff]
        %v522 = vld [vmem:[%s183 + $0x958] sm:$0xff]
        %v523 = vld [vmem:[%s183 + $0x960] sm:$0xff]
        %v524 = vld [vmem:[%s183 + $0x968] sm:$0xff]
        %v525 = vld [vmem:[%s183 + $0x970] sm:$0xff]
        %v526 = vld [vmem:[%s183 + $0x978] sm:$0xff]
        %v527 = vld [vmem:[%s183 + $0x980] sm:$0xff]
        %v528 = vld [vmem:[%s183 + $0x988] sm:$0xff]
        %v529 = vld [vmem:[%s183 + $0x990] sm:$0xff]
        %v530 = vld [vmem:[%s183 + $0x998] sm:$0xff]
        %v531 = vld [vmem:[%s183 + $0x9a0] sm:$0xff]
        %v532 = vld [vmem:[%s183 + $0x9a8] sm:$0xff]
        %v533 = vld [vmem:[%s183 + $0x9b0] sm:$0xff]
        %v534 = vld [vmem:[%s183 + $0x9b8] sm:$0xff]
        %v535 = vld [vmem:[%s183 + $0x9c0] sm:$0xff]
        %v536 = vld [vmem:[%s183 + $0x9c8] sm:$0xff]
        %v537 = vld [vmem:[%s183 + $0x9d0] sm:$0xff]
        %v538 = vld [vmem:[%s183 + $0x9d8] sm:$0xff]
        %v539 = vld [vmem:[%s183 + $0x9e0] sm:$0xff]
        %v540 = vld [vmem:[%s183 + $0x9e8] sm:$0xff]
        %v541 = vld [vmem:[%s183 + $0x9f0] sm:$0xff]
        %v542 = vld [vmem:[%s183 + $0x9f8] sm:$0xff]
        %v543 = vld [vmem:[%s183 + $0xa00] sm:$0xff]
        %v544 = vld [vmem:[%s183 + $0xa08] sm:$0xff]
        %v545 = vld [vmem:[%s183 + $0xa10] sm:$0xff]
        %v546 = vld [vmem:[%s183 + $0xa18] sm:$0xff]
        %v547 = vld [vmem:[%s183 + $0xa20] sm:$0xff]
        %v548 = vld [vmem:[%s183 + $0xa28] sm:$0xff]
        %v549 = vld [vmem:[%s183 + $0xa30] sm:$0xff]
        %v550 = vld [vmem:[%s183 + $0xa38] sm:$0xff]
        %v551 = vld [vmem:[%s183 + $0xa40] sm:$0xff]
        %v552 = vld [vmem:[%s183 + $0xa48] sm:$0xff]
        %v553 = vld [vmem:[%s183 + $0xa50] sm:$0xff]
        %v554 = vld [vmem:[%s183 + $0xa58] sm:$0xff]
        %v555 = vld [vmem:[%s183 + $0xa60] sm:$0xff]
        %v556 = vld [vmem:[%s183 + $0xa68] sm:$0xff]
        %v557 = vld [vmem:[%s183 + $0xa70] sm:$0xff]
        %v558 = vld [vmem:[%s183 + $0xa78] sm:$0xff]
        %v559 = vld [vmem:[%s183 + $0xa80] sm:$0xff]
        %v560 = vld [vmem:[%s183 + $0xa88] sm:$0xff]
        %v561 = vld [vmem:[%s183 + $0xa90] sm:$0xff]
        %v562 = vld [vmem:[%s183 + $0xa98] sm:$0xff]
        %v563 = vld [vmem:[%s183 + $0xaa0] sm:$0xff]
        %v564 = vld [vmem:[%s183 + $0xaa8] sm:$0xff]
        %v565 = vld [vmem:[%s183 + $0xab0] sm:$0xff]
        %v566 = vld [vmem:[%s183 + $0xab8] sm:$0xff]
        %v567 = vld [vmem:[%s183 + $0xac0] sm:$0xff]
        %v568 = vld [vmem:[%s183 + $0xac8] sm:$0xff]
        %v569 = vld [vmem:[%s183 + $0xad0] sm:$0xff]
        %v570 = vld [vmem:[%s183 + $0xad8] sm:$0xff]
        %v571 = vld [vmem:[%s183 + $0xae0] sm:$0xff]
        %v572 = vld [vmem:[%s183 + $0xae8] sm:$0xff]
        %v573 = vld [vmem:[%s183 + $0xaf0] sm:$0xff]
        %v574 = vld [vmem:[%s183 + $0xaf8] sm:$0xff]
        %v575 = vld [vmem:[%s183 + $0xb00] sm:$0xff]
        %v576 = vld [vmem:[%s183 + $0xb08] sm:$0xff]
        %v577 = vld [vmem:[%s183 + $0xb10] sm:$0xff]
        %v578 = vld [vmem:[%s183 + $0xb18] sm:$0xff]
        %v579 = vld [vmem:[%s183 + $0xb20] sm:$0xff]
        %v580 = vld [vmem:[%s183 + $0xb28] sm:$0xff]
        %v581 = vld [vmem:[%s183 + $0xb30] sm:$0xff]
        %v582 = vld [vmem:[%s183 + $0xb38] sm:$0xff]
        %v583 = vld [vmem:[%s183 + $0xb40] sm:$0xff]
        %v584 = vld [vmem:[%s183 + $0xb48] sm:$0xff]
        %v585 = vld [vmem:[%s183 + $0xb50] sm:$0xff]
        %v586 = vld [vmem:[%s183 + $0xb58] sm:$0xff]
        %v587 = vld [vmem:[%s183 + $0xb60] sm:$0xff]
        %v588 = vld [vmem:[%s183 + $0xb68] sm:$0xff]
        %v589 = vld [vmem:[%s183 + $0xb70] sm:$0xff]
        %v590 = vld [vmem:[%s183 + $0xb78] sm:$0xff]
        %v591 = vld [vmem:[%s183 + $0xb80] sm:$0xff]
        %v592 = vld [vmem:[%s183 + $0xb88] sm:$0xff]
        %v593 = vld [vmem:[%s183 + $0xb90] sm:$0xff]
        %v594 = vld [vmem:[%s183 + $0xb98] sm:$0xff]
        %v595 = vld [vmem:[%s183 + $0xba0] sm:$0xff]
        %v596 = vld [vmem:[%s183 + $0xba8] sm:$0xff]
        %v597 = vld [vmem:[%s183 + $0xbb0] sm:$0xff]
        %v598 = vld [vmem:[%s183 + $0xbb8] sm:$0xff]
        %v599 = vld [vmem:[%s183 + $0xbc0] sm:$0xff]
        %v600 = vld [vmem:[%s183 + $0xbc8] sm:$0xff]
        %v601 = vld [vmem:[%s183 + $0xbd0] sm:$0xff]
        %v602 = vld [vmem:[%s183 + $0xbd8] sm:$0xff]
        %v603 = vld [vmem:[%s183 + $0xbe0] sm:$0xff]
        %v604 = vld [vmem:[%s183 + $0xbe8] sm:$0xff]
        %v605 = vld [vmem:[%s183 + $0xbf0] sm:$0xff]
        %v606 = vld [vmem:[%s183 + $0xbf8] sm:$0xff]
        %v607 = vld [vmem:[%s183 + $0xc00] sm:$0xff]
        %v608 = vld [vmem:[%s183 + $0xc08] sm:$0xff]
        %v609 = vld [vmem:[%s183 + $0xc10] sm:$0xff]
        %v610 = vld [vmem:[%s183 + $0xc18] sm:$0xff]
        %v611 = vld [vmem:[%s183 + $0xc20] sm:$0xff]
        %v612 = vld [vmem:[%s183 + $0xc28] sm:$0xff]
        %v613 = vld [vmem:[%s183 + $0xc30] sm:$0xff]
        %v614 = vld [vmem:[%s183 + $0xc38] sm:$0xff]
        %v615 = vld [vmem:[%s183 + $0xc40] sm:$0xff]
        %v616 = vld [vmem:[%s183 + $0xc48] sm:$0xff]
        %v617 = vld [vmem:[%s183 + $0xc50] sm:$0xff]
        %v618 = vld [vmem:[%s183 + $0xc58] sm:$0xff]
        %v619 = vld [vmem:[%s183 + $0xc60] sm:$0xff]
        %v620 = vld [vmem:[%s183 + $0xc68] sm:$0xff]
        %v621 = vld [vmem:[%s183 + $0xc70] sm:$0xff]
        %v622 = vld [vmem:[%s183 + $0xc78] sm:$0xff]
        %v623 = vld [vmem:[%s183 + $0xc80] sm:$0xff]
        %v624 = vld [vmem:[%s183 + $0xc88] sm:$0xff]
        %v625 = vld [vmem:[%s183 + $0xc90] sm:$0xff]
        %v626 = vld [vmem:[%s183 + $0xc98] sm:$0xff]
        %v627 = vld [vmem:[%s183 + $0xca0] sm:$0xff]
        %v628 = vld [vmem:[%s183 + $0xca8] sm:$0xff]
        %v629 = vld [vmem:[%s183 + $0xcb0] sm:$0xff]
        %v630 = vld [vmem:[%s183 + $0xcb8] sm:$0xff]
        %v631 = vld [vmem:[%s183 + $0xcc0] sm:$0xff]
        %v632 = vld [vmem:[%s183 + $0xcc8] sm:$0xff]
        %v633 = vld [vmem:[%s183 + $0xcd0] sm:$0xff]
        %v634 = vld [vmem:[%s183 + $0xcd8] sm:$0xff]
        %v635 = vld [vmem:[%s183 + $0xce0] sm:$0xff]
        %v636 = vld [vmem:[%s183 + $0xce8] sm:$0xff]
        %v637 = vld [vmem:[%s183 + $0xcf0] sm:$0xff]
        %v638 = vld [vmem:[%s183 + $0xcf8] sm:$0xff]
        %v639 = vld [vmem:[%s183 + $0xd00] sm:$0xff]
        %v640 = vld [vmem:[%s183 + $0xd08] sm:$0xff]
        %v641 = vld [vmem:[%s183 + $0xd10] sm:$0xff]
        %v642 = vld [vmem:[%s183 + $0xd18] sm:$0xff]
        %v643 = vld [vmem:[%s183 + $0xd20] sm:$0xff]
        %v644 = vld [vmem:[%s183 + $0xd28] sm:$0xff]
        %v645 = vld [vmem:[%s183 + $0xd30] sm:$0xff]
        %v646 = vld [vmem:[%s183 + $0xd38] sm:$0xff]
        %v647 = vld [vmem:[%s183 + $0xd40] sm:$0xff]
        %v648 = vld [vmem:[%s183 + $0xd48] sm:$0xff]
        %v649 = vld [vmem:[%s183 + $0xd50] sm:$0xff]
        %v650 = vld [vmem:[%s183 + $0xd58] sm:$0xff]
        %v651 = vld [vmem:[%s183 + $0xd60] sm:$0xff]
        %v652 = vld [vmem:[%s183 + $0xd68] sm:$0xff]
        %v653 = vld [vmem:[%s183 + $0xd70] sm:$0xff]
        %v654 = vld [vmem:[%s183 + $0xd78] sm:$0xff]
        %v655 = vld [vmem:[%s183 + $0xd80] sm:$0xff]
        %v656 = vld [vmem:[%s183 + $0xd88] sm:$0xff]
        %v657 = vld [vmem:[%s183 + $0xd90] sm:$0xff]
        %v658 = vld [vmem:[%s183 + $0xd98] sm:$0xff]
        %v659 = vld [vmem:[%s183 + $0xda0] sm:$0xff]
        %v660 = vld [vmem:[%s183 + $0xda8] sm:$0xff]
        %v661 = vld [vmem:[%s183 + $0xdb0] sm:$0xff]
        %v662 = vld [vmem:[%s183 + $0xdb8] sm:$0xff]
        %v663 = vld [vmem:[%s183 + $0xdc0] sm:$0xff]
        %v664 = vld [vmem:[%s183 + $0xdc8] sm:$0xff]
        %v665 = vld [vmem:[%s183 + $0xdd0] sm:$0xff]
        %v666 = vld [vmem:[%s183 + $0xdd8] sm:$0xff]
        %v667 = vld [vmem:[%s183 + $0xde0] sm:$0xff]
        %v668 = vld [vmem:[%s183 + $0xde8] sm:$0xff]
        %v669 = vld [vmem:[%s183 + $0xdf0] sm:$0xff]
        %v670 = vld [vmem:[%s183 + $0xdf8] sm:$0xff]
        %v671 = vld [vmem:[%s183 + $0xe00] sm:$0xff]
        %v672 = vld [vmem:[%s183 + $0xe08] sm:$0xff]
        %v673 = vld [vmem:[%s183 + $0xe10] sm:$0xff]
        %v674 = vld [vmem:[%s183 + $0xe18] sm:$0xff]
        %v675 = vld [vmem:[%s183 + $0xe20] sm:$0xff]
        %v676 = vld [vmem:[%s183 + $0xe28] sm:$0xff]
        %v677 = vld [vmem:[%s183 + $0xe30] sm:$0xff]
        %v678 = vld [vmem:[%s183 + $0xe38] sm:$0xff]
        %v679 = vld [vmem:[%s183 + $0xe40] sm:$0xff]
        %v680 = vld [vmem:[%s183 + $0xe48] sm:$0xff]
        %v681 = vld [vmem:[%s183 + $0xe50] sm:$0xff]
        %v682 = vld [vmem:[%s183 + $0xe58] sm:$0xff]
        %v683 = vld [vmem:[%s183 + $0xe60] sm:$0xff]
        %v684 = vld [vmem:[%s183 + $0xe68] sm:$0xff]
        %v685 = vld [vmem:[%s183 + $0xe70] sm:$0xff]
        %v686 = vld [vmem:[%s183 + $0xe78] sm:$0xff]
        %v687 = vld [vmem:[%s183 + $0xe80] sm:$0xff]
        %v688 = vld [vmem:[%s183 + $0xe88] sm:$0xff]
        %v689 = vld [vmem:[%s183 + $0xe90] sm:$0xff]
        %v690 = vld [vmem:[%s183 + $0xe98] sm:$0xff]
        %v691 = vld [vmem:[%s183 + $0xea0] sm:$0xff]
        %v692 = vld [vmem:[%s183 + $0xea8] sm:$0xff]
        %v693 = vld [vmem:[%s183 + $0xeb0] sm:$0xff]
        %v694 = vld [vmem:[%s183 + $0xeb8] sm:$0xff]
        %v695 = vld [vmem:[%s183 + $0xec0] sm:$0xff]
        %v696 = vld [vmem:[%s183 + $0xec8] sm:$0xff]
        %v697 = vld [vmem:[%s183 + $0xed0] sm:$0xff]
        %v698 = vld [vmem:[%s183 + $0xed8] sm:$0xff]
        %v699 = vld [vmem:[%s183 + $0xee0] sm:$0xff]
        %v700 = vld [vmem:[%s183 + $0xee8] sm:$0xff]
        %v701 = vld [vmem:[%s183 + $0xef0] sm:$0xff]
        %v702 = vld [vmem:[%s183 + $0xef8] sm:$0xff]
        %v703 = vld [vmem:[%s183 + $0xf00] sm:$0xff]
        %v704 = vld [vmem:[%s183 + $0xf08] sm:$0xff]
        %v705 = vld [vmem:[%s183 + $0xf10] sm:$0xff]
        %v706 = vld [vmem:[%s183 + $0xf18] sm:$0xff]
        %v707 = vld [vmem:[%s183 + $0xf20] sm:$0xff]
        %v708 = vld [vmem:[%s183 + $0xf28] sm:$0xff]
        %v709 = vld [vmem:[%s183 + $0xf30] sm:$0xff]
        %v710 = vld [vmem:[%s183 + $0xf38] sm:$0xff]
        %v711 = vld [vmem:[%s183 + $0xf40] sm:$0xff]
        %v712 = vld [vmem:[%s183 + $0xf48] sm:$0xff]
        %v713 = vld [vmem:[%s183 + $0xf50] sm:$0xff]
        %v714 = vld [vmem:[%s183 + $0xf58] sm:$0xff]
        %v715 = vld [vmem:[%s183 + $0xf60] sm:$0xff]
        %v716 = vld [vmem:[%s183 + $0xf68] sm:$0xff]
        %v717 = vld [vmem:[%s183 + $0xf70] sm:$0xff]
        %v718 = vld [vmem:[%s183 + $0xf78] sm:$0xff]
        %v719 = vld [vmem:[%s183 + $0xf80] sm:$0xff]
        %v720 = vld [vmem:[%s183 + $0xf88] sm:$0xff]
        %v721 = vld [vmem:[%s183 + $0xf90] sm:$0xff]
        %v722 = vld [vmem:[%s183 + $0xf98] sm:$0xff]
        %v723 = vld [vmem:[%s183 + $0xfa0] sm:$0xff]
        %v724 = vld [vmem:[%s183 + $0xfa8] sm:$0xff]
        %v725 = vld [vmem:[%s183 + $0xfb0] sm:$0xff]
        %v726 = vld [vmem:[%s183 + $0xfb8] sm:$0xff]
        %v727 = vld [vmem:[%s183 + $0xfc0] sm:$0xff]
        %v728 = vld [vmem:[%s183 + $0xfc8] sm:$0xff]
        %v729 = vld [vmem:[%s183 + $0xfd0] sm:$0xff]
        %v730 = vld [vmem:[%s183 + $0xfd8] sm:$0xff]
        %v731 = vld [vmem:[%s183 + $0xfe0] sm:$0xff]
        %v732 = vld [vmem:[%s183 + $0xfe8] sm:$0xff]
        %v733 = vld [vmem:[%s183 + $0xff0] sm:$0xff]
        %v734 = vld [vmem:[%s183 + $0xff8] sm:$0xff]
        %735 = vxpose.xlu0.b32.start [1/16] %v223, 128
        %736 = vxpose.xlu0.b32.cont [2/16] %v227, 128
        %737 = vxpose.xlu0.b32.cont [3/16] %v231, 128
        %738 = vxpose.xlu0.b32.cont [4/16] %v235, 128
        %739 = vxpose.xlu0.b32.cont [5/16] %v239, 128
        %740 = vxpose.xlu0.b32.cont [6/16] %v243, 128
        %741 = vxpose.xlu0.b32.cont [7/16] %v247, 128
        %742 = vxpose.xlu0.b32.cont [8/16] %v251, 128
        %743 = vxpose.xlu0.b32.cont [9/16] %v255, 128
        %744 = vxpose.xlu0.b32.cont [10/16] %v259, 128
        %745 = vxpose.xlu0.b32.cont [11/16] %v263, 128
        %746 = vxpose.xlu0.b32.cont [12/16] %v267, 128
        %747 = vxpose.xlu0.b32.cont [13/16] %v271, 128
        %748 = vxpose.xlu0.b32.cont [14/16] %v275, 128
        %749 = vxpose.xlu0.b32.cont [15/16] %v279, 128
        %750 = vxpose.xlu0.b32.end [16/16] %v283, 128
        %v751 = vpop.trf.xlu0
        %v752 = vpop.trf.xlu0
        %v753 = vpop.trf.xlu0
        %v754 = vpop.trf.xlu0
        %v755 = vpop.trf.xlu0
        %v756 = vpop.trf.xlu0
        %v757 = vpop.trf.xlu0
        %v758 = vpop.trf.xlu0
        %v759 = vpop.trf.xlu0
        %v760 = vpop.trf.xlu0
        %v761 = vpop.trf.xlu0
        %v762 = vpop.trf.xlu0
        %v763 = vpop.trf.xlu0
        %v764 = vpop.trf.xlu0
        %v765 = vpop.trf.xlu0
        %v766 = vpop.trf.xlu0
        %767 = vxpose.xlu0.b32.start [1/16] %v224, 128
        %768 = vxpose.xlu0.b32.cont [2/16] %v228, 128
        %769 = vxpose.xlu0.b32.cont [3/16] %v232, 128
        %770 = vxpose.xlu0.b32.cont [4/16] %v236, 128
        %771 = vxpose.xlu0.b32.cont [5/16] %v240, 128
        %772 = vxpose.xlu0.b32.cont [6/16] %v244, 128
        %773 = vxpose.xlu0.b32.cont [7/16] %v248, 128
        %774 = vxpose.xlu0.b32.cont [8/16] %v252, 128
        %775 = vxpose.xlu0.b32.cont [9/16] %v256, 128
        %776 = vxpose.xlu0.b32.cont [10/16] %v260, 128
        %777 = vxpose.xlu0.b32.cont [11/16] %v264, 128
        %778 = vxpose.xlu0.b32.cont [12/16] %v268, 128
        %779 = vxpose.xlu0.b32.cont [13/16] %v272, 128
        %780 = vxpose.xlu0.b32.cont [14/16] %v276, 128
        %781 = vxpose.xlu0.b32.cont [15/16] %v280, 128
        %782 = vxpose.xlu0.b32.end [16/16] %v284, 128
        %v783 = vpop.trf.xlu0
        %v784 = vpop.trf.xlu0
        %v785 = vpop.trf.xlu0
        %v786 = vpop.trf.xlu0
        %v787 = vpop.trf.xlu0
        %v788 = vpop.trf.xlu0
        %v789 = vpop.trf.xlu0
        %v790 = vpop.trf.xlu0
        %v791 = vpop.trf.xlu0
        %v792 = vpop.trf.xlu0
        %v793 = vpop.trf.xlu0
        %v794 = vpop.trf.xlu0
        %v795 = vpop.trf.xlu0
        %v796 = vpop.trf.xlu0
        %v797 = vpop.trf.xlu0
        %v798 = vpop.trf.xlu0
        %799 = vxpose.xlu0.b32.start [1/16] %v225, 128
        %800 = vxpose.xlu0.b32.cont [2/16] %v229, 128
        %801 = vxpose.xlu0.b32.cont [3/16] %v233, 128
        %802 = vxpose.xlu0.b32.cont [4/16] %v237, 128
        %803 = vxpose.xlu0.b32.cont [5/16] %v241, 128
        %804 = vxpose.xlu0.b32.cont [6/16] %v245, 128
        %805 = vxpose.xlu0.b32.cont [7/16] %v249, 128
        %806 = vxpose.xlu0.b32.cont [8/16] %v253, 128
        %807 = vxpose.xlu0.b32.cont [9/16] %v257, 128
        %808 = vxpose.xlu0.b32.cont [10/16] %v261, 128
        %809 = vxpose.xlu0.b32.cont [11/16] %v265, 128
        %810 = vxpose.xlu0.b32.cont [12/16] %v269, 128
        %811 = vxpose.xlu0.b32.cont [13/16] %v273, 128
        %812 = vxpose.xlu0.b32.cont [14/16] %v277, 128
        %813 = vxpose.xlu0.b32.cont [15/16] %v281, 128
        %814 = vxpose.xlu0.b32.end [16/16] %v285, 128
        %v815 = vpop.trf.xlu0
        %v816 = vpop.trf.xlu0
        %v817 = vpop.trf.xlu0
        %v818 = vpop.trf.xlu0
        %v819 = vpop.trf.xlu0
        %v820 = vpop.trf.xlu0
        %v821 = vpop.trf.xlu0
        %v822 = vpop.trf.xlu0
        %v823 = vpop.trf.xlu0
        %v824 = vpop.trf.xlu0
        %v825 = vpop.trf.xlu0
        %v826 = vpop.trf.xlu0
        %v827 = vpop.trf.xlu0
        %v828 = vpop.trf.xlu0
        %v829 = vpop.trf.xlu0
        %v830 = vpop.trf.xlu0
        %831 = vxpose.xlu0.b32.start [1/16] %v226, 128
        %832 = vxpose.xlu0.b32.cont [2/16] %v230, 128
        %833 = vxpose.xlu0.b32.cont [3/16] %v234, 128
        %834 = vxpose.xlu0.b32.cont [4/16] %v238, 128
        %835 = vxpose.xlu0.b32.cont [5/16] %v242, 128
        %836 = vxpose.xlu0.b32.cont [6/16] %v246, 128
        %837 = vxpose.xlu0.b32.cont [7/16] %v250, 128
        %838 = vxpose.xlu0.b32.cont [8/16] %v254, 128
        %839 = vxpose.xlu0.b32.cont [9/16] %v258, 128
        %840 = vxpose.xlu0.b32.cont [10/16] %v262, 128
        %841 = vxpose.xlu0.b32.cont [11/16] %v266, 128
        %842 = vxpose.xlu0.b32.cont [12/16] %v270, 128
        %843 = vxpose.xlu0.b32.cont [13/16] %v274, 128
        %844 = vxpose.xlu0.b32.cont [14/16] %v278, 128
        %845 = vxpose.xlu0.b32.cont [15/16] %v282, 128
        %846 = vxpose.xlu0.b32.end [16/16] %v286, 128
        %v847 = vpop.trf.xlu0
        %v848 = vpop.trf.xlu0
        %v849 = vpop.trf.xlu0
        %v850 = vpop.trf.xlu0
        %v851 = vpop.trf.xlu0
        %v852 = vpop.trf.xlu0
        %v853 = vpop.trf.xlu0
        %v854 = vpop.trf.xlu0
        %v855 = vpop.trf.xlu0
        %v856 = vpop.trf.xlu0
        %v857 = vpop.trf.xlu0
        %v858 = vpop.trf.xlu0
        %v859 = vpop.trf.xlu0
        %v860 = vpop.trf.xlu0
        %v861 = vpop.trf.xlu0
        %v862 = vpop.trf.xlu0
        %863 = vxpose.xlu0.b32.start [1/16] %v287, 128
        %864 = vxpose.xlu0.b32.cont [2/16] %v291, 128
        %865 = vxpose.xlu0.b32.cont [3/16] %v295, 128
        %866 = vxpose.xlu0.b32.cont [4/16] %v299, 128
        %867 = vxpose.xlu0.b32.cont [5/16] %v303, 128
        %868 = vxpose.xlu0.b32.cont [6/16] %v307, 128
        %869 = vxpose.xlu0.b32.cont [7/16] %v311, 128
        %870 = vxpose.xlu0.b32.cont [8/16] %v315, 128
        %871 = vxpose.xlu0.b32.cont [9/16] %v319, 128
        %872 = vxpose.xlu0.b32.cont [10/16] %v323, 128
        %873 = vxpose.xlu0.b32.cont [11/16] %v327, 128
        %874 = vxpose.xlu0.b32.cont [12/16] %v331, 128
        %875 = vxpose.xlu0.b32.cont [13/16] %v335, 128
        %876 = vxpose.xlu0.b32.cont [14/16] %v339, 128
        %877 = vxpose.xlu0.b32.cont [15/16] %v343, 128
        %878 = vxpose.xlu0.b32.end [16/16] %v347, 128
        %v879 = vpop.trf.xlu0
        %v880 = vpop.trf.xlu0
        %v881 = vpop.trf.xlu0
        %v882 = vpop.trf.xlu0
        %v883 = vpop.trf.xlu0
        %v884 = vpop.trf.xlu0
        %v885 = vpop.trf.xlu0
        %v886 = vpop.trf.xlu0
        %v887 = vpop.trf.xlu0
        %v888 = vpop.trf.xlu0
        %v889 = vpop.trf.xlu0
        %v890 = vpop.trf.xlu0
        %v891 = vpop.trf.xlu0
        %v892 = vpop.trf.xlu0
        %v893 = vpop.trf.xlu0
        %v894 = vpop.trf.xlu0
        %895 = vxpose.xlu0.b32.start [1/16] %v288, 128
        %896 = vxpose.xlu0.b32.cont [2/16] %v292, 128
        %897 = vxpose.xlu0.b32.cont [3/16] %v296, 128
        %898 = vxpose.xlu0.b32.cont [4/16] %v300, 128
        %899 = vxpose.xlu0.b32.cont [5/16] %v304, 128
        %900 = vxpose.xlu0.b32.cont [6/16] %v308, 128
        %901 = vxpose.xlu0.b32.cont [7/16] %v312, 128
        %902 = vxpose.xlu0.b32.cont [8/16] %v316, 128
        %903 = vxpose.xlu0.b32.cont [9/16] %v320, 128
        %904 = vxpose.xlu0.b32.cont [10/16] %v324, 128
        %905 = vxpose.xlu0.b32.cont [11/16] %v328, 128
        %906 = vxpose.xlu0.b32.cont [12/16] %v332, 128
        %907 = vxpose.xlu0.b32.cont [13/16] %v336, 128
        %908 = vxpose.xlu0.b32.cont [14/16] %v340, 128
        %909 = vxpose.xlu0.b32.cont [15/16] %v344, 128
        %910 = vxpose.xlu0.b32.end [16/16] %v348, 128
        %v911 = vpop.trf.xlu0
        %v912 = vpop.trf.xlu0
        %v913 = vpop.trf.xlu0
        %v914 = vpop.trf.xlu0
        %v915 = vpop.trf.xlu0
        %v916 = vpop.trf.xlu0
        %v917 = vpop.trf.xlu0
        %v918 = vpop.trf.xlu0
        %v919 = vpop.trf.xlu0
        %v920 = vpop.trf.xlu0
        %v921 = vpop.trf.xlu0
        %v922 = vpop.trf.xlu0
        %v923 = vpop.trf.xlu0
        %v924 = vpop.trf.xlu0
        %v925 = vpop.trf.xlu0
        %v926 = vpop.trf.xlu0
        %927 = vxpose.xlu0.b32.start [1/16] %v289, 128
        %928 = vxpose.xlu0.b32.cont [2/16] %v293, 128
        %929 = vxpose.xlu0.b32.cont [3/16] %v297, 128
        %930 = vxpose.xlu0.b32.cont [4/16] %v301, 128
        %931 = vxpose.xlu0.b32.cont [5/16] %v305, 128
        %932 = vxpose.xlu0.b32.cont [6/16] %v309, 128
        %933 = vxpose.xlu0.b32.cont [7/16] %v313, 128
        %934 = vxpose.xlu0.b32.cont [8/16] %v317, 128
        %935 = vxpose.xlu0.b32.cont [9/16] %v321, 128
        %936 = vxpose.xlu0.b32.cont [10/16] %v325, 128
        %937 = vxpose.xlu0.b32.cont [11/16] %v329, 128
        %938 = vxpose.xlu0.b32.cont [12/16] %v333, 128
        %939 = vxpose.xlu0.b32.cont [13/16] %v337, 128
        %940 = vxpose.xlu0.b32.cont [14/16] %v341, 128
        %941 = vxpose.xlu0.b32.cont [15/16] %v345, 128
        %942 = vxpose.xlu0.b32.end [16/16] %v349, 128
        %v943 = vpop.trf.xlu0
        %v944 = vpop.trf.xlu0
        %v945 = vpop.trf.xlu0
        %v946 = vpop.trf.xlu0
        %v947 = vpop.trf.xlu0
        %v948 = vpop.trf.xlu0
        %v949 = vpop.trf.xlu0
        %v950 = vpop.trf.xlu0
        %v951 = vpop.trf.xlu0
        %v952 = vpop.trf.xlu0
        %v953 = vpop.trf.xlu0
        %v954 = vpop.trf.xlu0
        %v955 = vpop.trf.xlu0
        %v956 = vpop.trf.xlu0
        %v957 = vpop.trf.xlu0
        %v958 = vpop.trf.xlu0
        %959 = vxpose.xlu0.b32.start [1/16] %v290, 128
        %960 = vxpose.xlu0.b32.cont [2/16] %v294, 128
        %961 = vxpose.xlu0.b32.cont [3/16] %v298, 128
        %962 = vxpose.xlu0.b32.cont [4/16] %v302, 128
        %963 = vxpose.xlu0.b32.cont [5/16] %v306, 128
        %964 = vxpose.xlu0.b32.cont [6/16] %v310, 128
        %965 = vxpose.xlu0.b32.cont [7/16] %v314, 128
        %966 = vxpose.xlu0.b32.cont [8/16] %v318, 128
        %967 = vxpose.xlu0.b32.cont [9/16] %v322, 128
        %968 = vxpose.xlu0.b32.cont [10/16] %v326, 128
        %969 = vxpose.xlu0.b32.cont [11/16] %v330, 128
        %970 = vxpose.xlu0.b32.cont [12/16] %v334, 128
        %971 = vxpose.xlu0.b32.cont [13/16] %v338, 128
        %972 = vxpose.xlu0.b32.cont [14/16] %v342, 128
        %973 = vxpose.xlu0.b32.cont [15/16] %v346, 128
        %974 = vxpose.xlu0.b32.end [16/16] %v350, 128
        %v975 = vpop.trf.xlu0
        %v976 = vpop.trf.xlu0
        %v977 = vpop.trf.xlu0
        %v978 = vpop.trf.xlu0
        %v979 = vpop.trf.xlu0
        %v980 = vpop.trf.xlu0
        %v981 = vpop.trf.xlu0
        %v982 = vpop.trf.xlu0
        %v983 = vpop.trf.xlu0
        %v984 = vpop.trf.xlu0
        %v985 = vpop.trf.xlu0
        %v986 = vpop.trf.xlu0
        %v987 = vpop.trf.xlu0
        %v988 = vpop.trf.xlu0
        %v989 = vpop.trf.xlu0
        %v990 = vpop.trf.xlu0
        %991 = vxpose.xlu0.b32.start [1/16] %v351, 128
        %992 = vxpose.xlu0.b32.cont [2/16] %v355, 128
        %993 = vxpose.xlu0.b32.cont [3/16] %v359, 128
        %994 = vxpose.xlu0.b32.cont [4/16] %v363, 128
        %995 = vxpose.xlu0.b32.cont [5/16] %v367, 128
        %996 = vxpose.xlu0.b32.cont [6/16] %v371, 128
        %997 = vxpose.xlu0.b32.cont [7/16] %v375, 128
        %998 = vxpose.xlu0.b32.cont [8/16] %v379, 128
        %999 = vxpose.xlu0.b32.cont [9/16] %v383, 128
        %1000 = vxpose.xlu0.b32.cont [10/16] %v387, 128
        %1001 = vxpose.xlu0.b32.cont [11/16] %v391, 128
        %1002 = vxpose.xlu0.b32.cont [12/16] %v395, 128
        %1003 = vxpose.xlu0.b32.cont [13/16] %v399, 128
        %1004 = vxpose.xlu0.b32.cont [14/16] %v403, 128
        %1005 = vxpose.xlu0.b32.cont [15/16] %v407, 128
        %1006 = vxpose.xlu0.b32.end [16/16] %v411, 128
        %v1007 = vpop.trf.xlu0
        %v1008 = vpop.trf.xlu0
        %v1009 = vpop.trf.xlu0
        %v1010 = vpop.trf.xlu0
        %v1011 = vpop.trf.xlu0
        %v1012 = vpop.trf.xlu0
        %v1013 = vpop.trf.xlu0
        %v1014 = vpop.trf.xlu0
        %v1015 = vpop.trf.xlu0
        %v1016 = vpop.trf.xlu0
        %v1017 = vpop.trf.xlu0
        %v1018 = vpop.trf.xlu0
        %v1019 = vpop.trf.xlu0
        %v1020 = vpop.trf.xlu0
        %v1021 = vpop.trf.xlu0
        %v1022 = vpop.trf.xlu0
        %1023 = vxpose.xlu0.b32.start [1/16] %v352, 128
        %1024 = vxpose.xlu0.b32.cont [2/16] %v356, 128
        %1025 = vxpose.xlu0.b32.cont [3/16] %v360, 128
        %1026 = vxpose.xlu0.b32.cont [4/16] %v364, 128
        %1027 = vxpose.xlu0.b32.cont [5/16] %v368, 128
        %1028 = vxpose.xlu0.b32.cont [6/16] %v372, 128
        %1029 = vxpose.xlu0.b32.cont [7/16] %v376, 128
        %1030 = vxpose.xlu0.b32.cont [8/16] %v380, 128
        %1031 = vxpose.xlu0.b32.cont [9/16] %v384, 128
        %1032 = vxpose.xlu0.b32.cont [10/16] %v388, 128
        %1033 = vxpose.xlu0.b32.cont [11/16] %v392, 128
        %1034 = vxpose.xlu0.b32.cont [12/16] %v396, 128
        %1035 = vxpose.xlu0.b32.cont [13/16] %v400, 128
        %1036 = vxpose.xlu0.b32.cont [14/16] %v404, 128
        %1037 = vxpose.xlu0.b32.cont [15/16] %v408, 128
        %1038 = vxpose.xlu0.b32.end [16/16] %v412, 128
        %v1039 = vpop.trf.xlu0
        %v1040 = vpop.trf.xlu0
        %v1041 = vpop.trf.xlu0
        %v1042 = vpop.trf.xlu0
        %v1043 = vpop.trf.xlu0
        %v1044 = vpop.trf.xlu0
        %v1045 = vpop.trf.xlu0
        %v1046 = vpop.trf.xlu0
        %v1047 = vpop.trf.xlu0
        %v1048 = vpop.trf.xlu0
        %v1049 = vpop.trf.xlu0
        %v1050 = vpop.trf.xlu0
        %v1051 = vpop.trf.xlu0
        %v1052 = vpop.trf.xlu0
        %v1053 = vpop.trf.xlu0
        %v1054 = vpop.trf.xlu0
        %1055 = vxpose.xlu0.b32.start [1/16] %v353, 128
        %1056 = vxpose.xlu0.b32.cont [2/16] %v357, 128
        %1057 = vxpose.xlu0.b32.cont [3/16] %v361, 128
        %1058 = vxpose.xlu0.b32.cont [4/16] %v365, 128
        %1059 = vxpose.xlu0.b32.cont [5/16] %v369, 128
        %1060 = vxpose.xlu0.b32.cont [6/16] %v373, 128
        %1061 = vxpose.xlu0.b32.cont [7/16] %v377, 128
        %1062 = vxpose.xlu0.b32.cont [8/16] %v381, 128
        %1063 = vxpose.xlu0.b32.cont [9/16] %v385, 128
        %1064 = vxpose.xlu0.b32.cont [10/16] %v389, 128
        %1065 = vxpose.xlu0.b32.cont [11/16] %v393, 128
        %1066 = vxpose.xlu0.b32.cont [12/16] %v397, 128
        %1067 = vxpose.xlu0.b32.cont [13/16] %v401, 128
        %1068 = vxpose.xlu0.b32.cont [14/16] %v405, 128
        %1069 = vxpose.xlu0.b32.cont [15/16] %v409, 128
        %1070 = vxpose.xlu0.b32.end [16/16] %v413, 128
        %v1071 = vpop.trf.xlu0
        %v1072 = vpop.trf.xlu0
        %v1073 = vpop.trf.xlu0
        %v1074 = vpop.trf.xlu0
        %v1075 = vpop.trf.xlu0
        %v1076 = vpop.trf.xlu0
        %v1077 = vpop.trf.xlu0
        %v1078 = vpop.trf.xlu0
        %v1079 = vpop.trf.xlu0
        %v1080 = vpop.trf.xlu0
        %v1081 = vpop.trf.xlu0
        %v1082 = vpop.trf.xlu0
        %v1083 = vpop.trf.xlu0
        %v1084 = vpop.trf.xlu0
        %v1085 = vpop.trf.xlu0
        %v1086 = vpop.trf.xlu0
        %1087 = vxpose.xlu0.b32.start [1/16] %v354, 128
        %1088 = vxpose.xlu0.b32.cont [2/16] %v358, 128
        %1089 = vxpose.xlu0.b32.cont [3/16] %v362, 128
        %1090 = vxpose.xlu0.b32.cont [4/16] %v366, 128
        %1091 = vxpose.xlu0.b32.cont [5/16] %v370, 128
        %1092 = vxpose.xlu0.b32.cont [6/16] %v374, 128
        %1093 = vxpose.xlu0.b32.cont [7/16] %v378, 128
        %1094 = vxpose.xlu0.b32.cont [8/16] %v382, 128
        %1095 = vxpose.xlu0.b32.cont [9/16] %v386, 128
        %1096 = vxpose.xlu0.b32.cont [10/16] %v390, 128
        %1097 = vxpose.xlu0.b32.cont [11/16] %v394, 128
        %1098 = vxpose.xlu0.b32.cont [12/16] %v398, 128
        %1099 = vxpose.xlu0.b32.cont [13/16] %v402, 128
        %1100 = vxpose.xlu0.b32.cont [14/16] %v406, 128
        %1101 = vxpose.xlu0.b32.cont [15/16] %v410, 128
        %1102 = vxpose.xlu0.b32.end [16/16] %v414, 128
        %v1103 = vpop.trf.xlu0
        %v1104 = vpop.trf.xlu0
        %v1105 = vpop.trf.xlu0
        %v1106 = vpop.trf.xlu0
        %v1107 = vpop.trf.xlu0
        %v1108 = vpop.trf.xlu0
        %v1109 = vpop.trf.xlu0
        %v1110 = vpop.trf.xlu0
        %v1111 = vpop.trf.xlu0
        %v1112 = vpop.trf.xlu0
        %v1113 = vpop.trf.xlu0
        %v1114 = vpop.trf.xlu0
        %v1115 = vpop.trf.xlu0
        %v1116 = vpop.trf.xlu0
        %v1117 = vpop.trf.xlu0
        %v1118 = vpop.trf.xlu0
        %1119 = vxpose.xlu0.b32.start [1/16] %v415, 128
        %1120 = vxpose.xlu0.b32.cont [2/16] %v419, 128
        %1121 = vxpose.xlu0.b32.cont [3/16] %v423, 128
        %1122 = vxpose.xlu0.b32.cont [4/16] %v427, 128
        %1123 = vxpose.xlu0.b32.cont [5/16] %v431, 128
        %1124 = vxpose.xlu0.b32.cont [6/16] %v435, 128
        %1125 = vxpose.xlu0.b32.cont [7/16] %v439, 128
        %1126 = vxpose.xlu0.b32.cont [8/16] %v443, 128
        %1127 = vxpose.xlu0.b32.cont [9/16] %v447, 128
        %1128 = vxpose.xlu0.b32.cont [10/16] %v451, 128
        %1129 = vxpose.xlu0.b32.cont [11/16] %v455, 128
        %1130 = vxpose.xlu0.b32.cont [12/16] %v459, 128
        %1131 = vxpose.xlu0.b32.cont [13/16] %v463, 128
        %1132 = vxpose.xlu0.b32.cont [14/16] %v467, 128
        %1133 = vxpose.xlu0.b32.cont [15/16] %v471, 128
        %1134 = vxpose.xlu0.b32.end [16/16] %v475, 128
        %v1135 = vpop.trf.xlu0
        %v1136 = vpop.trf.xlu0
        %v1137 = vpop.trf.xlu0
        %v1138 = vpop.trf.xlu0
        %v1139 = vpop.trf.xlu0
        %v1140 = vpop.trf.xlu0
        %v1141 = vpop.trf.xlu0
        %v1142 = vpop.trf.xlu0
        %v1143 = vpop.trf.xlu0
        %v1144 = vpop.trf.xlu0
        %v1145 = vpop.trf.xlu0
        %v1146 = vpop.trf.xlu0
        %v1147 = vpop.trf.xlu0
        %v1148 = vpop.trf.xlu0
        %v1149 = vpop.trf.xlu0
        %v1150 = vpop.trf.xlu0
        %1151 = vxpose.xlu0.b32.start [1/16] %v416, 128
        %1152 = vxpose.xlu0.b32.cont [2/16] %v420, 128
        %1153 = vxpose.xlu0.b32.cont [3/16] %v424, 128
        %1154 = vxpose.xlu0.b32.cont [4/16] %v428, 128
        %1155 = vxpose.xlu0.b32.cont [5/16] %v432, 128
        %1156 = vxpose.xlu0.b32.cont [6/16] %v436, 128
        %1157 = vxpose.xlu0.b32.cont [7/16] %v440, 128
        %1158 = vxpose.xlu0.b32.cont [8/16] %v444, 128
        %1159 = vxpose.xlu0.b32.cont [9/16] %v448, 128
        %1160 = vxpose.xlu0.b32.cont [10/16] %v452, 128
        %1161 = vxpose.xlu0.b32.cont [11/16] %v456, 128
        %1162 = vxpose.xlu0.b32.cont [12/16] %v460, 128
        %1163 = vxpose.xlu0.b32.cont [13/16] %v464, 128
        %1164 = vxpose.xlu0.b32.cont [14/16] %v468, 128
        %1165 = vxpose.xlu0.b32.cont [15/16] %v472, 128
        %1166 = vxpose.xlu0.b32.end [16/16] %v476, 128
        %v1167 = vpop.trf.xlu0
        %v1168 = vpop.trf.xlu0
        %v1169 = vpop.trf.xlu0
        %v1170 = vpop.trf.xlu0
        %v1171 = vpop.trf.xlu0
        %v1172 = vpop.trf.xlu0
        %v1173 = vpop.trf.xlu0
        %v1174 = vpop.trf.xlu0
        %v1175 = vpop.trf.xlu0
        %v1176 = vpop.trf.xlu0
        %v1177 = vpop.trf.xlu0
        %v1178 = vpop.trf.xlu0
        %v1179 = vpop.trf.xlu0
        %v1180 = vpop.trf.xlu0
        %v1181 = vpop.trf.xlu0
        %v1182 = vpop.trf.xlu0
        %1183 = vxpose.xlu0.b32.start [1/16] %v417, 128
        %1184 = vxpose.xlu0.b32.cont [2/16] %v421, 128
        %1185 = vxpose.xlu0.b32.cont [3/16] %v425, 128
        %1186 = vxpose.xlu0.b32.cont [4/16] %v429, 128
        %1187 = vxpose.xlu0.b32.cont [5/16] %v433, 128
        %1188 = vxpose.xlu0.b32.cont [6/16] %v437, 128
        %1189 = vxpose.xlu0.b32.cont [7/16] %v441, 128
        %1190 = vxpose.xlu0.b32.cont [8/16] %v445, 128
        %1191 = vxpose.xlu0.b32.cont [9/16] %v449, 128
        %1192 = vxpose.xlu0.b32.cont [10/16] %v453, 128
        %1193 = vxpose.xlu0.b32.cont [11/16] %v457, 128
        %1194 = vxpose.xlu0.b32.cont [12/16] %v461, 128
        %1195 = vxpose.xlu0.b32.cont [13/16] %v465, 128
        %1196 = vxpose.xlu0.b32.cont [14/16] %v469, 128
        %1197 = vxpose.xlu0.b32.cont [15/16] %v473, 128
        %1198 = vxpose.xlu0.b32.end [16/16] %v477, 128
        %v1199 = vpop.trf.xlu0
        %v1200 = vpop.trf.xlu0
        %v1201 = vpop.trf.xlu0
        %v1202 = vpop.trf.xlu0
        %v1203 = vpop.trf.xlu0
        %v1204 = vpop.trf.xlu0
        %v1205 = vpop.trf.xlu0
        %v1206 = vpop.trf.xlu0
        %v1207 = vpop.trf.xlu0
        %v1208 = vpop.trf.xlu0
        %v1209 = vpop.trf.xlu0
        %v1210 = vpop.trf.xlu0
        %v1211 = vpop.trf.xlu0
        %v1212 = vpop.trf.xlu0
        %v1213 = vpop.trf.xlu0
        %v1214 = vpop.trf.xlu0
        %1215 = vxpose.xlu0.b32.start [1/16] %v418, 128
        %1216 = vxpose.xlu0.b32.cont [2/16] %v422, 128
        %1217 = vxpose.xlu0.b32.cont [3/16] %v426, 128
        %1218 = vxpose.xlu0.b32.cont [4/16] %v430, 128
        %1219 = vxpose.xlu0.b32.cont [5/16] %v434, 128
        %1220 = vxpose.xlu0.b32.cont [6/16] %v438, 128
        %1221 = vxpose.xlu0.b32.cont [7/16] %v442, 128
        %1222 = vxpose.xlu0.b32.cont [8/16] %v446, 128
        %1223 = vxpose.xlu0.b32.cont [9/16] %v450, 128
        %1224 = vxpose.xlu0.b32.cont [10/16] %v454, 128
        %1225 = vxpose.xlu0.b32.cont [11/16] %v458, 128
        %1226 = vxpose.xlu0.b32.cont [12/16] %v462, 128
        %1227 = vxpose.xlu0.b32.cont [13/16] %v466, 128
        %1228 = vxpose.xlu0.b32.cont [14/16] %v470, 128
        %1229 = vxpose.xlu0.b32.cont [15/16] %v474, 128
        %1230 = vxpose.xlu0.b32.end [16/16] %v478, 128
        %v1231 = vpop.trf.xlu0
        %v1232 = vpop.trf.xlu0
        %v1233 = vpop.trf.xlu0
        %v1234 = vpop.trf.xlu0
        %v1235 = vpop.trf.xlu0
        %v1236 = vpop.trf.xlu0
        %v1237 = vpop.trf.xlu0
        %v1238 = vpop.trf.xlu0
        %v1239 = vpop.trf.xlu0
        %v1240 = vpop.trf.xlu0
        %v1241 = vpop.trf.xlu0
        %v1242 = vpop.trf.xlu0
        %v1243 = vpop.trf.xlu0
        %v1244 = vpop.trf.xlu0
        %v1245 = vpop.trf.xlu0
        %v1246 = vpop.trf.xlu0
        %1247 = vxpose.xlu0.b32.start [1/16] %v479, 128
        %1248 = vxpose.xlu0.b32.cont [2/16] %v483, 128
        %1249 = vxpose.xlu0.b32.cont [3/16] %v487, 128
        %1250 = vxpose.xlu0.b32.cont [4/16] %v491, 128
        %1251 = vxpose.xlu0.b32.cont [5/16] %v495, 128
        %1252 = vxpose.xlu0.b32.cont [6/16] %v499, 128
        %1253 = vxpose.xlu0.b32.cont [7/16] %v503, 128
        %1254 = vxpose.xlu0.b32.cont [8/16] %v507, 128
        %1255 = vxpose.xlu0.b32.cont [9/16] %v511, 128
        %1256 = vxpose.xlu0.b32.cont [10/16] %v515, 128
        %1257 = vxpose.xlu0.b32.cont [11/16] %v519, 128
        %1258 = vxpose.xlu0.b32.cont [12/16] %v523, 128
        %1259 = vxpose.xlu0.b32.cont [13/16] %v527, 128
        %1260 = vxpose.xlu0.b32.cont [14/16] %v531, 128
        %1261 = vxpose.xlu0.b32.cont [15/16] %v535, 128
        %1262 = vxpose.xlu0.b32.end [16/16] %v539, 128
        %v1263 = vpop.trf.xlu0
        %v1264 = vpop.trf.xlu0
        %v1265 = vpop.trf.xlu0
        %v1266 = vpop.trf.xlu0
        %v1267 = vpop.trf.xlu0
        %v1268 = vpop.trf.xlu0
        %v1269 = vpop.trf.xlu0
        %v1270 = vpop.trf.xlu0
        %v1271 = vpop.trf.xlu0
        %v1272 = vpop.trf.xlu0
        %v1273 = vpop.trf.xlu0
        %v1274 = vpop.trf.xlu0
        %v1275 = vpop.trf.xlu0
        %v1276 = vpop.trf.xlu0
        %v1277 = vpop.trf.xlu0
        %v1278 = vpop.trf.xlu0
        %1279 = vxpose.xlu0.b32.start [1/16] %v480, 128
        %1280 = vxpose.xlu0.b32.cont [2/16] %v484, 128
        %1281 = vxpose.xlu0.b32.cont [3/16] %v488, 128
        %1282 = vxpose.xlu0.b32.cont [4/16] %v492, 128
        %1283 = vxpose.xlu0.b32.cont [5/16] %v496, 128
        %1284 = vxpose.xlu0.b32.cont [6/16] %v500, 128
        %1285 = vxpose.xlu0.b32.cont [7/16] %v504, 128
        %1286 = vxpose.xlu0.b32.cont [8/16] %v508, 128
        %1287 = vxpose.xlu0.b32.cont [9/16] %v512, 128
        %1288 = vxpose.xlu0.b32.cont [10/16] %v516, 128
        %1289 = vxpose.xlu0.b32.cont [11/16] %v520, 128
        %1290 = vxpose.xlu0.b32.cont [12/16] %v524, 128
        %1291 = vxpose.xlu0.b32.cont [13/16] %v528, 128
        %1292 = vxpose.xlu0.b32.cont [14/16] %v532, 128
        %1293 = vxpose.xlu0.b32.cont [15/16] %v536, 128
        %1294 = vxpose.xlu0.b32.end [16/16] %v540, 128
        %v1295 = vpop.trf.xlu0
        %v1296 = vpop.trf.xlu0
        %v1297 = vpop.trf.xlu0
        %v1298 = vpop.trf.xlu0
        %v1299 = vpop.trf.xlu0
        %v1300 = vpop.trf.xlu0
        %v1301 = vpop.trf.xlu0
        %v1302 = vpop.trf.xlu0
        %v1303 = vpop.trf.xlu0
        %v1304 = vpop.trf.xlu0
        %v1305 = vpop.trf.xlu0
        %v1306 = vpop.trf.xlu0
        %v1307 = vpop.trf.xlu0
        %v1308 = vpop.trf.xlu0
        %v1309 = vpop.trf.xlu0
        %v1310 = vpop.trf.xlu0
        %1311 = vxpose.xlu0.b32.start [1/16] %v481, 128
        %1312 = vxpose.xlu0.b32.cont [2/16] %v485, 128
        %1313 = vxpose.xlu0.b32.cont [3/16] %v489, 128
        %1314 = vxpose.xlu0.b32.cont [4/16] %v493, 128
        %1315 = vxpose.xlu0.b32.cont [5/16] %v497, 128
        %1316 = vxpose.xlu0.b32.cont [6/16] %v501, 128
        %1317 = vxpose.xlu0.b32.cont [7/16] %v505, 128
        %1318 = vxpose.xlu0.b32.cont [8/16] %v509, 128
        %1319 = vxpose.xlu0.b32.cont [9/16] %v513, 128
        %1320 = vxpose.xlu0.b32.cont [10/16] %v517, 128
        %1321 = vxpose.xlu0.b32.cont [11/16] %v521, 128
        %1322 = vxpose.xlu0.b32.cont [12/16] %v525, 128
        %1323 = vxpose.xlu0.b32.cont [13/16] %v529, 128
        %1324 = vxpose.xlu0.b32.cont [14/16] %v533, 128
        %1325 = vxpose.xlu0.b32.cont [15/16] %v537, 128
        %1326 = vxpose.xlu0.b32.end [16/16] %v541, 128
        %v1327 = vpop.trf.xlu0
        %v1328 = vpop.trf.xlu0
        %v1329 = vpop.trf.xlu0
        %v1330 = vpop.trf.xlu0
        %v1331 = vpop.trf.xlu0
        %v1332 = vpop.trf.xlu0
        %v1333 = vpop.trf.xlu0
        %v1334 = vpop.trf.xlu0
        %v1335 = vpop.trf.xlu0
        %v1336 = vpop.trf.xlu0
        %v1337 = vpop.trf.xlu0
        %v1338 = vpop.trf.xlu0
        %v1339 = vpop.trf.xlu0
        %v1340 = vpop.trf.xlu0
        %v1341 = vpop.trf.xlu0
        %v1342 = vpop.trf.xlu0
        %1343 = vxpose.xlu0.b32.start [1/16] %v482, 128
        %1344 = vxpose.xlu0.b32.cont [2/16] %v486, 128
        %1345 = vxpose.xlu0.b32.cont [3/16] %v490, 128
        %1346 = vxpose.xlu0.b32.cont [4/16] %v494, 128
        %1347 = vxpose.xlu0.b32.cont [5/16] %v498, 128
        %1348 = vxpose.xlu0.b32.cont [6/16] %v502, 128
        %1349 = vxpose.xlu0.b32.cont [7/16] %v506, 128
        %1350 = vxpose.xlu0.b32.cont [8/16] %v510, 128
        %1351 = vxpose.xlu0.b32.cont [9/16] %v514, 128
        %1352 = vxpose.xlu0.b32.cont [10/16] %v518, 128
        %1353 = vxpose.xlu0.b32.cont [11/16] %v522, 128
        %1354 = vxpose.xlu0.b32.cont [12/16] %v526, 128
        %1355 = vxpose.xlu0.b32.cont [13/16] %v530, 128
        %1356 = vxpose.xlu0.b32.cont [14/16] %v534, 128
        %1357 = vxpose.xlu0.b32.cont [15/16] %v538, 128
        %1358 = vxpose.xlu0.b32.end [16/16] %v542, 128
        %v1359 = vpop.trf.xlu0
        %v1360 = vpop.trf.xlu0
        %v1361 = vpop.trf.xlu0
        %v1362 = vpop.trf.xlu0
        %v1363 = vpop.trf.xlu0
        %v1364 = vpop.trf.xlu0
        %v1365 = vpop.trf.xlu0
        %v1366 = vpop.trf.xlu0
        %v1367 = vpop.trf.xlu0
        %v1368 = vpop.trf.xlu0
        %v1369 = vpop.trf.xlu0
        %v1370 = vpop.trf.xlu0
        %v1371 = vpop.trf.xlu0
        %v1372 = vpop.trf.xlu0
        %v1373 = vpop.trf.xlu0
        %v1374 = vpop.trf.xlu0
        %1375 = vxpose.xlu0.b32.start [1/16] %v543, 128
        %1376 = vxpose.xlu0.b32.cont [2/16] %v547, 128
        %1377 = vxpose.xlu0.b32.cont [3/16] %v551, 128
        %1378 = vxpose.xlu0.b32.cont [4/16] %v555, 128
        %1379 = vxpose.xlu0.b32.cont [5/16] %v559, 128
        %1380 = vxpose.xlu0.b32.cont [6/16] %v563, 128
        %1381 = vxpose.xlu0.b32.cont [7/16] %v567, 128
        %1382 = vxpose.xlu0.b32.cont [8/16] %v571, 128
        %1383 = vxpose.xlu0.b32.cont [9/16] %v575, 128
        %1384 = vxpose.xlu0.b32.cont [10/16] %v579, 128
        %1385 = vxpose.xlu0.b32.cont [11/16] %v583, 128
        %1386 = vxpose.xlu0.b32.cont [12/16] %v587, 128
        %1387 = vxpose.xlu0.b32.cont [13/16] %v591, 128
        %1388 = vxpose.xlu0.b32.cont [14/16] %v595, 128
        %1389 = vxpose.xlu0.b32.cont [15/16] %v599, 128
        %1390 = vxpose.xlu0.b32.end [16/16] %v603, 128
        %v1391 = vpop.trf.xlu0
        %v1392 = vpop.trf.xlu0
        %v1393 = vpop.trf.xlu0
        %v1394 = vpop.trf.xlu0
        %v1395 = vpop.trf.xlu0
        %v1396 = vpop.trf.xlu0
        %v1397 = vpop.trf.xlu0
        %v1398 = vpop.trf.xlu0
        %v1399 = vpop.trf.xlu0
        %v1400 = vpop.trf.xlu0
        %v1401 = vpop.trf.xlu0
        %v1402 = vpop.trf.xlu0
        %v1403 = vpop.trf.xlu0
        %v1404 = vpop.trf.xlu0
        %v1405 = vpop.trf.xlu0
        %v1406 = vpop.trf.xlu0
        %1407 = vxpose.xlu0.b32.start [1/16] %v544, 128
        %1408 = vxpose.xlu0.b32.cont [2/16] %v548, 128
        %1409 = vxpose.xlu0.b32.cont [3/16] %v552, 128
        %1410 = vxpose.xlu0.b32.cont [4/16] %v556, 128
        %1411 = vxpose.xlu0.b32.cont [5/16] %v560, 128
        %1412 = vxpose.xlu0.b32.cont [6/16] %v564, 128
        %1413 = vxpose.xlu0.b32.cont [7/16] %v568, 128
        %1414 = vxpose.xlu0.b32.cont [8/16] %v572, 128
        %1415 = vxpose.xlu0.b32.cont [9/16] %v576, 128
        %1416 = vxpose.xlu0.b32.cont [10/16] %v580, 128
        %1417 = vxpose.xlu0.b32.cont [11/16] %v584, 128
        %1418 = vxpose.xlu0.b32.cont [12/16] %v588, 128
        %1419 = vxpose.xlu0.b32.cont [13/16] %v592, 128
        %1420 = vxpose.xlu0.b32.cont [14/16] %v596, 128
        %1421 = vxpose.xlu0.b32.cont [15/16] %v600, 128
        %1422 = vxpose.xlu0.b32.end [16/16] %v604, 128
        %v1423 = vpop.trf.xlu0
        %v1424 = vpop.trf.xlu0
        %v1425 = vpop.trf.xlu0
        %v1426 = vpop.trf.xlu0
        %v1427 = vpop.trf.xlu0
        %v1428 = vpop.trf.xlu0
        %v1429 = vpop.trf.xlu0
        %v1430 = vpop.trf.xlu0
        %v1431 = vpop.trf.xlu0
        %v1432 = vpop.trf.xlu0
        %v1433 = vpop.trf.xlu0
        %v1434 = vpop.trf.xlu0
        %v1435 = vpop.trf.xlu0
        %v1436 = vpop.trf.xlu0
        %v1437 = vpop.trf.xlu0
        %v1438 = vpop.trf.xlu0
        %1439 = vxpose.xlu0.b32.start [1/16] %v545, 128
        %1440 = vxpose.xlu0.b32.cont [2/16] %v549, 128
        %1441 = vxpose.xlu0.b32.cont [3/16] %v553, 128
        %1442 = vxpose.xlu0.b32.cont [4/16] %v557, 128
        %1443 = vxpose.xlu0.b32.cont [5/16] %v561, 128
        %1444 = vxpose.xlu0.b32.cont [6/16] %v565, 128
        %1445 = vxpose.xlu0.b32.cont [7/16] %v569, 128
        %1446 = vxpose.xlu0.b32.cont [8/16] %v573, 128
        %1447 = vxpose.xlu0.b32.cont [9/16] %v577, 128
        %1448 = vxpose.xlu0.b32.cont [10/16] %v581, 128
        %1449 = vxpose.xlu0.b32.cont [11/16] %v585, 128
        %1450 = vxpose.xlu0.b32.cont [12/16] %v589, 128
        %1451 = vxpose.xlu0.b32.cont [13/16] %v593, 128
        %1452 = vxpose.xlu0.b32.cont [14/16] %v597, 128
        %1453 = vxpose.xlu0.b32.cont [15/16] %v601, 128
        %1454 = vxpose.xlu0.b32.end [16/16] %v605, 128
        %v1455 = vpop.trf.xlu0
        %v1456 = vpop.trf.xlu0
        %v1457 = vpop.trf.xlu0
        %v1458 = vpop.trf.xlu0
        %v1459 = vpop.trf.xlu0
        %v1460 = vpop.trf.xlu0
        %v1461 = vpop.trf.xlu0
        %v1462 = vpop.trf.xlu0
        %v1463 = vpop.trf.xlu0
        %v1464 = vpop.trf.xlu0
        %v1465 = vpop.trf.xlu0
        %v1466 = vpop.trf.xlu0
        %v1467 = vpop.trf.xlu0
        %v1468 = vpop.trf.xlu0
        %v1469 = vpop.trf.xlu0
        %v1470 = vpop.trf.xlu0
        %1471 = vxpose.xlu0.b32.start [1/16] %v546, 128
        %1472 = vxpose.xlu0.b32.cont [2/16] %v550, 128
        %1473 = vxpose.xlu0.b32.cont [3/16] %v554, 128
        %1474 = vxpose.xlu0.b32.cont [4/16] %v558, 128
        %1475 = vxpose.xlu0.b32.cont [5/16] %v562, 128
        %1476 = vxpose.xlu0.b32.cont [6/16] %v566, 128
        %1477 = vxpose.xlu0.b32.cont [7/16] %v570, 128
        %1478 = vxpose.xlu0.b32.cont [8/16] %v574, 128
        %1479 = vxpose.xlu0.b32.cont [9/16] %v578, 128
        %1480 = vxpose.xlu0.b32.cont [10/16] %v582, 128
        %1481 = vxpose.xlu0.b32.cont [11/16] %v586, 128
        %1482 = vxpose.xlu0.b32.cont [12/16] %v590, 128
        %1483 = vxpose.xlu0.b32.cont [13/16] %v594, 128
        %1484 = vxpose.xlu0.b32.cont [14/16] %v598, 128
        %1485 = vxpose.xlu0.b32.cont [15/16] %v602, 128
        %1486 = vxpose.xlu0.b32.end [16/16] %v606, 128
        %v1487 = vpop.trf.xlu0
        %v1488 = vpop.trf.xlu0
        %v1489 = vpop.trf.xlu0
        %v1490 = vpop.trf.xlu0
        %v1491 = vpop.trf.xlu0
        %v1492 = vpop.trf.xlu0
        %v1493 = vpop.trf.xlu0
        %v1494 = vpop.trf.xlu0
        %v1495 = vpop.trf.xlu0
        %v1496 = vpop.trf.xlu0
        %v1497 = vpop.trf.xlu0
        %v1498 = vpop.trf.xlu0
        %v1499 = vpop.trf.xlu0
        %v1500 = vpop.trf.xlu0
        %v1501 = vpop.trf.xlu0
        %v1502 = vpop.trf.xlu0
        %1503 = vxpose.xlu0.b32.start [1/16] %v607, 128
        %1504 = vxpose.xlu0.b32.cont [2/16] %v611, 128
        %1505 = vxpose.xlu0.b32.cont [3/16] %v615, 128
        %1506 = vxpose.xlu0.b32.cont [4/16] %v619, 128
        %1507 = vxpose.xlu0.b32.cont [5/16] %v623, 128
        %1508 = vxpose.xlu0.b32.cont [6/16] %v627, 128
        %1509 = vxpose.xlu0.b32.cont [7/16] %v631, 128
        %1510 = vxpose.xlu0.b32.cont [8/16] %v635, 128
        %1511 = vxpose.xlu0.b32.cont [9/16] %v639, 128
        %1512 = vxpose.xlu0.b32.cont [10/16] %v643, 128
        %1513 = vxpose.xlu0.b32.cont [11/16] %v647, 128
        %1514 = vxpose.xlu0.b32.cont [12/16] %v651, 128
        %1515 = vxpose.xlu0.b32.cont [13/16] %v655, 128
        %1516 = vxpose.xlu0.b32.cont [14/16] %v659, 128
        %1517 = vxpose.xlu0.b32.cont [15/16] %v663, 128
        %1518 = vxpose.xlu0.b32.end [16/16] %v667, 128
        %v1519 = vpop.trf.xlu0
        %v1520 = vpop.trf.xlu0
        %v1521 = vpop.trf.xlu0
        %v1522 = vpop.trf.xlu0
        %v1523 = vpop.trf.xlu0
        %v1524 = vpop.trf.xlu0
        %v1525 = vpop.trf.xlu0
        %v1526 = vpop.trf.xlu0
        %v1527 = vpop.trf.xlu0
        %v1528 = vpop.trf.xlu0
        %v1529 = vpop.trf.xlu0
        %v1530 = vpop.trf.xlu0
        %v1531 = vpop.trf.xlu0
        %v1532 = vpop.trf.xlu0
        %v1533 = vpop.trf.xlu0
        %v1534 = vpop.trf.xlu0
        %1535 = vxpose.xlu0.b32.start [1/16] %v608, 128
        %1536 = vxpose.xlu0.b32.cont [2/16] %v612, 128
        %1537 = vxpose.xlu0.b32.cont [3/16] %v616, 128
        %1538 = vxpose.xlu0.b32.cont [4/16] %v620, 128
        %1539 = vxpose.xlu0.b32.cont [5/16] %v624, 128
        %1540 = vxpose.xlu0.b32.cont [6/16] %v628, 128
        %1541 = vxpose.xlu0.b32.cont [7/16] %v632, 128
        %1542 = vxpose.xlu0.b32.cont [8/16] %v636, 128
        %1543 = vxpose.xlu0.b32.cont [9/16] %v640, 128
        %1544 = vxpose.xlu0.b32.cont [10/16] %v644, 128
        %1545 = vxpose.xlu0.b32.cont [11/16] %v648, 128
        %1546 = vxpose.xlu0.b32.cont [12/16] %v652, 128
        %1547 = vxpose.xlu0.b32.cont [13/16] %v656, 128
        %1548 = vxpose.xlu0.b32.cont [14/16] %v660, 128
        %1549 = vxpose.xlu0.b32.cont [15/16] %v664, 128
        %1550 = vxpose.xlu0.b32.end [16/16] %v668, 128
        %v1551 = vpop.trf.xlu0
        %v1552 = vpop.trf.xlu0
        %v1553 = vpop.trf.xlu0
        %v1554 = vpop.trf.xlu0
        %v1555 = vpop.trf.xlu0
        %v1556 = vpop.trf.xlu0
        %v1557 = vpop.trf.xlu0
        %v1558 = vpop.trf.xlu0
        %v1559 = vpop.trf.xlu0
        %v1560 = vpop.trf.xlu0
        %v1561 = vpop.trf.xlu0
        %v1562 = vpop.trf.xlu0
        %v1563 = vpop.trf.xlu0
        %v1564 = vpop.trf.xlu0
        %v1565 = vpop.trf.xlu0
        %v1566 = vpop.trf.xlu0
        %1567 = vxpose.xlu0.b32.start [1/16] %v609, 128
        %1568 = vxpose.xlu0.b32.cont [2/16] %v613, 128
        %1569 = vxpose.xlu0.b32.cont [3/16] %v617, 128
        %1570 = vxpose.xlu0.b32.cont [4/16] %v621, 128
        %1571 = vxpose.xlu0.b32.cont [5/16] %v625, 128
        %1572 = vxpose.xlu0.b32.cont [6/16] %v629, 128
        %1573 = vxpose.xlu0.b32.cont [7/16] %v633, 128
        %1574 = vxpose.xlu0.b32.cont [8/16] %v637, 128
        %1575 = vxpose.xlu0.b32.cont [9/16] %v641, 128
        %1576 = vxpose.xlu0.b32.cont [10/16] %v645, 128
        %1577 = vxpose.xlu0.b32.cont [11/16] %v649, 128
        %1578 = vxpose.xlu0.b32.cont [12/16] %v653, 128
        %1579 = vxpose.xlu0.b32.cont [13/16] %v657, 128
        %1580 = vxpose.xlu0.b32.cont [14/16] %v661, 128
        %1581 = vxpose.xlu0.b32.cont [15/16] %v665, 128
        %1582 = vxpose.xlu0.b32.end [16/16] %v669, 128
        %v1583 = vpop.trf.xlu0
        %v1584 = vpop.trf.xlu0
        %v1585 = vpop.trf.xlu0
        %v1586 = vpop.trf.xlu0
        %v1587 = vpop.trf.xlu0
        %v1588 = vpop.trf.xlu0
        %v1589 = vpop.trf.xlu0
        %v1590 = vpop.trf.xlu0
        %v1591 = vpop.trf.xlu0
        %v1592 = vpop.trf.xlu0
        %v1593 = vpop.trf.xlu0
        %v1594 = vpop.trf.xlu0
        %v1595 = vpop.trf.xlu0
        %v1596 = vpop.trf.xlu0
        %v1597 = vpop.trf.xlu0
        %v1598 = vpop.trf.xlu0
        %1599 = vxpose.xlu0.b32.start [1/16] %v610, 128
        %1600 = vxpose.xlu0.b32.cont [2/16] %v614, 128
        %1601 = vxpose.xlu0.b32.cont [3/16] %v618, 128
        %1602 = vxpose.xlu0.b32.cont [4/16] %v622, 128
        %1603 = vxpose.xlu0.b32.cont [5/16] %v626, 128
        %1604 = vxpose.xlu0.b32.cont [6/16] %v630, 128
        %1605 = vxpose.xlu0.b32.cont [7/16] %v634, 128
        %1606 = vxpose.xlu0.b32.cont [8/16] %v638, 128
        %1607 = vxpose.xlu0.b32.cont [9/16] %v642, 128
        %1608 = vxpose.xlu0.b32.cont [10/16] %v646, 128
        %1609 = vxpose.xlu0.b32.cont [11/16] %v650, 128
        %1610 = vxpose.xlu0.b32.cont [12/16] %v654, 128
        %1611 = vxpose.xlu0.b32.cont [13/16] %v658, 128
        %1612 = vxpose.xlu0.b32.cont [14/16] %v662, 128
        %1613 = vxpose.xlu0.b32.cont [15/16] %v666, 128
        %1614 = vxpose.xlu0.b32.end [16/16] %v670, 128
        %v1615 = vpop.trf.xlu0
        %v1616 = vpop.trf.xlu0
        %v1617 = vpop.trf.xlu0
        %v1618 = vpop.trf.xlu0
        %v1619 = vpop.trf.xlu0
        %v1620 = vpop.trf.xlu0
        %v1621 = vpop.trf.xlu0
        %v1622 = vpop.trf.xlu0
        %v1623 = vpop.trf.xlu0
        %v1624 = vpop.trf.xlu0
        %v1625 = vpop.trf.xlu0
        %v1626 = vpop.trf.xlu0
        %v1627 = vpop.trf.xlu0
        %v1628 = vpop.trf.xlu0
        %v1629 = vpop.trf.xlu0
        %v1630 = vpop.trf.xlu0
        %1631 = vxpose.xlu0.b32.start [1/16] %v671, 128
        %1632 = vxpose.xlu0.b32.cont [2/16] %v675, 128
        %1633 = vxpose.xlu0.b32.cont [3/16] %v679, 128
        %1634 = vxpose.xlu0.b32.cont [4/16] %v683, 128
        %1635 = vxpose.xlu0.b32.cont [5/16] %v687, 128
        %1636 = vxpose.xlu0.b32.cont [6/16] %v691, 128
        %1637 = vxpose.xlu0.b32.cont [7/16] %v695, 128
        %1638 = vxpose.xlu0.b32.cont [8/16] %v699, 128
        %1639 = vxpose.xlu0.b32.cont [9/16] %v703, 128
        %1640 = vxpose.xlu0.b32.cont [10/16] %v707, 128
        %1641 = vxpose.xlu0.b32.cont [11/16] %v711, 128
        %1642 = vxpose.xlu0.b32.cont [12/16] %v715, 128
        %1643 = vxpose.xlu0.b32.cont [13/16] %v719, 128
        %1644 = vxpose.xlu0.b32.cont [14/16] %v723, 128
        %1645 = vxpose.xlu0.b32.cont [15/16] %v727, 128
        %1646 = vxpose.xlu0.b32.end [16/16] %v731, 128
        %v1647 = vpop.trf.xlu0
        %v1648 = vpop.trf.xlu0
        %v1649 = vpop.trf.xlu0
        %v1650 = vpop.trf.xlu0
        %v1651 = vpop.trf.xlu0
        %v1652 = vpop.trf.xlu0
        %v1653 = vpop.trf.xlu0
        %v1654 = vpop.trf.xlu0
        %v1655 = vpop.trf.xlu0
        %v1656 = vpop.trf.xlu0
        %v1657 = vpop.trf.xlu0
        %v1658 = vpop.trf.xlu0
        %v1659 = vpop.trf.xlu0
        %v1660 = vpop.trf.xlu0
        %v1661 = vpop.trf.xlu0
        %v1662 = vpop.trf.xlu0
        %1663 = vxpose.xlu0.b32.start [1/16] %v672, 128
        %1664 = vxpose.xlu0.b32.cont [2/16] %v676, 128
        %1665 = vxpose.xlu0.b32.cont [3/16] %v680, 128
        %1666 = vxpose.xlu0.b32.cont [4/16] %v684, 128
        %1667 = vxpose.xlu0.b32.cont [5/16] %v688, 128
        %1668 = vxpose.xlu0.b32.cont [6/16] %v692, 128
        %1669 = vxpose.xlu0.b32.cont [7/16] %v696, 128
        %1670 = vxpose.xlu0.b32.cont [8/16] %v700, 128
        %1671 = vxpose.xlu0.b32.cont [9/16] %v704, 128
        %1672 = vxpose.xlu0.b32.cont [10/16] %v708, 128
        %1673 = vxpose.xlu0.b32.cont [11/16] %v712, 128
        %1674 = vxpose.xlu0.b32.cont [12/16] %v716, 128
        %1675 = vxpose.xlu0.b32.cont [13/16] %v720, 128
        %1676 = vxpose.xlu0.b32.cont [14/16] %v724, 128
        %1677 = vxpose.xlu0.b32.cont [15/16] %v728, 128
        %1678 = vxpose.xlu0.b32.end [16/16] %v732, 128
        %v1679 = vpop.trf.xlu0
        %v1680 = vpop.trf.xlu0
        %v1681 = vpop.trf.xlu0
        %v1682 = vpop.trf.xlu0
        %v1683 = vpop.trf.xlu0
        %v1684 = vpop.trf.xlu0
        %v1685 = vpop.trf.xlu0
        %v1686 = vpop.trf.xlu0
        %v1687 = vpop.trf.xlu0
        %v1688 = vpop.trf.xlu0
        %v1689 = vpop.trf.xlu0
        %v1690 = vpop.trf.xlu0
        %v1691 = vpop.trf.xlu0
        %v1692 = vpop.trf.xlu0
        %v1693 = vpop.trf.xlu0
        %v1694 = vpop.trf.xlu0
        %1695 = vxpose.xlu0.b32.start [1/16] %v673, 128
        %1696 = vxpose.xlu0.b32.cont [2/16] %v677, 128
        %1697 = vxpose.xlu0.b32.cont [3/16] %v681, 128
        %1698 = vxpose.xlu0.b32.cont [4/16] %v685, 128
        %1699 = vxpose.xlu0.b32.cont [5/16] %v689, 128
        %1700 = vxpose.xlu0.b32.cont [6/16] %v693, 128
        %1701 = vxpose.xlu0.b32.cont [7/16] %v697, 128
        %1702 = vxpose.xlu0.b32.cont [8/16] %v701, 128
        %1703 = vxpose.xlu0.b32.cont [9/16] %v705, 128
        %1704 = vxpose.xlu0.b32.cont [10/16] %v709, 128
        %1705 = vxpose.xlu0.b32.cont [11/16] %v713, 128
        %1706 = vxpose.xlu0.b32.cont [12/16] %v717, 128
        %1707 = vxpose.xlu0.b32.cont [13/16] %v721, 128
        %1708 = vxpose.xlu0.b32.cont [14/16] %v725, 128
        %1709 = vxpose.xlu0.b32.cont [15/16] %v729, 128
        %1710 = vxpose.xlu0.b32.end [16/16] %v733, 128
        %v1711 = vpop.trf.xlu0
        %v1712 = vpop.trf.xlu0
        %v1713 = vpop.trf.xlu0
        %v1714 = vpop.trf.xlu0
        %v1715 = vpop.trf.xlu0
        %v1716 = vpop.trf.xlu0
        %v1717 = vpop.trf.xlu0
        %v1718 = vpop.trf.xlu0
        %v1719 = vpop.trf.xlu0
        %v1720 = vpop.trf.xlu0
        %v1721 = vpop.trf.xlu0
        %v1722 = vpop.trf.xlu0
        %v1723 = vpop.trf.xlu0
        %v1724 = vpop.trf.xlu0
        %v1725 = vpop.trf.xlu0
        %v1726 = vpop.trf.xlu0
        %1727 = vxpose.xlu0.b32.start [1/16] %v674, 128
        %1728 = vxpose.xlu0.b32.cont [2/16] %v678, 128
        %1729 = vxpose.xlu0.b32.cont [3/16] %v682, 128
        %1730 = vxpose.xlu0.b32.cont [4/16] %v686, 128
        %1731 = vxpose.xlu0.b32.cont [5/16] %v690, 128
        %1732 = vxpose.xlu0.b32.cont [6/16] %v694, 128
        %1733 = vxpose.xlu0.b32.cont [7/16] %v698, 128
        %1734 = vxpose.xlu0.b32.cont [8/16] %v702, 128
        %1735 = vxpose.xlu0.b32.cont [9/16] %v706, 128
        %1736 = vxpose.xlu0.b32.cont [10/16] %v710, 128
        %1737 = vxpose.xlu0.b32.cont [11/16] %v714, 128
        %1738 = vxpose.xlu0.b32.cont [12/16] %v718, 128
        %1739 = vxpose.xlu0.b32.cont [13/16] %v722, 128
        %1740 = vxpose.xlu0.b32.cont [14/16] %v726, 128
        %1741 = vxpose.xlu0.b32.cont [15/16] %v730, 128
        %1742 = vxpose.xlu0.b32.end [16/16] %v734, 128
        %v1743 = vpop.trf.xlu0
        %v1744 = vpop.trf.xlu0
        %v1745 = vpop.trf.xlu0
        %v1746 = vpop.trf.xlu0
        %v1747 = vpop.trf.xlu0
        %v1748 = vpop.trf.xlu0
        %v1749 = vpop.trf.xlu0
        %v1750 = vpop.trf.xlu0
        %v1751 = vpop.trf.xlu0
        %v1752 = vpop.trf.xlu0
        %v1753 = vpop.trf.xlu0
        %v1754 = vpop.trf.xlu0
        %v1755 = vpop.trf.xlu0
        %v1756 = vpop.trf.xlu0
        %v1757 = vpop.trf.xlu0
        %v1758 = vpop.trf.xlu0
        %1759 = vst [vmem:[%s200] sm:$0xff] %v751
        %1760 = vst [vmem:[%s200 + $0x8] sm:$0xff] %v879
        %1761 = vst [vmem:[%s200 + $0x10] sm:$0xff] %v1007
        %1762 = vst [vmem:[%s200 + $0x18] sm:$0xff] %v1135
        %1763 = vst [vmem:[%s200 + $0x20] sm:$0xff] %v752
        %1764 = vst [vmem:[%s200 + $0x28] sm:$0xff] %v880
        %1765 = vst [vmem:[%s200 + $0x30] sm:$0xff] %v1008
        %1766 = vst [vmem:[%s200 + $0x38] sm:$0xff] %v1136
        %1767 = vst [vmem:[%s200 + $0x40] sm:$0xff] %v753
        %1768 = vst [vmem:[%s200 + $0x48] sm:$0xff] %v881
        %1769 = vst [vmem:[%s200 + $0x50] sm:$0xff] %v1009
        %1770 = vst [vmem:[%s200 + $0x58] sm:$0xff] %v1137
        %1771 = vst [vmem:[%s200 + $0x60] sm:$0xff] %v754
        %1772 = vst [vmem:[%s200 + $0x68] sm:$0xff] %v882
        %1773 = vst [vmem:[%s200 + $0x70] sm:$0xff] %v1010
        %1774 = vst [vmem:[%s200 + $0x78] sm:$0xff] %v1138
        %1775 = vst [vmem:[%s200 + $0x80] sm:$0xff] %v755
        %1776 = vst [vmem:[%s200 + $0x88] sm:$0xff] %v883
        %1777 = vst [vmem:[%s200 + $0x90] sm:$0xff] %v1011
        %1778 = vst [vmem:[%s200 + $0x98] sm:$0xff] %v1139
        %1779 = vst [vmem:[%s200 + $0xa0] sm:$0xff] %v756
        %1780 = vst [vmem:[%s200 + $0xa8] sm:$0xff] %v884
        %1781 = vst [vmem:[%s200 + $0xb0] sm:$0xff] %v1012
        %1782 = vst [vmem:[%s200 + $0xb8] sm:$0xff] %v1140
        %1783 = vst [vmem:[%s200 + $0xc0] sm:$0xff] %v757
        %1784 = vst [vmem:[%s200 + $0xc8] sm:$0xff] %v885
        %1785 = vst [vmem:[%s200 + $0xd0] sm:$0xff] %v1013
        %1786 = vst [vmem:[%s200 + $0xd8] sm:$0xff] %v1141
        %1787 = vst [vmem:[%s200 + $0xe0] sm:$0xff] %v758
        %1788 = vst [vmem:[%s200 + $0xe8] sm:$0xff] %v886
        %1789 = vst [vmem:[%s200 + $0xf0] sm:$0xff] %v1014
        %1790 = vst [vmem:[%s200 + $0xf8] sm:$0xff] %v1142
        %1791 = vst [vmem:[%s200 + $0x100] sm:$0xff] %v759
        %1792 = vst [vmem:[%s200 + $0x108] sm:$0xff] %v887
        %1793 = vst [vmem:[%s200 + $0x110] sm:$0xff] %v1015
        %1794 = vst [vmem:[%s200 + $0x118] sm:$0xff] %v1143
        %1795 = vst [vmem:[%s200 + $0x120] sm:$0xff] %v760
        %1796 = vst [vmem:[%s200 + $0x128] sm:$0xff] %v888
        %1797 = vst [vmem:[%s200 + $0x130] sm:$0xff] %v1016
        %1798 = vst [vmem:[%s200 + $0x138] sm:$0xff] %v1144
        %1799 = vst [vmem:[%s200 + $0x140] sm:$0xff] %v761
        %1800 = vst [vmem:[%s200 + $0x148] sm:$0xff] %v889
        %1801 = vst [vmem:[%s200 + $0x150] sm:$0xff] %v1017
        %1802 = vst [vmem:[%s200 + $0x158] sm:$0xff] %v1145
        %1803 = vst [vmem:[%s200 + $0x160] sm:$0xff] %v762
        %1804 = vst [vmem:[%s200 + $0x168] sm:$0xff] %v890
        %1805 = vst [vmem:[%s200 + $0x170] sm:$0xff] %v1018
        %1806 = vst [vmem:[%s200 + $0x178] sm:$0xff] %v1146
        %1807 = vst [vmem:[%s200 + $0x180] sm:$0xff] %v763
        %1808 = vst [vmem:[%s200 + $0x188] sm:$0xff] %v891
        %1809 = vst [vmem:[%s200 + $0x190] sm:$0xff] %v1019
        %1810 = vst [vmem:[%s200 + $0x198] sm:$0xff] %v1147
        %1811 = vst [vmem:[%s200 + $0x1a0] sm:$0xff] %v764
        %1812 = vst [vmem:[%s200 + $0x1a8] sm:$0xff] %v892
        %1813 = vst [vmem:[%s200 + $0x1b0] sm:$0xff] %v1020
        %1814 = vst [vmem:[%s200 + $0x1b8] sm:$0xff] %v1148
        %1815 = vst [vmem:[%s200 + $0x1c0] sm:$0xff] %v765
        %1816 = vst [vmem:[%s200 + $0x1c8] sm:$0xff] %v893
        %1817 = vst [vmem:[%s200 + $0x1d0] sm:$0xff] %v1021
        %1818 = vst [vmem:[%s200 + $0x1d8] sm:$0xff] %v1149
        %1819 = vst [vmem:[%s200 + $0x1e0] sm:$0xff] %v766
        %1820 = vst [vmem:[%s200 + $0x1e8] sm:$0xff] %v894
        %1821 = vst [vmem:[%s200 + $0x1f0] sm:$0xff] %v1022
        %1822 = vst [vmem:[%s200 + $0x1f8] sm:$0xff] %v1150
        %1823 = vst [vmem:[%s200 + $0x200] sm:$0xff] %v783
        %1824 = vst [vmem:[%s200 + $0x208] sm:$0xff] %v911
        %1825 = vst [vmem:[%s200 + $0x210] sm:$0xff] %v1039
        %1826 = vst [vmem:[%s200 + $0x218] sm:$0xff] %v1167
        %1827 = vst [vmem:[%s200 + $0x220] sm:$0xff] %v784
        %1828 = vst [vmem:[%s200 + $0x228] sm:$0xff] %v912
        %1829 = vst [vmem:[%s200 + $0x230] sm:$0xff] %v1040
        %1830 = vst [vmem:[%s200 + $0x238] sm:$0xff] %v1168
        %1831 = vst [vmem:[%s200 + $0x240] sm:$0xff] %v785
        %1832 = vst [vmem:[%s200 + $0x248] sm:$0xff] %v913
        %1833 = vst [vmem:[%s200 + $0x250] sm:$0xff] %v1041
        %1834 = vst [vmem:[%s200 + $0x258] sm:$0xff] %v1169
        %1835 = vst [vmem:[%s200 + $0x260] sm:$0xff] %v786
        %1836 = vst [vmem:[%s200 + $0x268] sm:$0xff] %v914
        %1837 = vst [vmem:[%s200 + $0x270] sm:$0xff] %v1042
        %1838 = vst [vmem:[%s200 + $0x278] sm:$0xff] %v1170
        %1839 = vst [vmem:[%s200 + $0x280] sm:$0xff] %v787
        %1840 = vst [vmem:[%s200 + $0x288] sm:$0xff] %v915
        %1841 = vst [vmem:[%s200 + $0x290] sm:$0xff] %v1043
        %1842 = vst [vmem:[%s200 + $0x298] sm:$0xff] %v1171
        %1843 = vst [vmem:[%s200 + $0x2a0] sm:$0xff] %v788
        %1844 = vst [vmem:[%s200 + $0x2a8] sm:$0xff] %v916
        %1845 = vst [vmem:[%s200 + $0x2b0] sm:$0xff] %v1044
        %1846 = vst [vmem:[%s200 + $0x2b8] sm:$0xff] %v1172
        %1847 = vst [vmem:[%s200 + $0x2c0] sm:$0xff] %v789
        %1848 = vst [vmem:[%s200 + $0x2c8] sm:$0xff] %v917
        %1849 = vst [vmem:[%s200 + $0x2d0] sm:$0xff] %v1045
        %1850 = vst [vmem:[%s200 + $0x2d8] sm:$0xff] %v1173
        %1851 = vst [vmem:[%s200 + $0x2e0] sm:$0xff] %v790
        %1852 = vst [vmem:[%s200 + $0x2e8] sm:$0xff] %v918
        %1853 = vst [vmem:[%s200 + $0x2f0] sm:$0xff] %v1046
        %1854 = vst [vmem:[%s200 + $0x2f8] sm:$0xff] %v1174
        %1855 = vst [vmem:[%s200 + $0x300] sm:$0xff] %v791
        %1856 = vst [vmem:[%s200 + $0x308] sm:$0xff] %v919
        %1857 = vst [vmem:[%s200 + $0x310] sm:$0xff] %v1047
        %1858 = vst [vmem:[%s200 + $0x318] sm:$0xff] %v1175
        %1859 = vst [vmem:[%s200 + $0x320] sm:$0xff] %v792
        %1860 = vst [vmem:[%s200 + $0x328] sm:$0xff] %v920
        %1861 = vst [vmem:[%s200 + $0x330] sm:$0xff] %v1048
        %1862 = vst [vmem:[%s200 + $0x338] sm:$0xff] %v1176
        %1863 = vst [vmem:[%s200 + $0x340] sm:$0xff] %v793
        %1864 = vst [vmem:[%s200 + $0x348] sm:$0xff] %v921
        %1865 = vst [vmem:[%s200 + $0x350] sm:$0xff] %v1049
        %1866 = vst [vmem:[%s200 + $0x358] sm:$0xff] %v1177
        %1867 = vst [vmem:[%s200 + $0x360] sm:$0xff] %v794
        %1868 = vst [vmem:[%s200 + $0x368] sm:$0xff] %v922
        %1869 = vst [vmem:[%s200 + $0x370] sm:$0xff] %v1050
        %1870 = vst [vmem:[%s200 + $0x378] sm:$0xff] %v1178
        %1871 = vst [vmem:[%s200 + $0x380] sm:$0xff] %v795
        %1872 = vst [vmem:[%s200 + $0x388] sm:$0xff] %v923
        %1873 = vst [vmem:[%s200 + $0x390] sm:$0xff] %v1051
        %1874 = vst [vmem:[%s200 + $0x398] sm:$0xff] %v1179
        %1875 = vst [vmem:[%s200 + $0x3a0] sm:$0xff] %v796
        %1876 = vst [vmem:[%s200 + $0x3a8] sm:$0xff] %v924
        %1877 = vst [vmem:[%s200 + $0x3b0] sm:$0xff] %v1052
        %1878 = vst [vmem:[%s200 + $0x3b8] sm:$0xff] %v1180
        %1879 = vst [vmem:[%s200 + $0x3c0] sm:$0xff] %v797
        %1880 = vst [vmem:[%s200 + $0x3c8] sm:$0xff] %v925
        %1881 = vst [vmem:[%s200 + $0x3d0] sm:$0xff] %v1053
        %1882 = vst [vmem:[%s200 + $0x3d8] sm:$0xff] %v1181
        %1883 = vst [vmem:[%s200 + $0x3e0] sm:$0xff] %v798
        %1884 = vst [vmem:[%s200 + $0x3e8] sm:$0xff] %v926
        %1885 = vst [vmem:[%s200 + $0x3f0] sm:$0xff] %v1054
        %1886 = vst [vmem:[%s200 + $0x3f8] sm:$0xff] %v1182
        %1887 = vst [vmem:[%s200 + $0x400] sm:$0xff] %v815
        %1888 = vst [vmem:[%s200 + $0x408] sm:$0xff] %v943
        %1889 = vst [vmem:[%s200 + $0x410] sm:$0xff] %v1071
        %1890 = vst [vmem:[%s200 + $0x418] sm:$0xff] %v1199
        %1891 = vst [vmem:[%s200 + $0x420] sm:$0xff] %v816
        %1892 = vst [vmem:[%s200 + $0x428] sm:$0xff] %v944
        %1893 = vst [vmem:[%s200 + $0x430] sm:$0xff] %v1072
        %1894 = vst [vmem:[%s200 + $0x438] sm:$0xff] %v1200
        %1895 = vst [vmem:[%s200 + $0x440] sm:$0xff] %v817
        %1896 = vst [vmem:[%s200 + $0x448] sm:$0xff] %v945
        %1897 = vst [vmem:[%s200 + $0x450] sm:$0xff] %v1073
        %1898 = vst [vmem:[%s200 + $0x458] sm:$0xff] %v1201
        %1899 = vst [vmem:[%s200 + $0x460] sm:$0xff] %v818
        %1900 = vst [vmem:[%s200 + $0x468] sm:$0xff] %v946
        %1901 = vst [vmem:[%s200 + $0x470] sm:$0xff] %v1074
        %1902 = vst [vmem:[%s200 + $0x478] sm:$0xff] %v1202
        %1903 = vst [vmem:[%s200 + $0x480] sm:$0xff] %v819
        %1904 = vst [vmem:[%s200 + $0x488] sm:$0xff] %v947
        %1905 = vst [vmem:[%s200 + $0x490] sm:$0xff] %v1075
        %1906 = vst [vmem:[%s200 + $0x498] sm:$0xff] %v1203
        %1907 = vst [vmem:[%s200 + $0x4a0] sm:$0xff] %v820
        %1908 = vst [vmem:[%s200 + $0x4a8] sm:$0xff] %v948
        %1909 = vst [vmem:[%s200 + $0x4b0] sm:$0xff] %v1076
        %1910 = vst [vmem:[%s200 + $0x4b8] sm:$0xff] %v1204
        %1911 = vst [vmem:[%s200 + $0x4c0] sm:$0xff] %v821
        %1912 = vst [vmem:[%s200 + $0x4c8] sm:$0xff] %v949
        %1913 = vst [vmem:[%s200 + $0x4d0] sm:$0xff] %v1077
        %1914 = vst [vmem:[%s200 + $0x4d8] sm:$0xff] %v1205
        %1915 = vst [vmem:[%s200 + $0x4e0] sm:$0xff] %v822
        %1916 = vst [vmem:[%s200 + $0x4e8] sm:$0xff] %v950
        %1917 = vst [vmem:[%s200 + $0x4f0] sm:$0xff] %v1078
        %1918 = vst [vmem:[%s200 + $0x4f8] sm:$0xff] %v1206
        %1919 = vst [vmem:[%s200 + $0x500] sm:$0xff] %v823
        %1920 = vst [vmem:[%s200 + $0x508] sm:$0xff] %v951
        %1921 = vst [vmem:[%s200 + $0x510] sm:$0xff] %v1079
        %1922 = vst [vmem:[%s200 + $0x518] sm:$0xff] %v1207
        %1923 = vst [vmem:[%s200 + $0x520] sm:$0xff] %v824
        %1924 = vst [vmem:[%s200 + $0x528] sm:$0xff] %v952
        %1925 = vst [vmem:[%s200 + $0x530] sm:$0xff] %v1080
        %1926 = vst [vmem:[%s200 + $0x538] sm:$0xff] %v1208
        %1927 = vst [vmem:[%s200 + $0x540] sm:$0xff] %v825
        %1928 = vst [vmem:[%s200 + $0x548] sm:$0xff] %v953
        %1929 = vst [vmem:[%s200 + $0x550] sm:$0xff] %v1081
        %1930 = vst [vmem:[%s200 + $0x558] sm:$0xff] %v1209
        %1931 = vst [vmem:[%s200 + $0x560] sm:$0xff] %v826
        %1932 = vst [vmem:[%s200 + $0x568] sm:$0xff] %v954
        %1933 = vst [vmem:[%s200 + $0x570] sm:$0xff] %v1082
        %1934 = vst [vmem:[%s200 + $0x578] sm:$0xff] %v1210
        %1935 = vst [vmem:[%s200 + $0x580] sm:$0xff] %v827
        %1936 = vst [vmem:[%s200 + $0x588] sm:$0xff] %v955
        %1937 = vst [vmem:[%s200 + $0x590] sm:$0xff] %v1083
        %1938 = vst [vmem:[%s200 + $0x598] sm:$0xff] %v1211
        %1939 = vst [vmem:[%s200 + $0x5a0] sm:$0xff] %v828
        %1940 = vst [vmem:[%s200 + $0x5a8] sm:$0xff] %v956
        %1941 = vst [vmem:[%s200 + $0x5b0] sm:$0xff] %v1084
        %1942 = vst [vmem:[%s200 + $0x5b8] sm:$0xff] %v1212
        %1943 = vst [vmem:[%s200 + $0x5c0] sm:$0xff] %v829
        %1944 = vst [vmem:[%s200 + $0x5c8] sm:$0xff] %v957
        %1945 = vst [vmem:[%s200 + $0x5d0] sm:$0xff] %v1085
        %1946 = vst [vmem:[%s200 + $0x5d8] sm:$0xff] %v1213
        %1947 = vst [vmem:[%s200 + $0x5e0] sm:$0xff] %v830
        %1948 = vst [vmem:[%s200 + $0x5e8] sm:$0xff] %v958
        %1949 = vst [vmem:[%s200 + $0x5f0] sm:$0xff] %v1086
        %1950 = vst [vmem:[%s200 + $0x5f8] sm:$0xff] %v1214
        %1951 = vst [vmem:[%s200 + $0x600] sm:$0xff] %v847
        %1952 = vst [vmem:[%s200 + $0x608] sm:$0xff] %v975
        %1953 = vst [vmem:[%s200 + $0x610] sm:$0xff] %v1103
        %1954 = vst [vmem:[%s200 + $0x618] sm:$0xff] %v1231
        %1955 = vst [vmem:[%s200 + $0x620] sm:$0xff] %v848
        %1956 = vst [vmem:[%s200 + $0x628] sm:$0xff] %v976
        %1957 = vst [vmem:[%s200 + $0x630] sm:$0xff] %v1104
        %1958 = vst [vmem:[%s200 + $0x638] sm:$0xff] %v1232
        %1959 = vst [vmem:[%s200 + $0x640] sm:$0xff] %v849
        %1960 = vst [vmem:[%s200 + $0x648] sm:$0xff] %v977
        %1961 = vst [vmem:[%s200 + $0x650] sm:$0xff] %v1105
        %1962 = vst [vmem:[%s200 + $0x658] sm:$0xff] %v1233
        %1963 = vst [vmem:[%s200 + $0x660] sm:$0xff] %v850
        %1964 = vst [vmem:[%s200 + $0x668] sm:$0xff] %v978
        %1965 = vst [vmem:[%s200 + $0x670] sm:$0xff] %v1106
        %1966 = vst [vmem:[%s200 + $0x678] sm:$0xff] %v1234
        %1967 = vst [vmem:[%s200 + $0x680] sm:$0xff] %v851
        %1968 = vst [vmem:[%s200 + $0x688] sm:$0xff] %v979
        %1969 = vst [vmem:[%s200 + $0x690] sm:$0xff] %v1107
        %1970 = vst [vmem:[%s200 + $0x698] sm:$0xff] %v1235
        %1971 = vst [vmem:[%s200 + $0x6a0] sm:$0xff] %v852
        %1972 = vst [vmem:[%s200 + $0x6a8] sm:$0xff] %v980
        %1973 = vst [vmem:[%s200 + $0x6b0] sm:$0xff] %v1108
        %1974 = vst [vmem:[%s200 + $0x6b8] sm:$0xff] %v1236
        %1975 = vst [vmem:[%s200 + $0x6c0] sm:$0xff] %v853
        %1976 = vst [vmem:[%s200 + $0x6c8] sm:$0xff] %v981
        %1977 = vst [vmem:[%s200 + $0x6d0] sm:$0xff] %v1109
        %1978 = vst [vmem:[%s200 + $0x6d8] sm:$0xff] %v1237
        %1979 = vst [vmem:[%s200 + $0x6e0] sm:$0xff] %v854
        %1980 = vst [vmem:[%s200 + $0x6e8] sm:$0xff] %v982
        %1981 = vst [vmem:[%s200 + $0x6f0] sm:$0xff] %v1110
        %1982 = vst [vmem:[%s200 + $0x6f8] sm:$0xff] %v1238
        %1983 = vst [vmem:[%s200 + $0x700] sm:$0xff] %v855
        %1984 = vst [vmem:[%s200 + $0x708] sm:$0xff] %v983
        %1985 = vst [vmem:[%s200 + $0x710] sm:$0xff] %v1111
        %1986 = vst [vmem:[%s200 + $0x718] sm:$0xff] %v1239
        %1987 = vst [vmem:[%s200 + $0x720] sm:$0xff] %v856
        %1988 = vst [vmem:[%s200 + $0x728] sm:$0xff] %v984
        %1989 = vst [vmem:[%s200 + $0x730] sm:$0xff] %v1112
        %1990 = vst [vmem:[%s200 + $0x738] sm:$0xff] %v1240
        %1991 = vst [vmem:[%s200 + $0x740] sm:$0xff] %v857
        %1992 = vst [vmem:[%s200 + $0x748] sm:$0xff] %v985
        %1993 = vst [vmem:[%s200 + $0x750] sm:$0xff] %v1113
        %1994 = vst [vmem:[%s200 + $0x758] sm:$0xff] %v1241
        %1995 = vst [vmem:[%s200 + $0x760] sm:$0xff] %v858
        %1996 = vst [vmem:[%s200 + $0x768] sm:$0xff] %v986
        %1997 = vst [vmem:[%s200 + $0x770] sm:$0xff] %v1114
        %1998 = vst [vmem:[%s200 + $0x778] sm:$0xff] %v1242
        %1999 = vst [vmem:[%s200 + $0x780] sm:$0xff] %v859
        %2000 = vst [vmem:[%s200 + $0x788] sm:$0xff] %v987
        %2001 = vst [vmem:[%s200 + $0x790] sm:$0xff] %v1115
        %2002 = vst [vmem:[%s200 + $0x798] sm:$0xff] %v1243
        %2003 = vst [vmem:[%s200 + $0x7a0] sm:$0xff] %v860
        %2004 = vst [vmem:[%s200 + $0x7a8] sm:$0xff] %v988
        %2005 = vst [vmem:[%s200 + $0x7b0] sm:$0xff] %v1116
        %2006 = vst [vmem:[%s200 + $0x7b8] sm:$0xff] %v1244
        %2007 = vst [vmem:[%s200 + $0x7c0] sm:$0xff] %v861
        %2008 = vst [vmem:[%s200 + $0x7c8] sm:$0xff] %v989
        %2009 = vst [vmem:[%s200 + $0x7d0] sm:$0xff] %v1117
        %2010 = vst [vmem:[%s200 + $0x7d8] sm:$0xff] %v1245
        %2011 = vst [vmem:[%s200 + $0x7e0] sm:$0xff] %v862
        %2012 = vst [vmem:[%s200 + $0x7e8] sm:$0xff] %v990
        %2013 = vst [vmem:[%s200 + $0x7f0] sm:$0xff] %v1118
        %2014 = vst [vmem:[%s200 + $0x7f8] sm:$0xff] %v1246
        %2015 = vst [vmem:[%s200 + $0x800] sm:$0xff] %v1263
        %2016 = vst [vmem:[%s200 + $0x808] sm:$0xff] %v1391
        %2017 = vst [vmem:[%s200 + $0x810] sm:$0xff] %v1519
        %2018 = vst [vmem:[%s200 + $0x818] sm:$0xff] %v1647
        %2019 = vst [vmem:[%s200 + $0x820] sm:$0xff] %v1264
        %2020 = vst [vmem:[%s200 + $0x828] sm:$0xff] %v1392
        %2021 = vst [vmem:[%s200 + $0x830] sm:$0xff] %v1520
        %2022 = vst [vmem:[%s200 + $0x838] sm:$0xff] %v1648
        %2023 = vst [vmem:[%s200 + $0x840] sm:$0xff] %v1265
        %2024 = vst [vmem:[%s200 + $0x848] sm:$0xff] %v1393
        %2025 = vst [vmem:[%s200 + $0x850] sm:$0xff] %v1521
        %2026 = vst [vmem:[%s200 + $0x858] sm:$0xff] %v1649
        %2027 = vst [vmem:[%s200 + $0x860] sm:$0xff] %v1266
        %2028 = vst [vmem:[%s200 + $0x868] sm:$0xff] %v1394
        %2029 = vst [vmem:[%s200 + $0x870] sm:$0xff] %v1522
        %2030 = vst [vmem:[%s200 + $0x878] sm:$0xff] %v1650
        %2031 = vst [vmem:[%s200 + $0x880] sm:$0xff] %v1267
        %2032 = vst [vmem:[%s200 + $0x888] sm:$0xff] %v1395
        %2033 = vst [vmem:[%s200 + $0x890] sm:$0xff] %v1523
        %2034 = vst [vmem:[%s200 + $0x898] sm:$0xff] %v1651
        %2035 = vst [vmem:[%s200 + $0x8a0] sm:$0xff] %v1268
        %2036 = vst [vmem:[%s200 + $0x8a8] sm:$0xff] %v1396
        %2037 = vst [vmem:[%s200 + $0x8b0] sm:$0xff] %v1524
        %2038 = vst [vmem:[%s200 + $0x8b8] sm:$0xff] %v1652
        %2039 = vst [vmem:[%s200 + $0x8c0] sm:$0xff] %v1269
        %2040 = vst [vmem:[%s200 + $0x8c8] sm:$0xff] %v1397
        %2041 = vst [vmem:[%s200 + $0x8d0] sm:$0xff] %v1525
        %2042 = vst [vmem:[%s200 + $0x8d8] sm:$0xff] %v1653
        %2043 = vst [vmem:[%s200 + $0x8e0] sm:$0xff] %v1270
        %2044 = vst [vmem:[%s200 + $0x8e8] sm:$0xff] %v1398
        %2045 = vst [vmem:[%s200 + $0x8f0] sm:$0xff] %v1526
        %2046 = vst [vmem:[%s200 + $0x8f8] sm:$0xff] %v1654
        %2047 = vst [vmem:[%s200 + $0x900] sm:$0xff] %v1271
        %2048 = vst [vmem:[%s200 + $0x908] sm:$0xff] %v1399
        %2049 = vst [vmem:[%s200 + $0x910] sm:$0xff] %v1527
        %2050 = vst [vmem:[%s200 + $0x918] sm:$0xff] %v1655
        %2051 = vst [vmem:[%s200 + $0x920] sm:$0xff] %v1272
        %2052 = vst [vmem:[%s200 + $0x928] sm:$0xff] %v1400
        %2053 = vst [vmem:[%s200 + $0x930] sm:$0xff] %v1528
        %2054 = vst [vmem:[%s200 + $0x938] sm:$0xff] %v1656
        %2055 = vst [vmem:[%s200 + $0x940] sm:$0xff] %v1273
        %2056 = vst [vmem:[%s200 + $0x948] sm:$0xff] %v1401
        %2057 = vst [vmem:[%s200 + $0x950] sm:$0xff] %v1529
        %2058 = vst [vmem:[%s200 + $0x958] sm:$0xff] %v1657
        %2059 = vst [vmem:[%s200 + $0x960] sm:$0xff] %v1274
        %2060 = vst [vmem:[%s200 + $0x968] sm:$0xff] %v1402
        %2061 = vst [vmem:[%s200 + $0x970] sm:$0xff] %v1530
        %2062 = vst [vmem:[%s200 + $0x978] sm:$0xff] %v1658
        %2063 = vst [vmem:[%s200 + $0x980] sm:$0xff] %v1275
        %2064 = vst [vmem:[%s200 + $0x988] sm:$0xff] %v1403
        %2065 = vst [vmem:[%s200 + $0x990] sm:$0xff] %v1531
        %2066 = vst [vmem:[%s200 + $0x998] sm:$0xff] %v1659
        %2067 = vst [vmem:[%s200 + $0x9a0] sm:$0xff] %v1276
        %2068 = vst [vmem:[%s200 + $0x9a8] sm:$0xff] %v1404
        %2069 = vst [vmem:[%s200 + $0x9b0] sm:$0xff] %v1532
        %2070 = vst [vmem:[%s200 + $0x9b8] sm:$0xff] %v1660
        %2071 = vst [vmem:[%s200 + $0x9c0] sm:$0xff] %v1277
        %2072 = vst [vmem:[%s200 + $0x9c8] sm:$0xff] %v1405
        %2073 = vst [vmem:[%s200 + $0x9d0] sm:$0xff] %v1533
        %2074 = vst [vmem:[%s200 + $0x9d8] sm:$0xff] %v1661
        %2075 = vst [vmem:[%s200 + $0x9e0] sm:$0xff] %v1278
        %2076 = vst [vmem:[%s200 + $0x9e8] sm:$0xff] %v1406
        %2077 = vst [vmem:[%s200 + $0x9f0] sm:$0xff] %v1534
        %2078 = vst [vmem:[%s200 + $0x9f8] sm:$0xff] %v1662
        %2079 = vst [vmem:[%s200 + $0xa00] sm:$0xff] %v1295
        %2080 = vst [vmem:[%s200 + $0xa08] sm:$0xff] %v1423
        %2081 = vst [vmem:[%s200 + $0xa10] sm:$0xff] %v1551
        %2082 = vst [vmem:[%s200 + $0xa18] sm:$0xff] %v1679
        %2083 = vst [vmem:[%s200 + $0xa20] sm:$0xff] %v1296
        %2084 = vst [vmem:[%s200 + $0xa28] sm:$0xff] %v1424
        %2085 = vst [vmem:[%s200 + $0xa30] sm:$0xff] %v1552
        %2086 = vst [vmem:[%s200 + $0xa38] sm:$0xff] %v1680
        %2087 = vst [vmem:[%s200 + $0xa40] sm:$0xff] %v1297
        %2088 = vst [vmem:[%s200 + $0xa48] sm:$0xff] %v1425
        %2089 = vst [vmem:[%s200 + $0xa50] sm:$0xff] %v1553
        %2090 = vst [vmem:[%s200 + $0xa58] sm:$0xff] %v1681
        %2091 = vst [vmem:[%s200 + $0xa60] sm:$0xff] %v1298
        %2092 = vst [vmem:[%s200 + $0xa68] sm:$0xff] %v1426
        %2093 = vst [vmem:[%s200 + $0xa70] sm:$0xff] %v1554
        %2094 = vst [vmem:[%s200 + $0xa78] sm:$0xff] %v1682
        %2095 = vst [vmem:[%s200 + $0xa80] sm:$0xff] %v1299
        %2096 = vst [vmem:[%s200 + $0xa88] sm:$0xff] %v1427
        %2097 = vst [vmem:[%s200 + $0xa90] sm:$0xff] %v1555
        %2098 = vst [vmem:[%s200 + $0xa98] sm:$0xff] %v1683
        %2099 = vst [vmem:[%s200 + $0xaa0] sm:$0xff] %v1300
        %2100 = vst [vmem:[%s200 + $0xaa8] sm:$0xff] %v1428
        %2101 = vst [vmem:[%s200 + $0xab0] sm:$0xff] %v1556
        %2102 = vst [vmem:[%s200 + $0xab8] sm:$0xff] %v1684
        %2103 = vst [vmem:[%s200 + $0xac0] sm:$0xff] %v1301
        %2104 = vst [vmem:[%s200 + $0xac8] sm:$0xff] %v1429
        %2105 = vst [vmem:[%s200 + $0xad0] sm:$0xff] %v1557
        %2106 = vst [vmem:[%s200 + $0xad8] sm:$0xff] %v1685
        %2107 = vst [vmem:[%s200 + $0xae0] sm:$0xff] %v1302
        %2108 = vst [vmem:[%s200 + $0xae8] sm:$0xff] %v1430
        %2109 = vst [vmem:[%s200 + $0xaf0] sm:$0xff] %v1558
        %2110 = vst [vmem:[%s200 + $0xaf8] sm:$0xff] %v1686
        %2111 = vst [vmem:[%s200 + $0xb00] sm:$0xff] %v1303
        %2112 = vst [vmem:[%s200 + $0xb08] sm:$0xff] %v1431
        %2113 = vst [vmem:[%s200 + $0xb10] sm:$0xff] %v1559
        %2114 = vst [vmem:[%s200 + $0xb18] sm:$0xff] %v1687
        %2115 = vst [vmem:[%s200 + $0xb20] sm:$0xff] %v1304
        %2116 = vst [vmem:[%s200 + $0xb28] sm:$0xff] %v1432
        %2117 = vst [vmem:[%s200 + $0xb30] sm:$0xff] %v1560
        %2118 = vst [vmem:[%s200 + $0xb38] sm:$0xff] %v1688
        %2119 = vst [vmem:[%s200 + $0xb40] sm:$0xff] %v1305
        %2120 = vst [vmem:[%s200 + $0xb48] sm:$0xff] %v1433
        %2121 = vst [vmem:[%s200 + $0xb50] sm:$0xff] %v1561
        %2122 = vst [vmem:[%s200 + $0xb58] sm:$0xff] %v1689
        %2123 = vst [vmem:[%s200 + $0xb60] sm:$0xff] %v1306
        %2124 = vst [vmem:[%s200 + $0xb68] sm:$0xff] %v1434
        %2125 = vst [vmem:[%s200 + $0xb70] sm:$0xff] %v1562
        %2126 = vst [vmem:[%s200 + $0xb78] sm:$0xff] %v1690
        %2127 = vst [vmem:[%s200 + $0xb80] sm:$0xff] %v1307
        %2128 = vst [vmem:[%s200 + $0xb88] sm:$0xff] %v1435
        %2129 = vst [vmem:[%s200 + $0xb90] sm:$0xff] %v1563
        %2130 = vst [vmem:[%s200 + $0xb98] sm:$0xff] %v1691
        %2131 = vst [vmem:[%s200 + $0xba0] sm:$0xff] %v1308
        %2132 = vst [vmem:[%s200 + $0xba8] sm:$0xff] %v1436
        %2133 = vst [vmem:[%s200 + $0xbb0] sm:$0xff] %v1564
        %2134 = vst [vmem:[%s200 + $0xbb8] sm:$0xff] %v1692
        %2135 = vst [vmem:[%s200 + $0xbc0] sm:$0xff] %v1309
        %2136 = vst [vmem:[%s200 + $0xbc8] sm:$0xff] %v1437
        %2137 = vst [vmem:[%s200 + $0xbd0] sm:$0xff] %v1565
        %2138 = vst [vmem:[%s200 + $0xbd8] sm:$0xff] %v1693
        %2139 = vst [vmem:[%s200 + $0xbe0] sm:$0xff] %v1310
        %2140 = vst [vmem:[%s200 + $0xbe8] sm:$0xff] %v1438
        %2141 = vst [vmem:[%s200 + $0xbf0] sm:$0xff] %v1566
        %2142 = vst [vmem:[%s200 + $0xbf8] sm:$0xff] %v1694
        %2143 = vst [vmem:[%s200 + $0xc00] sm:$0xff] %v1327
        %2144 = vst [vmem:[%s200 + $0xc08] sm:$0xff] %v1455
        %2145 = vst [vmem:[%s200 + $0xc10] sm:$0xff] %v1583
        %2146 = vst [vmem:[%s200 + $0xc18] sm:$0xff] %v1711
        %2147 = vst [vmem:[%s200 + $0xc20] sm:$0xff] %v1328
        %2148 = vst [vmem:[%s200 + $0xc28] sm:$0xff] %v1456
        %2149 = vst [vmem:[%s200 + $0xc30] sm:$0xff] %v1584
        %2150 = vst [vmem:[%s200 + $0xc38] sm:$0xff] %v1712
        %2151 = vst [vmem:[%s200 + $0xc40] sm:$0xff] %v1329
        %2152 = vst [vmem:[%s200 + $0xc48] sm:$0xff] %v1457
        %2153 = vst [vmem:[%s200 + $0xc50] sm:$0xff] %v1585
        %2154 = vst [vmem:[%s200 + $0xc58] sm:$0xff] %v1713
        %2155 = vst [vmem:[%s200 + $0xc60] sm:$0xff] %v1330
        %2156 = vst [vmem:[%s200 + $0xc68] sm:$0xff] %v1458
        %2157 = vst [vmem:[%s200 + $0xc70] sm:$0xff] %v1586
        %2158 = vst [vmem:[%s200 + $0xc78] sm:$0xff] %v1714
        %2159 = vst [vmem:[%s200 + $0xc80] sm:$0xff] %v1331
        %2160 = vst [vmem:[%s200 + $0xc88] sm:$0xff] %v1459
        %2161 = vst [vmem:[%s200 + $0xc90] sm:$0xff] %v1587
        %2162 = vst [vmem:[%s200 + $0xc98] sm:$0xff] %v1715
        %2163 = vst [vmem:[%s200 + $0xca0] sm:$0xff] %v1332
        %2164 = vst [vmem:[%s200 + $0xca8] sm:$0xff] %v1460
        %2165 = vst [vmem:[%s200 + $0xcb0] sm:$0xff] %v1588
        %2166 = vst [vmem:[%s200 + $0xcb8] sm:$0xff] %v1716
        %2167 = vst [vmem:[%s200 + $0xcc0] sm:$0xff] %v1333
        %2168 = vst [vmem:[%s200 + $0xcc8] sm:$0xff] %v1461
        %2169 = vst [vmem:[%s200 + $0xcd0] sm:$0xff] %v1589
        %2170 = vst [vmem:[%s200 + $0xcd8] sm:$0xff] %v1717
        %2171 = vst [vmem:[%s200 + $0xce0] sm:$0xff] %v1334
        %2172 = vst [vmem:[%s200 + $0xce8] sm:$0xff] %v1462
        %2173 = vst [vmem:[%s200 + $0xcf0] sm:$0xff] %v1590
        %2174 = vst [vmem:[%s200 + $0xcf8] sm:$0xff] %v1718
        %2175 = vst [vmem:[%s200 + $0xd00] sm:$0xff] %v1335
        %2176 = vst [vmem:[%s200 + $0xd08] sm:$0xff] %v1463
        %2177 = vst [vmem:[%s200 + $0xd10] sm:$0xff] %v1591
        %2178 = vst [vmem:[%s200 + $0xd18] sm:$0xff] %v1719
        %2179 = vst [vmem:[%s200 + $0xd20] sm:$0xff] %v1336
        %2180 = vst [vmem:[%s200 + $0xd28] sm:$0xff] %v1464
        %2181 = vst [vmem:[%s200 + $0xd30] sm:$0xff] %v1592
        %2182 = vst [vmem:[%s200 + $0xd38] sm:$0xff] %v1720
        %2183 = vst [vmem:[%s200 + $0xd40] sm:$0xff] %v1337
        %2184 = vst [vmem:[%s200 + $0xd48] sm:$0xff] %v1465
        %2185 = vst [vmem:[%s200 + $0xd50] sm:$0xff] %v1593
        %2186 = vst [vmem:[%s200 + $0xd58] sm:$0xff] %v1721
        %2187 = vst [vmem:[%s200 + $0xd60] sm:$0xff] %v1338
        %2188 = vst [vmem:[%s200 + $0xd68] sm:$0xff] %v1466
        %2189 = vst [vmem:[%s200 + $0xd70] sm:$0xff] %v1594
        %2190 = vst [vmem:[%s200 + $0xd78] sm:$0xff] %v1722
        %2191 = vst [vmem:[%s200 + $0xd80] sm:$0xff] %v1339
        %2192 = vst [vmem:[%s200 + $0xd88] sm:$0xff] %v1467
        %2193 = vst [vmem:[%s200 + $0xd90] sm:$0xff] %v1595
        %2194 = vst [vmem:[%s200 + $0xd98] sm:$0xff] %v1723
        %2195 = vst [vmem:[%s200 + $0xda0] sm:$0xff] %v1340
        %2196 = vst [vmem:[%s200 + $0xda8] sm:$0xff] %v1468
        %2197 = vst [vmem:[%s200 + $0xdb0] sm:$0xff] %v1596
        %2198 = vst [vmem:[%s200 + $0xdb8] sm:$0xff] %v1724
        %2199 = vst [vmem:[%s200 + $0xdc0] sm:$0xff] %v1341
        %2200 = vst [vmem:[%s200 + $0xdc8] sm:$0xff] %v1469
        %2201 = vst [vmem:[%s200 + $0xdd0] sm:$0xff] %v1597
        %2202 = vst [vmem:[%s200 + $0xdd8] sm:$0xff] %v1725
        %2203 = vst [vmem:[%s200 + $0xde0] sm:$0xff] %v1342
        %2204 = vst [vmem:[%s200 + $0xde8] sm:$0xff] %v1470
        %2205 = vst [vmem:[%s200 + $0xdf0] sm:$0xff] %v1598
        %2206 = vst [vmem:[%s200 + $0xdf8] sm:$0xff] %v1726
        %2207 = vst [vmem:[%s200 + $0xe00] sm:$0xff] %v1359
        %2208 = vst [vmem:[%s200 + $0xe08] sm:$0xff] %v1487
        %2209 = vst [vmem:[%s200 + $0xe10] sm:$0xff] %v1615
        %2210 = vst [vmem:[%s200 + $0xe18] sm:$0xff] %v1743
        %2211 = vst [vmem:[%s200 + $0xe20] sm:$0xff] %v1360
        %2212 = vst [vmem:[%s200 + $0xe28] sm:$0xff] %v1488
        %2213 = vst [vmem:[%s200 + $0xe30] sm:$0xff] %v1616
        %2214 = vst [vmem:[%s200 + $0xe38] sm:$0xff] %v1744
        %2215 = vst [vmem:[%s200 + $0xe40] sm:$0xff] %v1361
        %2216 = vst [vmem:[%s200 + $0xe48] sm:$0xff] %v1489
        %2217 = vst [vmem:[%s200 + $0xe50] sm:$0xff] %v1617
        %2218 = vst [vmem:[%s200 + $0xe58] sm:$0xff] %v1745
        %2219 = vst [vmem:[%s200 + $0xe60] sm:$0xff] %v1362
        %2220 = vst [vmem:[%s200 + $0xe68] sm:$0xff] %v1490
        %2221 = vst [vmem:[%s200 + $0xe70] sm:$0xff] %v1618
        %2222 = vst [vmem:[%s200 + $0xe78] sm:$0xff] %v1746
        %2223 = vst [vmem:[%s200 + $0xe80] sm:$0xff] %v1363
        %2224 = vst [vmem:[%s200 + $0xe88] sm:$0xff] %v1491
        %2225 = vst [vmem:[%s200 + $0xe90] sm:$0xff] %v1619
        %2226 = vst [vmem:[%s200 + $0xe98] sm:$0xff] %v1747
        %2227 = vst [vmem:[%s200 + $0xea0] sm:$0xff] %v1364
        %2228 = vst [vmem:[%s200 + $0xea8] sm:$0xff] %v1492
        %2229 = vst [vmem:[%s200 + $0xeb0] sm:$0xff] %v1620
        %2230 = vst [vmem:[%s200 + $0xeb8] sm:$0xff] %v1748
        %2231 = vst [vmem:[%s200 + $0xec0] sm:$0xff] %v1365
        %2232 = vst [vmem:[%s200 + $0xec8] sm:$0xff] %v1493
        %2233 = vst [vmem:[%s200 + $0xed0] sm:$0xff] %v1621
        %2234 = vst [vmem:[%s200 + $0xed8] sm:$0xff] %v1749
        %2235 = vst [vmem:[%s200 + $0xee0] sm:$0xff] %v1366
        %2236 = vst [vmem:[%s200 + $0xee8] sm:$0xff] %v1494
        %2237 = vst [vmem:[%s200 + $0xef0] sm:$0xff] %v1622
        %2238 = vst [vmem:[%s200 + $0xef8] sm:$0xff] %v1750
        %2239 = vst [vmem:[%s200 + $0xf00] sm:$0xff] %v1367
        %2240 = vst [vmem:[%s200 + $0xf08] sm:$0xff] %v1495
        %2241 = vst [vmem:[%s200 + $0xf10] sm:$0xff] %v1623
        %2242 = vst [vmem:[%s200 + $0xf18] sm:$0xff] %v1751
        %2243 = vst [vmem:[%s200 + $0xf20] sm:$0xff] %v1368
        %2244 = vst [vmem:[%s200 + $0xf28] sm:$0xff] %v1496
        %2245 = vst [vmem:[%s200 + $0xf30] sm:$0xff] %v1624
        %2246 = vst [vmem:[%s200 + $0xf38] sm:$0xff] %v1752
        %2247 = vst [vmem:[%s200 + $0xf40] sm:$0xff] %v1369
        %2248 = vst [vmem:[%s200 + $0xf48] sm:$0xff] %v1497
        %2249 = vst [vmem:[%s200 + $0xf50] sm:$0xff] %v1625
        %2250 = vst [vmem:[%s200 + $0xf58] sm:$0xff] %v1753
        %2251 = vst [vmem:[%s200 + $0xf60] sm:$0xff] %v1370
        %2252 = vst [vmem:[%s200 + $0xf68] sm:$0xff] %v1498
        %2253 = vst [vmem:[%s200 + $0xf70] sm:$0xff] %v1626
        %2254 = vst [vmem:[%s200 + $0xf78] sm:$0xff] %v1754
        %2255 = vst [vmem:[%s200 + $0xf80] sm:$0xff] %v1371
        %2256 = vst [vmem:[%s200 + $0xf88] sm:$0xff] %v1499
        %2257 = vst [vmem:[%s200 + $0xf90] sm:$0xff] %v1627
        %2258 = vst [vmem:[%s200 + $0xf98] sm:$0xff] %v1755
        %2259 = vst [vmem:[%s200 + $0xfa0] sm:$0xff] %v1372
        %2260 = vst [vmem:[%s200 + $0xfa8] sm:$0xff] %v1500
        %2261 = vst [vmem:[%s200 + $0xfb0] sm:$0xff] %v1628
        %2262 = vst [vmem:[%s200 + $0xfb8] sm:$0xff] %v1756
        %2263 = vst [vmem:[%s200 + $0xfc0] sm:$0xff] %v1373
        %2264 = vst [vmem:[%s200 + $0xfc8] sm:$0xff] %v1501
        %2265 = vst [vmem:[%s200 + $0xfd0] sm:$0xff] %v1629
        %2266 = vst [vmem:[%s200 + $0xfd8] sm:$0xff] %v1757
        %2267 = vst [vmem:[%s200 + $0xfe0] sm:$0xff] %v1374
        %2268 = vst [vmem:[%s200 + $0xfe8] sm:$0xff] %v1502
        %2269 = vst [vmem:[%s200 + $0xff0] sm:$0xff] %v1630
        %2270 = vst [vmem:[%s200 + $0xff8] sm:$0xff] %v1758
        %s2271 = sand.u32 %s76, 1
        %s2272 = sand.u32 %s76, 1
        %s2273 = smul.addr %s2272, 4096
        %s2274 = scalar_lea.vmem [#allocation4], %s2273
        // Predicated region
        $region29: #{tpu_custom_call.1} parent=23 // pred_check
          %p2275 = pneg %p86
        $region30: #{tpu_custom_call.1} parent=23 // pred_check_branch
          %2277 = sbr.rel (%p2275) target = $region32
        $region31: #{tpu_custom_call.1} parent=23 // pred_region
          %s2278 = smul.u32 2, %s20
          %s2279 = smul.u32 64, %s21
          %s2280 = smul.u32 4, %s22
          %s2281 = ssub.s32 80, %s2279
          %p2282 = scmp.lt.s32.totalorder %s2281, 64
          %s2283 = scalar_select %p2282, %s2281, 64
          %s2284 = smul.u32 256, %s2283
          %s2285 = ssub.s32 5, %s2280
          %p2286 = scmp.lt.s32.totalorder %s2285, 4
          %s2287 = scalar_select %p2286, %s2285, 4
          %s2288 = smul.u32 %s2284, %s2287
          %p2289 = scmp.ne.s32.totalorder 0, %s2288
          %s2290 = smul.addr %s2279, 5
          %s2291 = sadd.s32 %s2280, %s2290
          %s2292 = smul.addr %s2278, 400
          %s2293 = sadd.s32 %s2291, %s2292
          %s2294 = smul.addr %s2293, 8
          %s2295 = scalar_lea.vmem %s1, %s2294
          %s2296 = smul.u32 %s2287, 8
          // Predicated region
          $region33: #{tpu_custom_call.1} parent=31 // pred_check
            %p2297 = pneg %p2289
          $region34: #{tpu_custom_call.1} parent=31 // pred_check_branch
            %2299 = sbr.rel (%p2297) target = $region36
          $region35: #{tpu_custom_call.1} parent=31 // pred_region
            %p2300 = scmp.lt.u32.totalorder %s2296, 8
            %p2301 = pneg %p2300
            // Predicated region
            $region37: #{tpu_custom_call.1} parent=35 // pred_check
              _
            $region38: #{tpu_custom_call.1} parent=35 // pred_check_branch
              %2303 = sbr.rel (%p2300) target = $region40
            $region39: #{tpu_custom_call.1} parent=35 // pred_region
              %s2480 = sand.u32 %s2296, 7
              %p2481 = scmp.eq.s32.totalorder %s2480, 0
              // Predicated region
              $region59: #{tpu_custom_call.1} parent=39 // pred_check
                %p2482 = pneg %p2481
              $region60: #{tpu_custom_call.1} parent=39 // pred_check_branch
                %2484 = sbr.rel (%p2482) target = $region62
              $region61: #{tpu_custom_call.1} parent=39 // pred_region
                %s2485 = sshrl.u32 %s2296, 3
                %s2486 = sshrl.u32 %s2283, 3
                %s2487 = sshrl.u32 %s2485, 2
                %s2488 = smul.u32 %s2486, %s2487
                // While loop
                $region63: #{tpu_custom_call.1} parent=61 // loop_pre_header
                  _
                $region64: #{tpu_custom_call.1} parent=61 // loop_header
                  %s2492 = sphi 0, %s2494
                  %p2493 = scmp.ge.s32.totalorder %s2492, %s2488
                  %s2497 = sphi 0, %s2635
                  %s2498 = sphi 0, %s2631
                  %s2499 = sphi %s2274, %s2642
                  %s2500 = sphi %s2295, %s2643
                $region65: #{tpu_custom_call.1} parent=61 // loop_header_branch
                  %2496 = sbr.rel (%p2493) target = $region69
                $region66: #{tpu_custom_call.1} parent=61 // loop_body
                  %v2501 = vld [vmem:[%s2499] sm:$0xff]
                  %2502 = vst [vmem:[%s2500] sm:$0xff] %v2501
                  %v2503 = vld [vmem:[%s2499 + $0x8] sm:$0xff]
                  %2504 = vst [vmem:[%s2500 + $0x8] sm:$0xff] %v2503
                  %v2505 = vld [vmem:[%s2499 + $0x10] sm:$0xff]
                  %2506 = vst [vmem:[%s2500 + $0x10] sm:$0xff] %v2505
                  %v2507 = vld [vmem:[%s2499 + $0x18] sm:$0xff]
                  %2508 = vst [vmem:[%s2500 + $0x18] sm:$0xff] %v2507
                  %v2509 = vld [vmem:[%s2499 + $0x20] sm:$0xff]
                  %2510 = vst [vmem:[%s2500 + $0x28] sm:$0xff] %v2509
                  %v2511 = vld [vmem:[%s2499 + $0x28] sm:$0xff]
                  %2512 = vst [vmem:[%s2500 + $0x30] sm:$0xff] %v2511
                  %v2513 = vld [vmem:[%s2499 + $0x30] sm:$0xff]
                  %2514 = vst [vmem:[%s2500 + $0x38] sm:$0xff] %v2513
                  %v2515 = vld [vmem:[%s2499 + $0x38] sm:$0xff]
                  %2516 = vst [vmem:[%s2500 + $0x40] sm:$0xff] %v2515
                  %v2517 = vld [vmem:[%s2499 + $0x40] sm:$0xff]
                  %2518 = vst [vmem:[%s2500 + $0x50] sm:$0xff] %v2517
                  %v2519 = vld [vmem:[%s2499 + $0x48] sm:$0xff]
                  %2520 = vst [vmem:[%s2500 + $0x58] sm:$0xff] %v2519
                  %v2521 = vld [vmem:[%s2499 + $0x50] sm:$0xff]
                  %2522 = vst [vmem:[%s2500 + $0x60] sm:$0xff] %v2521
                  %v2523 = vld [vmem:[%s2499 + $0x58] sm:$0xff]
                  %2524 = vst [vmem:[%s2500 + $0x68] sm:$0xff] %v2523
                  %v2525 = vld [vmem:[%s2499 + $0x60] sm:$0xff]
                  %2526 = vst [vmem:[%s2500 + $0x78] sm:$0xff] %v2525
                  %v2527 = vld [vmem:[%s2499 + $0x68] sm:$0xff]
                  %2528 = vst [vmem:[%s2500 + $0x80] sm:$0xff] %v2527
                  %v2529 = vld [vmem:[%s2499 + $0x70] sm:$0xff]
                  %2530 = vst [vmem:[%s2500 + $0x88] sm:$0xff] %v2529
                  %v2531 = vld [vmem:[%s2499 + $0x78] sm:$0xff]
                  %2532 = vst [vmem:[%s2500 + $0x90] sm:$0xff] %v2531
                  %v2533 = vld [vmem:[%s2499 + $0x80] sm:$0xff]
                  %2534 = vst [vmem:[%s2500 + $0xa0] sm:$0xff] %v2533
                  %v2535 = vld [vmem:[%s2499 + $0x88] sm:$0xff]
                  %2536 = vst [vmem:[%s2500 + $0xa8] sm:$0xff] %v2535
                  %v2537 = vld [vmem:[%s2499 + $0x90] sm:$0xff]
                  %2538 = vst [vmem:[%s2500 + $0xb0] sm:$0xff] %v2537
                  %v2539 = vld [vmem:[%s2499 + $0x98] sm:$0xff]
                  %2540 = vst [vmem:[%s2500 + $0xb8] sm:$0xff] %v2539
                  %v2541 = vld [vmem:[%s2499 + $0xa0] sm:$0xff]
                  %2542 = vst [vmem:[%s2500 + $0xc8] sm:$0xff] %v2541
                  %v2543 = vld [vmem:[%s2499 + $0xa8] sm:$0xff]
                  %2544 = vst [vmem:[%s2500 + $0xd0] sm:$0xff] %v2543
                  %v2545 = vld [vmem:[%s2499 + $0xb0] sm:$0xff]
                  %2546 = vst [vmem:[%s2500 + $0xd8] sm:$0xff] %v2545
                  %v2547 = vld [vmem:[%s2499 + $0xb8] sm:$0xff]
                  %2548 = vst [vmem:[%s2500 + $0xe0] sm:$0xff] %v2547
                  %v2549 = vld [vmem:[%s2499 + $0xc0] sm:$0xff]
                  %2550 = vst [vmem:[%s2500 + $0xf0] sm:$0xff] %v2549
                  %v2551 = vld [vmem:[%s2499 + $0xc8] sm:$0xff]
                  %2552 = vst [vmem:[%s2500 + $0xf8] sm:$0xff] %v2551
                  %v2553 = vld [vmem:[%s2499 + $0xd0] sm:$0xff]
                  %2554 = vst [vmem:[%s2500 + $0x100] sm:$0xff] %v2553
                  %v2555 = vld [vmem:[%s2499 + $0xd8] sm:$0xff]
                  %2556 = vst [vmem:[%s2500 + $0x108] sm:$0xff] %v2555
                  %v2557 = vld [vmem:[%s2499 + $0xe0] sm:$0xff]
                  %2558 = vst [vmem:[%s2500 + $0x118] sm:$0xff] %v2557
                  %v2559 = vld [vmem:[%s2499 + $0xe8] sm:$0xff]
                  %2560 = vst [vmem:[%s2500 + $0x120] sm:$0xff] %v2559
                  %v2561 = vld [vmem:[%s2499 + $0xf0] sm:$0xff]
                  %2562 = vst [vmem:[%s2500 + $0x128] sm:$0xff] %v2561
                  %v2563 = vld [vmem:[%s2499 + $0xf8] sm:$0xff]
                  %2564 = vst [vmem:[%s2500 + $0x130] sm:$0xff] %v2563
                  %v2565 = vld [vmem:[%s2499 + $0x800] sm:$0xff]
                  %2566 = vst [vmem:[%s2500 + $0xc80] sm:$0xff] %v2565
                  %v2567 = vld [vmem:[%s2499 + $0x808] sm:$0xff]
                  %2568 = vst [vmem:[%s2500 + $0xc88] sm:$0xff] %v2567
                  %v2569 = vld [vmem:[%s2499 + $0x810] sm:$0xff]
                  %2570 = vst [vmem:[%s2500 + $0xc90] sm:$0xff] %v2569
                  %v2571 = vld [vmem:[%s2499 + $0x818] sm:$0xff]
                  %2572 = vst [vmem:[%s2500 + $0xc98] sm:$0xff] %v2571
                  %v2573 = vld [vmem:[%s2499 + $0x820] sm:$0xff]
                  %2574 = vst [vmem:[%s2500 + $0xca8] sm:$0xff] %v2573
                  %v2575 = vld [vmem:[%s2499 + $0x828] sm:$0xff]
                  %2576 = vst [vmem:[%s2500 + $0xcb0] sm:$0xff] %v2575
                  %v2577 = vld [vmem:[%s2499 + $0x830] sm:$0xff]
                  %2578 = vst [vmem:[%s2500 + $0xcb8] sm:$0xff] %v2577
                  %v2579 = vld [vmem:[%s2499 + $0x838] sm:$0xff]
                  %2580 = vst [vmem:[%s2500 + $0xcc0] sm:$0xff] %v2579
                  %v2581 = vld [vmem:[%s2499 + $0x840] sm:$0xff]
                  %2582 = vst [vmem:[%s2500 + $0xcd0] sm:$0xff] %v2581
                  %v2583 = vld [vmem:[%s2499 + $0x848] sm:$0xff]
                  %2584 = vst [vmem:[%s2500 + $0xcd8] sm:$0xff] %v2583
                  %v2585 = vld [vmem:[%s2499 + $0x850] sm:$0xff]
                  %2586 = vst [vmem:[%s2500 + $0xce0] sm:$0xff] %v2585
                  %v2587 = vld [vmem:[%s2499 + $0x858] sm:$0xff]
                  %2588 = vst [vmem:[%s2500 + $0xce8] sm:$0xff] %v2587
                  %v2589 = vld [vmem:[%s2499 + $0x860] sm:$0xff]
                  %2590 = vst [vmem:[%s2500 + $0xcf8] sm:$0xff] %v2589
                  %v2591 = vld [vmem:[%s2499 + $0x868] sm:$0xff]
                  %2592 = vst [vmem:[%s2500 + $0xd00] sm:$0xff] %v2591
                  %v2593 = vld [vmem:[%s2499 + $0x870] sm:$0xff]
                  %2594 = vst [vmem:[%s2500 + $0xd08] sm:$0xff] %v2593
                  %v2595 = vld [vmem:[%s2499 + $0x878] sm:$0xff]
                  %2596 = vst [vmem:[%s2500 + $0xd10] sm:$0xff] %v2595
                  %v2597 = vld [vmem:[%s2499 + $0x880] sm:$0xff]
                  %2598 = vst [vmem:[%s2500 + $0xd20] sm:$0xff] %v2597
                  %v2599 = vld [vmem:[%s2499 + $0x888] sm:$0xff]
                  %2600 = vst [vmem:[%s2500 + $0xd28] sm:$0xff] %v2599
                  %v2601 = vld [vmem:[%s2499 + $0x890] sm:$0xff]
                  %2602 = vst [vmem:[%s2500 + $0xd30] sm:$0xff] %v2601
                  %v2603 = vld [vmem:[%s2499 + $0x898] sm:$0xff]
                  %2604 = vst [vmem:[%s2500 + $0xd38] sm:$0xff] %v2603
                  %v2605 = vld [vmem:[%s2499 + $0x8a0] sm:$0xff]
                  %2606 = vst [vmem:[%s2500 + $0xd48] sm:$0xff] %v2605
                  %v2607 = vld [vmem:[%s2499 + $0x8a8] sm:$0xff]
                  %2608 = vst [vmem:[%s2500 + $0xd50] sm:$0xff] %v2607
                  %v2609 = vld [vmem:[%s2499 + $0x8b0] sm:$0xff]
                  %2610 = vst [vmem:[%s2500 + $0xd58] sm:$0xff] %v2609
                  %v2611 = vld [vmem:[%s2499 + $0x8b8] sm:$0xff]
                  %2612 = vst [vmem:[%s2500 + $0xd60] sm:$0xff] %v2611
                  %v2613 = vld [vmem:[%s2499 + $0x8c0] sm:$0xff]
                  %2614 = vst [vmem:[%s2500 + $0xd70] sm:$0xff] %v2613
                  %v2615 = vld [vmem:[%s2499 + $0x8c8] sm:$0xff]
                  %2616 = vst [vmem:[%s2500 + $0xd78] sm:$0xff] %v2615
                  %v2617 = vld [vmem:[%s2499 + $0x8d0] sm:$0xff]
                  %2618 = vst [vmem:[%s2500 + $0xd80] sm:$0xff] %v2617
                  %v2619 = vld [vmem:[%s2499 + $0x8d8] sm:$0xff]
                  %2620 = vst [vmem:[%s2500 + $0xd88] sm:$0xff] %v2619
                  %v2621 = vld [vmem:[%s2499 + $0x8e0] sm:$0xff]
                  %2622 = vst [vmem:[%s2500 + $0xd98] sm:$0xff] %v2621
                  %v2623 = vld [vmem:[%s2499 + $0x8e8] sm:$0xff]
                  %2624 = vst [vmem:[%s2500 + $0xda0] sm:$0xff] %v2623
                  %v2625 = vld [vmem:[%s2499 + $0x8f0] sm:$0xff]
                  %2626 = vst [vmem:[%s2500 + $0xda8] sm:$0xff] %v2625
                  %v2627 = vld [vmem:[%s2499 + $0x8f8] sm:$0xff]
                  %2628 = vst [vmem:[%s2500 + $0xdb0] sm:$0xff] %v2627
                  %s2629 = sadd.s32 1, %s2498
                  %p2630 = scmp.ge.s32.totalorder %s2629, %s2487
                  %s2631 = scalar_select %p2630, 0, %s2629
                  %s2632 = sadd.s32 1, %s2497
                  %s2633 = scalar_select %p2630, %s2632, %s2497
                  %p2634 = scmp.ge.s32.totalorder %s2633, %s2486
                  %s2635 = scalar_select %p2634, 0, %s2633
                  %s2636 = smul.u32 %s2635, 256
                  %s2637 = smul.u32 %s2631, 32
                  %s2638 = sadd.s32 %s2636, %s2637
                  %s2639 = smul.u32 %s2635, 320
                  %s2640 = smul.u32 %s2631, 32
                  %s2641 = sadd.s32 %s2639, %s2640
                  %s2642 = scalar_lea.vmem %s2274, %s2638 [#allocation4]
                  %s2643 = scalar_lea.vmem %s2295, %s2641
                $region67: #{tpu_custom_call.1} parent=61 // loop_footer
                  %s2494 = sadd.s32 %s2492, 1
                $region68: #{tpu_custom_call.1} parent=61 // loop_footer_branch
                  %2491 = sbr.rel target = $region64
                $region69: #{tpu_custom_call.1} parent=61 // loop_exit
                  _
                %s2644 = sshrl.u32 %s2485, 2
                %s2645 = sshrl.u32 %s2283, 3
                %s2646 = sand.u32 %s2283, 7
                %s2647 = smul.u32 %s2645, 8
                %s2648 = smul.u32 32, %s2647
                %s2649 = scalar_lea.vmem %s2274, %s2648 [#allocation4]
                %s2650 = smul.u32 40, %s2647
                %s2651 = scalar_lea.vmem %s2295, %s2650
                %s2652 = smul.u32 %s2646, %s2644
                // While loop
                $region70: #{tpu_custom_call.1} parent=61 // loop_pre_header
                  _
                $region71: #{tpu_custom_call.1} parent=61 // loop_header
                  %s2656 = sphi 0, %s2658
                  %p2657 = scmp.ge.s32.totalorder %s2656, %s2652
                  %s2661 = sphi 0, %s2687
                  %s2662 = sphi 0, %s2683
                  %s2663 = sphi %s2649, %s2694
                  %s2664 = sphi %s2651, %s2695
                $region72: #{tpu_custom_call.1} parent=61 // loop_header_branch
                  %2660 = sbr.rel (%p2657) target = $region76
                $region73: #{tpu_custom_call.1} parent=61 // loop_body
                  %v2665 = vld [vmem:[%s2663] sm:$0xff]
                  %2666 = vst [vmem:[%s2664] sm:$0xff] %v2665
                  %v2667 = vld [vmem:[%s2663 + $0x8] sm:$0xff]
                  %2668 = vst [vmem:[%s2664 + $0x8] sm:$0xff] %v2667
                  %v2669 = vld [vmem:[%s2663 + $0x10] sm:$0xff]
                  %2670 = vst [vmem:[%s2664 + $0x10] sm:$0xff] %v2669
                  %v2671 = vld [vmem:[%s2663 + $0x18] sm:$0xff]
                  %2672 = vst [vmem:[%s2664 + $0x18] sm:$0xff] %v2671
                  %v2673 = vld [vmem:[%s2663 + $0x800] sm:$0xff]
                  %2674 = vst [vmem:[%s2664 + $0xc80] sm:$0xff] %v2673
                  %v2675 = vld [vmem:[%s2663 + $0x808] sm:$0xff]
                  %2676 = vst [vmem:[%s2664 + $0xc88] sm:$0xff] %v2675
                  %v2677 = vld [vmem:[%s2663 + $0x810] sm:$0xff]
                  %2678 = vst [vmem:[%s2664 + $0xc90] sm:$0xff] %v2677
                  %v2679 = vld [vmem:[%s2663 + $0x818] sm:$0xff]
                  %2680 = vst [vmem:[%s2664 + $0xc98] sm:$0xff] %v2679
                  %s2681 = sadd.s32 1, %s2662
                  %p2682 = scmp.ge.s32.totalorder %s2681, %s2644
                  %s2683 = scalar_select %p2682, 0, %s2681
                  %s2684 = sadd.s32 1, %s2661
                  %s2685 = scalar_select %p2682, %s2684, %s2661
                  %p2686 = scmp.ge.s32.totalorder %s2685, %s2646
                  %s2687 = scalar_select %p2686, 0, %s2685
                  %s2688 = smul.u32 %s2687, 32
                  %s2689 = smul.u32 %s2683, 32
                  %s2690 = sadd.s32 %s2688, %s2689
                  %s2691 = smul.u32 %s2687, 40
                  %s2692 = smul.u32 %s2683, 32
                  %s2693 = sadd.s32 %s2691, %s2692
                  %s2694 = scalar_lea.vmem %s2649, %s2690 [#allocation4]
                  %s2695 = scalar_lea.vmem %s2651, %s2693
                $region74: #{tpu_custom_call.1} parent=61 // loop_footer
                  %s2658 = sadd.s32 %s2656, 1
                $region75: #{tpu_custom_call.1} parent=61 // loop_footer_branch
                  %2655 = sbr.rel target = $region71
                $region76: #{tpu_custom_call.1} parent=61 // loop_exit
                  _
                %s2696 = sshrl.u32 %s2485, 2
                %s2697 = sand.u32 %s2485, 3
                %s2698 = smul.u32 %s2696, 4
                %s2699 = smul.u32 128, %s2698
                %s2700 = sshra.s32 %s2699, 4
                %s2701 = scalar_lea.vmem %s2274, %s2700 [#allocation4]
                %s2702 = smul.u32 128, %s2698
                %s2703 = sshra.s32 %s2702, 4
                %s2704 = scalar_lea.vmem %s2295, %s2703
                %s2705 = smul.u32 %s2283, %s2697
                // While loop
                $region77: #{tpu_custom_call.1} parent=61 // loop_pre_header
                  _
                $region78: #{tpu_custom_call.1} parent=61 // loop_header
                  %s2709 = sphi 0, %s2711
                  %p2710 = scmp.ge.s32.totalorder %s2709, %s2705
                  %s2714 = sphi 0, %s2728
                  %s2715 = sphi 0, %s2724
                  %s2716 = sphi %s2701, %s2735
                  %s2717 = sphi %s2704, %s2736
                $region79: #{tpu_custom_call.1} parent=61 // loop_header_branch
                  %2713 = sbr.rel (%p2710) target = $region83
                $region80: #{tpu_custom_call.1} parent=61 // loop_body
                  %v2718 = vld [vmem:[%s2716] sm:$0xff]
                  %2719 = vst [vmem:[%s2717] sm:$0xff] %v2718
                  %v2720 = vld [vmem:[%s2716 + $0x800] sm:$0xff]
                  %2721 = vst [vmem:[%s2717 + $0xc80] sm:$0xff] %v2720
                  %s2722 = sadd.s32 1, %s2715
                  %p2723 = scmp.ge.s32.totalorder %s2722, %s2697
                  %s2724 = scalar_select %p2723, 0, %s2722
                  %s2725 = sadd.s32 1, %s2714
                  %s2726 = scalar_select %p2723, %s2725, %s2714
                  %p2727 = scmp.ge.s32.totalorder %s2726, %s2283
                  %s2728 = scalar_select %p2727, 0, %s2726
                  %s2729 = smul.u32 %s2728, 32
                  %s2730 = smul.u32 %s2724, 8
                  %s2731 = sadd.s32 %s2729, %s2730
                  %s2732 = smul.u32 %s2728, 40
                  %s2733 = smul.u32 %s2724, 8
                  %s2734 = sadd.s32 %s2732, %s2733
                  %s2735 = scalar_lea.vmem %s2701, %s2731 [#allocation4]
                  %s2736 = scalar_lea.vmem %s2704, %s2734
                $region81: #{tpu_custom_call.1} parent=61 // loop_footer
                  %s2711 = sadd.s32 %s2709, 1
                $region82: #{tpu_custom_call.1} parent=61 // loop_footer_branch
                  %2708 = sbr.rel target = $region78
                $region83: #{tpu_custom_call.1} parent=61 // loop_exit
                  _
              $region62: #{tpu_custom_call.1} parent=39 // pred_fallthru
                _
              %p2737 = pneg %p2481
              // Predicated region
              $region84: #{tpu_custom_call.1} parent=39 // pred_check
                _
              $region85: #{tpu_custom_call.1} parent=39 // pred_check_branch
                %2739 = sbr.rel (%p2481) target = $region87
              $region86: #{tpu_custom_call.1} parent=39 // pred_region
                %s2740 = sand.u32 %s2296, 7
                %s2741 = ssub.s32 %s2296, %s2740
                %s2742 = scalar_lea.vmem %s2274, %s2741 [#allocation4]
                %s2743 = ssub.s32 %s2296, %s2740
                %s2744 = scalar_lea.vmem %s2295, %s2743
                %s2745 = sshrl.u32 %s2296, 3
                %s2746 = sshrl.u32 %s2283, 3
                %s2747 = sshrl.u32 %s2745, 2
                %s2748 = smul.u32 %s2746, %s2747
                // While loop
                $region88: #{tpu_custom_call.1} parent=86 // loop_pre_header
                  _
                $region89: #{tpu_custom_call.1} parent=86 // loop_header
                  %s2752 = sphi 0, %s2754
                  %p2753 = scmp.ge.s32.totalorder %s2752, %s2748
                  %s2757 = sphi 0, %s2895
                  %s2758 = sphi 0, %s2891
                  %s2759 = sphi %s2274, %s2902
                  %s2760 = sphi %s2295, %s2903
                $region90: #{tpu_custom_call.1} parent=86 // loop_header_branch
                  %2756 = sbr.rel (%p2753) target = $region94
                $region91: #{tpu_custom_call.1} parent=86 // loop_body
                  %v2761 = vld [vmem:[%s2759] sm:$0xff]
                  %2762 = vst [vmem:[%s2760] sm:$0xff] %v2761
                  %v2763 = vld [vmem:[%s2759 + $0x8] sm:$0xff]
                  %2764 = vst [vmem:[%s2760 + $0x8] sm:$0xff] %v2763
                  %v2765 = vld [vmem:[%s2759 + $0x10] sm:$0xff]
                  %2766 = vst [vmem:[%s2760 + $0x10] sm:$0xff] %v2765
                  %v2767 = vld [vmem:[%s2759 + $0x18] sm:$0xff]
                  %2768 = vst [vmem:[%s2760 + $0x18] sm:$0xff] %v2767
                  %v2769 = vld [vmem:[%s2759 + $0x20] sm:$0xff]
                  %2770 = vst [vmem:[%s2760 + $0x28] sm:$0xff] %v2769
                  %v2771 = vld [vmem:[%s2759 + $0x28] sm:$0xff]
                  %2772 = vst [vmem:[%s2760 + $0x30] sm:$0xff] %v2771
                  %v2773 = vld [vmem:[%s2759 + $0x30] sm:$0xff]
                  %2774 = vst [vmem:[%s2760 + $0x38] sm:$0xff] %v2773
                  %v2775 = vld [vmem:[%s2759 + $0x38] sm:$0xff]
                  %2776 = vst [vmem:[%s2760 + $0x40] sm:$0xff] %v2775
                  %v2777 = vld [vmem:[%s2759 + $0x40] sm:$0xff]
                  %2778 = vst [vmem:[%s2760 + $0x50] sm:$0xff] %v2777
                  %v2779 = vld [vmem:[%s2759 + $0x48] sm:$0xff]
                  %2780 = vst [vmem:[%s2760 + $0x58] sm:$0xff] %v2779
                  %v2781 = vld [vmem:[%s2759 + $0x50] sm:$0xff]
                  %2782 = vst [vmem:[%s2760 + $0x60] sm:$0xff] %v2781
                  %v2783 = vld [vmem:[%s2759 + $0x58] sm:$0xff]
                  %2784 = vst [vmem:[%s2760 + $0x68] sm:$0xff] %v2783
                  %v2785 = vld [vmem:[%s2759 + $0x60] sm:$0xff]
                  %2786 = vst [vmem:[%s2760 + $0x78] sm:$0xff] %v2785
                  %v2787 = vld [vmem:[%s2759 + $0x68] sm:$0xff]
                  %2788 = vst [vmem:[%s2760 + $0x80] sm:$0xff] %v2787
                  %v2789 = vld [vmem:[%s2759 + $0x70] sm:$0xff]
                  %2790 = vst [vmem:[%s2760 + $0x88] sm:$0xff] %v2789
                  %v2791 = vld [vmem:[%s2759 + $0x78] sm:$0xff]
                  %2792 = vst [vmem:[%s2760 + $0x90] sm:$0xff] %v2791
                  %v2793 = vld [vmem:[%s2759 + $0x80] sm:$0xff]
                  %2794 = vst [vmem:[%s2760 + $0xa0] sm:$0xff] %v2793
                  %v2795 = vld [vmem:[%s2759 + $0x88] sm:$0xff]
                  %2796 = vst [vmem:[%s2760 + $0xa8] sm:$0xff] %v2795
                  %v2797 = vld [vmem:[%s2759 + $0x90] sm:$0xff]
                  %2798 = vst [vmem:[%s2760 + $0xb0] sm:$0xff] %v2797
                  %v2799 = vld [vmem:[%s2759 + $0x98] sm:$0xff]
                  %2800 = vst [vmem:[%s2760 + $0xb8] sm:$0xff] %v2799
                  %v2801 = vld [vmem:[%s2759 + $0xa0] sm:$0xff]
                  %2802 = vst [vmem:[%s2760 + $0xc8] sm:$0xff] %v2801
                  %v2803 = vld [vmem:[%s2759 + $0xa8] sm:$0xff]
                  %2804 = vst [vmem:[%s2760 + $0xd0] sm:$0xff] %v2803
                  %v2805 = vld [vmem:[%s2759 + $0xb0] sm:$0xff]
                  %2806 = vst [vmem:[%s2760 + $0xd8] sm:$0xff] %v2805
                  %v2807 = vld [vmem:[%s2759 + $0xb8] sm:$0xff]
                  %2808 = vst [vmem:[%s2760 + $0xe0] sm:$0xff] %v2807
                  %v2809 = vld [vmem:[%s2759 + $0xc0] sm:$0xff]
                  %2810 = vst [vmem:[%s2760 + $0xf0] sm:$0xff] %v2809
                  %v2811 = vld [vmem:[%s2759 + $0xc8] sm:$0xff]
                  %2812 = vst [vmem:[%s2760 + $0xf8] sm:$0xff] %v2811
                  %v2813 = vld [vmem:[%s2759 + $0xd0] sm:$0xff]
                  %2814 = vst [vmem:[%s2760 + $0x100] sm:$0xff] %v2813
                  %v2815 = vld [vmem:[%s2759 + $0xd8] sm:$0xff]
                  %2816 = vst [vmem:[%s2760 + $0x108] sm:$0xff] %v2815
                  %v2817 = vld [vmem:[%s2759 + $0xe0] sm:$0xff]
                  %2818 = vst [vmem:[%s2760 + $0x118] sm:$0xff] %v2817
                  %v2819 = vld [vmem:[%s2759 + $0xe8] sm:$0xff]
                  %2820 = vst [vmem:[%s2760 + $0x120] sm:$0xff] %v2819
                  %v2821 = vld [vmem:[%s2759 + $0xf0] sm:$0xff]
                  %2822 = vst [vmem:[%s2760 + $0x128] sm:$0xff] %v2821
                  %v2823 = vld [vmem:[%s2759 + $0xf8] sm:$0xff]
                  %2824 = vst [vmem:[%s2760 + $0x130] sm:$0xff] %v2823
                  %v2825 = vld [vmem:[%s2759 + $0x800] sm:$0xff]
                  %2826 = vst [vmem:[%s2760 + $0xc80] sm:$0xff] %v2825
                  %v2827 = vld [vmem:[%s2759 + $0x808] sm:$0xff]
                  %2828 = vst [vmem:[%s2760 + $0xc88] sm:$0xff] %v2827
                  %v2829 = vld [vmem:[%s2759 + $0x810] sm:$0xff]
                  %2830 = vst [vmem:[%s2760 + $0xc90] sm:$0xff] %v2829
                  %v2831 = vld [vmem:[%s2759 + $0x818] sm:$0xff]
                  %2832 = vst [vmem:[%s2760 + $0xc98] sm:$0xff] %v2831
                  %v2833 = vld [vmem:[%s2759 + $0x820] sm:$0xff]
                  %2834 = vst [vmem:[%s2760 + $0xca8] sm:$0xff] %v2833
                  %v2835 = vld [vmem:[%s2759 + $0x828] sm:$0xff]
                  %2836 = vst [vmem:[%s2760 + $0xcb0] sm:$0xff] %v2835
                  %v2837 = vld [vmem:[%s2759 + $0x830] sm:$0xff]
                  %2838 = vst [vmem:[%s2760 + $0xcb8] sm:$0xff] %v2837
                  %v2839 = vld [vmem:[%s2759 + $0x838] sm:$0xff]
                  %2840 = vst [vmem:[%s2760 + $0xcc0] sm:$0xff] %v2839
                  %v2841 = vld [vmem:[%s2759 + $0x840] sm:$0xff]
                  %2842 = vst [vmem:[%s2760 + $0xcd0] sm:$0xff] %v2841
                  %v2843 = vld [vmem:[%s2759 + $0x848] sm:$0xff]
                  %2844 = vst [vmem:[%s2760 + $0xcd8] sm:$0xff] %v2843
                  %v2845 = vld [vmem:[%s2759 + $0x850] sm:$0xff]
                  %2846 = vst [vmem:[%s2760 + $0xce0] sm:$0xff] %v2845
                  %v2847 = vld [vmem:[%s2759 + $0x858] sm:$0xff]
                  %2848 = vst [vmem:[%s2760 + $0xce8] sm:$0xff] %v2847
                  %v2849 = vld [vmem:[%s2759 + $0x860] sm:$0xff]
                  %2850 = vst [vmem:[%s2760 + $0xcf8] sm:$0xff] %v2849
                  %v2851 = vld [vmem:[%s2759 + $0x868] sm:$0xff]
                  %2852 = vst [vmem:[%s2760 + $0xd00] sm:$0xff] %v2851
                  %v2853 = vld [vmem:[%s2759 + $0x870] sm:$0xff]
                  %2854 = vst [vmem:[%s2760 + $0xd08] sm:$0xff] %v2853
                  %v2855 = vld [vmem:[%s2759 + $0x878] sm:$0xff]
                  %2856 = vst [vmem:[%s2760 + $0xd10] sm:$0xff] %v2855
                  %v2857 = vld [vmem:[%s2759 + $0x880] sm:$0xff]
                  %2858 = vst [vmem:[%s2760 + $0xd20] sm:$0xff] %v2857
                  %v2859 = vld [vmem:[%s2759 + $0x888] sm:$0xff]
                  %2860 = vst [vmem:[%s2760 + $0xd28] sm:$0xff] %v2859
                  %v2861 = vld [vmem:[%s2759 + $0x890] sm:$0xff]
                  %2862 = vst [vmem:[%s2760 + $0xd30] sm:$0xff] %v2861
                  %v2863 = vld [vmem:[%s2759 + $0x898] sm:$0xff]
                  %2864 = vst [vmem:[%s2760 + $0xd38] sm:$0xff] %v2863
                  %v2865 = vld [vmem:[%s2759 + $0x8a0] sm:$0xff]
                  %2866 = vst [vmem:[%s2760 + $0xd48] sm:$0xff] %v2865
                  %v2867 = vld [vmem:[%s2759 + $0x8a8] sm:$0xff]
                  %2868 = vst [vmem:[%s2760 + $0xd50] sm:$0xff] %v2867
                  %v2869 = vld [vmem:[%s2759 + $0x8b0] sm:$0xff]
                  %2870 = vst [vmem:[%s2760 + $0xd58] sm:$0xff] %v2869
                  %v2871 = vld [vmem:[%s2759 + $0x8b8] sm:$0xff]
                  %2872 = vst [vmem:[%s2760 + $0xd60] sm:$0xff] %v2871
                  %v2873 = vld [vmem:[%s2759 + $0x8c0] sm:$0xff]
                  %2874 = vst [vmem:[%s2760 + $0xd70] sm:$0xff] %v2873
                  %v2875 = vld [vmem:[%s2759 + $0x8c8] sm:$0xff]
                  %2876 = vst [vmem:[%s2760 + $0xd78] sm:$0xff] %v2875
                  %v2877 = vld [vmem:[%s2759 + $0x8d0] sm:$0xff]
                  %2878 = vst [vmem:[%s2760 + $0xd80] sm:$0xff] %v2877
                  %v2879 = vld [vmem:[%s2759 + $0x8d8] sm:$0xff]
                  %2880 = vst [vmem:[%s2760 + $0xd88] sm:$0xff] %v2879
                  %v2881 = vld [vmem:[%s2759 + $0x8e0] sm:$0xff]
                  %2882 = vst [vmem:[%s2760 + $0xd98] sm:$0xff] %v2881
                  %v2883 = vld [vmem:[%s2759 + $0x8e8] sm:$0xff]
                  %2884 = vst [vmem:[%s2760 + $0xda0] sm:$0xff] %v2883
                  %v2885 = vld [vmem:[%s2759 + $0x8f0] sm:$0xff]
                  %2886 = vst [vmem:[%s2760 + $0xda8] sm:$0xff] %v2885
                  %v2887 = vld [vmem:[%s2759 + $0x8f8] sm:$0xff]
                  %2888 = vst [vmem:[%s2760 + $0xdb0] sm:$0xff] %v2887
                  %s2889 = sadd.s32 1, %s2758
                  %p2890 = scmp.ge.s32.totalorder %s2889, %s2747
                  %s2891 = scalar_select %p2890, 0, %s2889
                  %s2892 = sadd.s32 1, %s2757
                  %s2893 = scalar_select %p2890, %s2892, %s2757
                  %p2894 = scmp.ge.s32.totalorder %s2893, %s2746
                  %s2895 = scalar_select %p2894, 0, %s2893
                  %s2896 = smul.u32 %s2895, 256
                  %s2897 = smul.u32 %s2891, 32
                  %s2898 = sadd.s32 %s2896, %s2897
                  %s2899 = smul.u32 %s2895, 320
                  %s2900 = smul.u32 %s2891, 32
                  %s2901 = sadd.s32 %s2899, %s2900
                  %s2902 = scalar_lea.vmem %s2274, %s2898 [#allocation4]
                  %s2903 = scalar_lea.vmem %s2295, %s2901
                $region92: #{tpu_custom_call.1} parent=86 // loop_footer
                  %s2754 = sadd.s32 %s2752, 1
                $region93: #{tpu_custom_call.1} parent=86 // loop_footer_branch
                  %2751 = sbr.rel target = $region89
                $region94: #{tpu_custom_call.1} parent=86 // loop_exit
                  _
                %s2904 = sshrl.u32 %s2745, 2
                %s2905 = sshrl.u32 %s2283, 3
                %s2906 = sand.u32 %s2283, 7
                %s2907 = smul.u32 %s2905, 8
                %s2908 = smul.u32 32, %s2907
                %s2909 = scalar_lea.vmem %s2274, %s2908 [#allocation4]
                %s2910 = smul.u32 40, %s2907
                %s2911 = scalar_lea.vmem %s2295, %s2910
                %s2912 = smul.u32 %s2906, %s2904
                // While loop
                $region95: #{tpu_custom_call.1} parent=86 // loop_pre_header
                  _
                $region96: #{tpu_custom_call.1} parent=86 // loop_header
                  %s2916 = sphi 0, %s2918
                  %p2917 = scmp.ge.s32.totalorder %s2916, %s2912
                  %s2921 = sphi 0, %s2947
                  %s2922 = sphi 0, %s2943
                  %s2923 = sphi %s2909, %s2954
                  %s2924 = sphi %s2911, %s2955
                $region97: #{tpu_custom_call.1} parent=86 // loop_header_branch
                  %2920 = sbr.rel (%p2917) target = $region101
                $region98: #{tpu_custom_call.1} parent=86 // loop_body
                  %v2925 = vld [vmem:[%s2923] sm:$0xff]
                  %2926 = vst [vmem:[%s2924] sm:$0xff] %v2925
                  %v2927 = vld [vmem:[%s2923 + $0x8] sm:$0xff]
                  %2928 = vst [vmem:[%s2924 + $0x8] sm:$0xff] %v2927
                  %v2929 = vld [vmem:[%s2923 + $0x10] sm:$0xff]
                  %2930 = vst [vmem:[%s2924 + $0x10] sm:$0xff] %v2929
                  %v2931 = vld [vmem:[%s2923 + $0x18] sm:$0xff]
                  %2932 = vst [vmem:[%s2924 + $0x18] sm:$0xff] %v2931
                  %v2933 = vld [vmem:[%s2923 + $0x800] sm:$0xff]
                  %2934 = vst [vmem:[%s2924 + $0xc80] sm:$0xff] %v2933
                  %v2935 = vld [vmem:[%s2923 + $0x808] sm:$0xff]
                  %2936 = vst [vmem:[%s2924 + $0xc88] sm:$0xff] %v2935
                  %v2937 = vld [vmem:[%s2923 + $0x810] sm:$0xff]
                  %2938 = vst [vmem:[%s2924 + $0xc90] sm:$0xff] %v2937
                  %v2939 = vld [vmem:[%s2923 + $0x818] sm:$0xff]
                  %2940 = vst [vmem:[%s2924 + $0xc98] sm:$0xff] %v2939
                  %s2941 = sadd.s32 1, %s2922
                  %p2942 = scmp.ge.s32.totalorder %s2941, %s2904
                  %s2943 = scalar_select %p2942, 0, %s2941
                  %s2944 = sadd.s32 1, %s2921
                  %s2945 = scalar_select %p2942, %s2944, %s2921
                  %p2946 = scmp.ge.s32.totalorder %s2945, %s2906
                  %s2947 = scalar_select %p2946, 0, %s2945
                  %s2948 = smul.u32 %s2947, 32
                  %s2949 = smul.u32 %s2943, 32
                  %s2950 = sadd.s32 %s2948, %s2949
                  %s2951 = smul.u32 %s2947, 40
                  %s2952 = smul.u32 %s2943, 32
                  %s2953 = sadd.s32 %s2951, %s2952
                  %s2954 = scalar_lea.vmem %s2909, %s2950 [#allocation4]
                  %s2955 = scalar_lea.vmem %s2911, %s2953
                $region99: #{tpu_custom_call.1} parent=86 // loop_footer
                  %s2918 = sadd.s32 %s2916, 1
                $region100: #{tpu_custom_call.1} parent=86 // loop_footer_branch
                  %2915 = sbr.rel target = $region96
                $region101: #{tpu_custom_call.1} parent=86 // loop_exit
                  _
                %s2956 = sshrl.u32 %s2745, 2
                %s2957 = sand.u32 %s2745, 3
                %s2958 = smul.u32 %s2956, 4
                %s2959 = smul.u32 128, %s2958
                %s2960 = sshra.s32 %s2959, 4
                %s2961 = scalar_lea.vmem %s2274, %s2960 [#allocation4]
                %s2962 = smul.u32 128, %s2958
                %s2963 = sshra.s32 %s2962, 4
                %s2964 = scalar_lea.vmem %s2295, %s2963
                %s2965 = smul.u32 %s2283, %s2957
                // While loop
                $region102: #{tpu_custom_call.1} parent=86 // loop_pre_header
                  _
                $region103: #{tpu_custom_call.1} parent=86 // loop_header
                  %s2969 = sphi 0, %s2971
                  %p2970 = scmp.ge.s32.totalorder %s2969, %s2965
                  %s2974 = sphi 0, %s2988
                  %s2975 = sphi 0, %s2984
                  %s2976 = sphi %s2961, %s2995
                  %s2977 = sphi %s2964, %s2996
                $region104: #{tpu_custom_call.1} parent=86 // loop_header_branch
                  %2973 = sbr.rel (%p2970) target = $region108
                $region105: #{tpu_custom_call.1} parent=86 // loop_body
                  %v2978 = vld [vmem:[%s2976] sm:$0xff]
                  %2979 = vst [vmem:[%s2977] sm:$0xff] %v2978
                  %v2980 = vld [vmem:[%s2976 + $0x800] sm:$0xff]
                  %2981 = vst [vmem:[%s2977 + $0xc80] sm:$0xff] %v2980
                  %s2982 = sadd.s32 1, %s2975
                  %p2983 = scmp.ge.s32.totalorder %s2982, %s2957
                  %s2984 = scalar_select %p2983, 0, %s2982
                  %s2985 = sadd.s32 1, %s2974
                  %s2986 = scalar_select %p2983, %s2985, %s2974
                  %p2987 = scmp.ge.s32.totalorder %s2986, %s2283
                  %s2988 = scalar_select %p2987, 0, %s2986
                  %s2989 = smul.u32 %s2988, 32
                  %s2990 = smul.u32 %s2984, 8
                  %s2991 = sadd.s32 %s2989, %s2990
                  %s2992 = smul.u32 %s2988, 40
                  %s2993 = smul.u32 %s2984, 8
                  %s2994 = sadd.s32 %s2992, %s2993
                  %s2995 = scalar_lea.vmem %s2961, %s2991 [#allocation4]
                  %s2996 = scalar_lea.vmem %s2964, %s2994
                $region106: #{tpu_custom_call.1} parent=86 // loop_footer
                  %s2971 = sadd.s32 %s2969, 1
                $region107: #{tpu_custom_call.1} parent=86 // loop_footer_branch
                  %2968 = sbr.rel target = $region103
                $region108: #{tpu_custom_call.1} parent=86 // loop_exit
                  _
                %s2997 = sshllo.u32 0, %s2740
                %s2998 = sshrl.u32 %s2283, 5
                // While loop
                $region109: #{tpu_custom_call.1} parent=86 // loop_pre_header
                  _
                $region110: #{tpu_custom_call.1} parent=86 // loop_header
                  %s3000 = sphi 0, %s3002
                  %p3001 = scmp.ge.s32.totalorder %s3000, %s2998
                  %s3005 = sphi 0, %s3138
                  %s3006 = sphi %s2742, %s3141
                  %s3007 = sphi %s2744, %s3142
                $region111: #{tpu_custom_call.1} parent=86 // loop_header_branch
                  %3004 = sbr.rel (%p3001) target = $region115
                $region112: #{tpu_custom_call.1} parent=86 // loop_body
                  %v3008 = vld [vmem:[%s3006] sm:%s2997]
                  %3009 = vst [vmem:[%s3007] sm:%s2997] %v3008
                  %v3010 = vld [vmem:[%s3006 + $0x20] sm:%s2997]
                  %3011 = vst [vmem:[%s3007 + $0x28] sm:%s2997] %v3010
                  %v3012 = vld [vmem:[%s3006 + $0x40] sm:%s2997]
                  %3013 = vst [vmem:[%s3007 + $0x50] sm:%s2997] %v3012
                  %v3014 = vld [vmem:[%s3006 + $0x60] sm:%s2997]
                  %3015 = vst [vmem:[%s3007 + $0x78] sm:%s2997] %v3014
                  %v3016 = vld [vmem:[%s3006 + $0x80] sm:%s2997]
                  %3017 = vst [vmem:[%s3007 + $0xa0] sm:%s2997] %v3016
                  %v3018 = vld [vmem:[%s3006 + $0xa0] sm:%s2997]
                  %3019 = vst [vmem:[%s3007 + $0xc8] sm:%s2997] %v3018
                  %v3020 = vld [vmem:[%s3006 + $0xc0] sm:%s2997]
                  %3021 = vst [vmem:[%s3007 + $0xf0] sm:%s2997] %v3020
                  %v3022 = vld [vmem:[%s3006 + $0xe0] sm:%s2997]
                  %3023 = vst [vmem:[%s3007 + $0x118] sm:%s2997] %v3022
                  %v3024 = vld [vmem:[%s3006 + $0x100] sm:%s2997]
                  %3025 = vst [vmem:[%s3007 + $0x140] sm:%s2997] %v3024
                  %v3026 = vld [vmem:[%s3006 + $0x120] sm:%s2997]
                  %3027 = vst [vmem:[%s3007 + $0x168] sm:%s2997] %v3026
                  %v3028 = vld [vmem:[%s3006 + $0x140] sm:%s2997]
                  %3029 = vst [vmem:[%s3007 + $0x190] sm:%s2997] %v3028
                  %v3030 = vld [vmem:[%s3006 + $0x160] sm:%s2997]
                  %3031 = vst [vmem:[%s3007 + $0x1b8] sm:%s2997] %v3030
                  %v3032 = vld [vmem:[%s3006 + $0x180] sm:%s2997]
                  %3033 = vst [vmem:[%s3007 + $0x1e0] sm:%s2997] %v3032
                  %v3034 = vld [vmem:[%s3006 + $0x1a0] sm:%s2997]
                  %3035 = vst [vmem:[%s3007 + $0x208] sm:%s2997] %v3034
                  %v3036 = vld [vmem:[%s3006 + $0x1c0] sm:%s2997]
                  %3037 = vst [vmem:[%s3007 + $0x230] sm:%s2997] %v3036
                  %v3038 = vld [vmem:[%s3006 + $0x1e0] sm:%s2997]
                  %3039 = vst [vmem:[%s3007 + $0x258] sm:%s2997] %v3038
                  %v3040 = vld [vmem:[%s3006 + $0x200] sm:%s2997]
                  %3041 = vst [vmem:[%s3007 + $0x280] sm:%s2997] %v3040
                  %v3042 = vld [vmem:[%s3006 + $0x220] sm:%s2997]
                  %3043 = vst [vmem:[%s3007 + $0x2a8] sm:%s2997] %v3042
                  %v3044 = vld [vmem:[%s3006 + $0x240] sm:%s2997]
                  %3045 = vst [vmem:[%s3007 + $0x2d0] sm:%s2997] %v3044
                  %v3046 = vld [vmem:[%s3006 + $0x260] sm:%s2997]
                  %3047 = vst [vmem:[%s3007 + $0x2f8] sm:%s2997] %v3046
                  %v3048 = vld [vmem:[%s3006 + $0x280] sm:%s2997]
                  %3049 = vst [vmem:[%s3007 + $0x320] sm:%s2997] %v3048
                  %v3050 = vld [vmem:[%s3006 + $0x2a0] sm:%s2997]
                  %3051 = vst [vmem:[%s3007 + $0x348] sm:%s2997] %v3050
                  %v3052 = vld [vmem:[%s3006 + $0x2c0] sm:%s2997]
                  %3053 = vst [vmem:[%s3007 + $0x370] sm:%s2997] %v3052
                  %v3054 = vld [vmem:[%s3006 + $0x2e0] sm:%s2997]
                  %3055 = vst [vmem:[%s3007 + $0x398] sm:%s2997] %v3054
                  %v3056 = vld [vmem:[%s3006 + $0x300] sm:%s2997]
                  %3057 = vst [vmem:[%s3007 + $0x3c0] sm:%s2997] %v3056
                  %v3058 = vld [vmem:[%s3006 + $0x320] sm:%s2997]
                  %3059 = vst [vmem:[%s3007 + $0x3e8] sm:%s2997] %v3058
                  %v3060 = vld [vmem:[%s3006 + $0x340] sm:%s2997]
                  %3061 = vst [vmem:[%s3007 + $0x410] sm:%s2997] %v3060
                  %v3062 = vld [vmem:[%s3006 + $0x360] sm:%s2997]
                  %3063 = vst [vmem:[%s3007 + $0x438] sm:%s2997] %v3062
                  %v3064 = vld [vmem:[%s3006 + $0x380] sm:%s2997]
                  %3065 = vst [vmem:[%s3007 + $0x460] sm:%s2997] %v3064
                  %v3066 = vld [vmem:[%s3006 + $0x3a0] sm:%s2997]
                  %3067 = vst [vmem:[%s3007 + $0x488] sm:%s2997] %v3066
                  %v3068 = vld [vmem:[%s3006 + $0x3c0] sm:%s2997]
                  %3069 = vst [vmem:[%s3007 + $0x4b0] sm:%s2997] %v3068
                  %v3070 = vld [vmem:[%s3006 + $0x3e0] sm:%s2997]
                  %3071 = vst [vmem:[%s3007 + $0x4d8] sm:%s2997] %v3070
                  %v3072 = vld [vmem:[%s3006 + $0x800] sm:%s2997]
                  %3073 = vst [vmem:[%s3007 + $0xc80] sm:%s2997] %v3072
                  %v3074 = vld [vmem:[%s3006 + $0x820] sm:%s2997]
                  %3075 = vst [vmem:[%s3007 + $0xca8] sm:%s2997] %v3074
                  %v3076 = vld [vmem:[%s3006 + $0x840] sm:%s2997]
                  %3077 = vst [vmem:[%s3007 + $0xcd0] sm:%s2997] %v3076
                  %v3078 = vld [vmem:[%s3006 + $0x860] sm:%s2997]
                  %3079 = vst [vmem:[%s3007 + $0xcf8] sm:%s2997] %v3078
                  %v3080 = vld [vmem:[%s3006 + $0x880] sm:%s2997]
                  %3081 = vst [vmem:[%s3007 + $0xd20] sm:%s2997] %v3080
                  %v3082 = vld [vmem:[%s3006 + $0x8a0] sm:%s2997]
                  %3083 = vst [vmem:[%s3007 + $0xd48] sm:%s2997] %v3082
                  %v3084 = vld [vmem:[%s3006 + $0x8c0] sm:%s2997]
                  %3085 = vst [vmem:[%s3007 + $0xd70] sm:%s2997] %v3084
                  %v3086 = vld [vmem:[%s3006 + $0x8e0] sm:%s2997]
                  %3087 = vst [vmem:[%s3007 + $0xd98] sm:%s2997] %v3086
                  %v3088 = vld [vmem:[%s3006 + $0x900] sm:%s2997]
                  %3089 = vst [vmem:[%s3007 + $0xdc0] sm:%s2997] %v3088
                  %v3090 = vld [vmem:[%s3006 + $0x920] sm:%s2997]
                  %3091 = vst [vmem:[%s3007 + $0xde8] sm:%s2997] %v3090
                  %v3092 = vld [vmem:[%s3006 + $0x940] sm:%s2997]
                  %3093 = vst [vmem:[%s3007 + $0xe10] sm:%s2997] %v3092
                  %v3094 = vld [vmem:[%s3006 + $0x960] sm:%s2997]
                  %3095 = vst [vmem:[%s3007 + $0xe38] sm:%s2997] %v3094
                  %v3096 = vld [vmem:[%s3006 + $0x980] sm:%s2997]
                  %3097 = vst [vmem:[%s3007 + $0xe60] sm:%s2997] %v3096
                  %v3098 = vld [vmem:[%s3006 + $0x9a0] sm:%s2997]
                  %3099 = vst [vmem:[%s3007 + $0xe88] sm:%s2997] %v3098
                  %v3100 = vld [vmem:[%s3006 + $0x9c0] sm:%s2997]
                  %3101 = vst [vmem:[%s3007 + $0xeb0] sm:%s2997] %v3100
                  %v3102 = vld [vmem:[%s3006 + $0x9e0] sm:%s2997]
                  %3103 = vst [vmem:[%s3007 + $0xed8] sm:%s2997] %v3102
                  %v3104 = vld [vmem:[%s3006 + $0xa00] sm:%s2997]
                  %3105 = vst [vmem:[%s3007 + $0xf00] sm:%s2997] %v3104
                  %v3106 = vld [vmem:[%s3006 + $0xa20] sm:%s2997]
                  %3107 = vst [vmem:[%s3007 + $0xf28] sm:%s2997] %v3106
                  %v3108 = vld [vmem:[%s3006 + $0xa40] sm:%s2997]
                  %3109 = vst [vmem:[%s3007 + $0xf50] sm:%s2997] %v3108
                  %v3110 = vld [vmem:[%s3006 + $0xa60] sm:%s2997]
                  %3111 = vst [vmem:[%s3007 + $0xf78] sm:%s2997] %v3110
                  %v3112 = vld [vmem:[%s3006 + $0xa80] sm:%s2997]
                  %3113 = vst [vmem:[%s3007 + $0xfa0] sm:%s2997] %v3112
                  %v3114 = vld [vmem:[%s3006 + $0xaa0] sm:%s2997]
                  %3115 = vst [vmem:[%s3007 + $0xfc8] sm:%s2997] %v3114
                  %v3116 = vld [vmem:[%s3006 + $0xac0] sm:%s2997]
                  %3117 = vst [vmem:[%s3007 + $0xff0] sm:%s2997] %v3116
                  %v3118 = vld [vmem:[%s3006 + $0xae0] sm:%s2997]
                  %3119 = vst [vmem:[%s3007 + $0x1018] sm:%s2997] %v3118
                  %v3120 = vld [vmem:[%s3006 + $0xb00] sm:%s2997]
                  %3121 = vst [vmem:[%s3007 + $0x1040] sm:%s2997] %v3120
                  %v3122 = vld [vmem:[%s3006 + $0xb20] sm:%s2997]
                  %3123 = vst [vmem:[%s3007 + $0x1068] sm:%s2997] %v3122
                  %v3124 = vld [vmem:[%s3006 + $0xb40] sm:%s2997]
                  %3125 = vst [vmem:[%s3007 + $0x1090] sm:%s2997] %v3124
                  %v3126 = vld [vmem:[%s3006 + $0xb60] sm:%s2997]
                  %3127 = vst [vmem:[%s3007 + $0x10b8] sm:%s2997] %v3126
                  %v3128 = vld [vmem:[%s3006 + $0xb80] sm:%s2997]
                  %3129 = vst [vmem:[%s3007 + $0x10e0] sm:%s2997] %v3128
                  %v3130 = vld [vmem:[%s3006 + $0xba0] sm:%s2997]
                  %3131 = vst [vmem:[%s3007 + $0x1108] sm:%s2997] %v3130
                  %v3132 = vld [vmem:[%s3006 + $0xbc0] sm:%s2997]
                  %3133 = vst [vmem:[%s3007 + $0x1130] sm:%s2997] %v3132
                  %v3134 = vld [vmem:[%s3006 + $0xbe0] sm:%s2997]
                  %3135 = vst [vmem:[%s3007 + $0x1158] sm:%s2997] %v3134
                  %s3136 = sadd.s32 1, %s3005
                  %p3137 = scmp.ge.s32.totalorder %s3136, %s2998
                  %s3138 = scalar_select %p3137, 0, %s3136
                  %s3139 = smul.u32 %s3138, 1024
                  %s3140 = smul.u32 %s3138, 1280
                  %s3141 = scalar_lea.vmem %s2742, %s3139 [#allocation4]
                  %s3142 = scalar_lea.vmem %s2744, %s3140
                $region113: #{tpu_custom_call.1} parent=86 // loop_footer
                  %s3002 = sadd.s32 %s3000, 1
                $region114: #{tpu_custom_call.1} parent=86 // loop_footer_branch
                  %2999 = sbr.rel target = $region110
                $region115: #{tpu_custom_call.1} parent=86 // loop_exit
                  _
                %s3143 = sshrl.u32 %s2283, 5
                %s3144 = sand.u32 %s2283, 31
                %s3145 = smul.u32 %s3143, 32
                %s3146 = smul.u32 32, %s3145
                %s3147 = scalar_lea.vmem %s2742, %s3146 [#allocation4]
                %s3148 = smul.u32 40, %s3145
                %s3149 = scalar_lea.vmem %s2744, %s3148
                // While loop
                $region116: #{tpu_custom_call.1} parent=86 // loop_pre_header
                  _
                $region117: #{tpu_custom_call.1} parent=86 // loop_header
                  %s3151 = sphi 0, %s3153
                  %p3152 = scmp.ge.s32.totalorder %s3151, %s3144
                  %s3156 = sphi 0, %s3165
                  %s3157 = sphi %s3147, %s3168
                  %s3158 = sphi %s3149, %s3169
                $region118: #{tpu_custom_call.1} parent=86 // loop_header_branch
                  %3155 = sbr.rel (%p3152) target = $region122
                $region119: #{tpu_custom_call.1} parent=86 // loop_body
                  %v3159 = vld [vmem:[%s3157] sm:%s2997]
                  %3160 = vst [vmem:[%s3158] sm:%s2997] %v3159
                  %v3161 = vld [vmem:[%s3157 + $0x800] sm:%s2997]
                  %3162 = vst [vmem:[%s3158 + $0xc80] sm:%s2997] %v3161
                  %s3163 = sadd.s32 1, %s3156
                  %p3164 = scmp.ge.s32.totalorder %s3163, %s3144
                  %s3165 = scalar_select %p3164, 0, %s3163
                  %s3166 = smul.u32 %s3165, 32
                  %s3167 = smul.u32 %s3165, 40
                  %s3168 = scalar_lea.vmem %s3147, %s3166 [#allocation4]
                  %s3169 = scalar_lea.vmem %s3149, %s3167
                $region120: #{tpu_custom_call.1} parent=86 // loop_footer
                  %s3153 = sadd.s32 %s3151, 1
                $region121: #{tpu_custom_call.1} parent=86 // loop_footer_branch
                  %3150 = sbr.rel target = $region117
                $region122: #{tpu_custom_call.1} parent=86 // loop_exit
                  _
              $region87: #{tpu_custom_call.1} parent=39 // pred_fallthru
                _
            $region40: #{tpu_custom_call.1} parent=35 // pred_fallthru
              _
            // Predicated region
            $region41: #{tpu_custom_call.1} parent=35 // pred_check
              %p2304 = pneg %p2300
            $region42: #{tpu_custom_call.1} parent=35 // pred_check_branch
              %2306 = sbr.rel (%p2304) target = $region44
            $region43: #{tpu_custom_call.1} parent=35 // pred_region
              %s2307 = sshllo.u32 0, %s2296
              %s2308 = sshrl.u32 %s2283, 5
              // While loop
              $region45: #{tpu_custom_call.1} parent=43 // loop_pre_header
                _
              $region46: #{tpu_custom_call.1} parent=43 // loop_header
                %s2310 = sphi 0, %s2312
                %p2311 = scmp.ge.s32.totalorder %s2310, %s2308
                %s2315 = sphi 0, %s2448
                %s2316 = sphi %s2274, %s2451
                %s2317 = sphi %s2295, %s2452
              $region47: #{tpu_custom_call.1} parent=43 // loop_header_branch
                %2314 = sbr.rel (%p2311) target = $region51
              $region48: #{tpu_custom_call.1} parent=43 // loop_body
                %v2318 = vld [vmem:[%s2316] sm:%s2307]
                %2319 = vst [vmem:[%s2317] sm:%s2307] %v2318
                %v2320 = vld [vmem:[%s2316 + $0x20] sm:%s2307]
                %2321 = vst [vmem:[%s2317 + $0x28] sm:%s2307] %v2320
                %v2322 = vld [vmem:[%s2316 + $0x40] sm:%s2307]
                %2323 = vst [vmem:[%s2317 + $0x50] sm:%s2307] %v2322
                %v2324 = vld [vmem:[%s2316 + $0x60] sm:%s2307]
                %2325 = vst [vmem:[%s2317 + $0x78] sm:%s2307] %v2324
                %v2326 = vld [vmem:[%s2316 + $0x80] sm:%s2307]
                %2327 = vst [vmem:[%s2317 + $0xa0] sm:%s2307] %v2326
                %v2328 = vld [vmem:[%s2316 + $0xa0] sm:%s2307]
                %2329 = vst [vmem:[%s2317 + $0xc8] sm:%s2307] %v2328
                %v2330 = vld [vmem:[%s2316 + $0xc0] sm:%s2307]
                %2331 = vst [vmem:[%s2317 + $0xf0] sm:%s2307] %v2330
                %v2332 = vld [vmem:[%s2316 + $0xe0] sm:%s2307]
                %2333 = vst [vmem:[%s2317 + $0x118] sm:%s2307] %v2332
                %v2334 = vld [vmem:[%s2316 + $0x100] sm:%s2307]
                %2335 = vst [vmem:[%s2317 + $0x140] sm:%s2307] %v2334
                %v2336 = vld [vmem:[%s2316 + $0x120] sm:%s2307]
                %2337 = vst [vmem:[%s2317 + $0x168] sm:%s2307] %v2336
                %v2338 = vld [vmem:[%s2316 + $0x140] sm:%s2307]
                %2339 = vst [vmem:[%s2317 + $0x190] sm:%s2307] %v2338
                %v2340 = vld [vmem:[%s2316 + $0x160] sm:%s2307]
                %2341 = vst [vmem:[%s2317 + $0x1b8] sm:%s2307] %v2340
                %v2342 = vld [vmem:[%s2316 + $0x180] sm:%s2307]
                %2343 = vst [vmem:[%s2317 + $0x1e0] sm:%s2307] %v2342
                %v2344 = vld [vmem:[%s2316 + $0x1a0] sm:%s2307]
                %2345 = vst [vmem:[%s2317 + $0x208] sm:%s2307] %v2344
                %v2346 = vld [vmem:[%s2316 + $0x1c0] sm:%s2307]
                %2347 = vst [vmem:[%s2317 + $0x230] sm:%s2307] %v2346
                %v2348 = vld [vmem:[%s2316 + $0x1e0] sm:%s2307]
                %2349 = vst [vmem:[%s2317 + $0x258] sm:%s2307] %v2348
                %v2350 = vld [vmem:[%s2316 + $0x200] sm:%s2307]
                %2351 = vst [vmem:[%s2317 + $0x280] sm:%s2307] %v2350
                %v2352 = vld [vmem:[%s2316 + $0x220] sm:%s2307]
                %2353 = vst [vmem:[%s2317 + $0x2a8] sm:%s2307] %v2352
                %v2354 = vld [vmem:[%s2316 + $0x240] sm:%s2307]
                %2355 = vst [vmem:[%s2317 + $0x2d0] sm:%s2307] %v2354
                %v2356 = vld [vmem:[%s2316 + $0x260] sm:%s2307]
                %2357 = vst [vmem:[%s2317 + $0x2f8] sm:%s2307] %v2356
                %v2358 = vld [vmem:[%s2316 + $0x280] sm:%s2307]
                %2359 = vst [vmem:[%s2317 + $0x320] sm:%s2307] %v2358
                %v2360 = vld [vmem:[%s2316 + $0x2a0] sm:%s2307]
                %2361 = vst [vmem:[%s2317 + $0x348] sm:%s2307] %v2360
                %v2362 = vld [vmem:[%s2316 + $0x2c0] sm:%s2307]
                %2363 = vst [vmem:[%s2317 + $0x370] sm:%s2307] %v2362
                %v2364 = vld [vmem:[%s2316 + $0x2e0] sm:%s2307]
                %2365 = vst [vmem:[%s2317 + $0x398] sm:%s2307] %v2364
                %v2366 = vld [vmem:[%s2316 + $0x300] sm:%s2307]
                %2367 = vst [vmem:[%s2317 + $0x3c0] sm:%s2307] %v2366
                %v2368 = vld [vmem:[%s2316 + $0x320] sm:%s2307]
                %2369 = vst [vmem:[%s2317 + $0x3e8] sm:%s2307] %v2368
                %v2370 = vld [vmem:[%s2316 + $0x340] sm:%s2307]
                %2371 = vst [vmem:[%s2317 + $0x410] sm:%s2307] %v2370
                %v2372 = vld [vmem:[%s2316 + $0x360] sm:%s2307]
                %2373 = vst [vmem:[%s2317 + $0x438] sm:%s2307] %v2372
                %v2374 = vld [vmem:[%s2316 + $0x380] sm:%s2307]
                %2375 = vst [vmem:[%s2317 + $0x460] sm:%s2307] %v2374
                %v2376 = vld [vmem:[%s2316 + $0x3a0] sm:%s2307]
                %2377 = vst [vmem:[%s2317 + $0x488] sm:%s2307] %v2376
                %v2378 = vld [vmem:[%s2316 + $0x3c0] sm:%s2307]
                %2379 = vst [vmem:[%s2317 + $0x4b0] sm:%s2307] %v2378
                %v2380 = vld [vmem:[%s2316 + $0x3e0] sm:%s2307]
                %2381 = vst [vmem:[%s2317 + $0x4d8] sm:%s2307] %v2380
                %v2382 = vld [vmem:[%s2316 + $0x800] sm:%s2307]
                %2383 = vst [vmem:[%s2317 + $0xc80] sm:%s2307] %v2382
                %v2384 = vld [vmem:[%s2316 + $0x820] sm:%s2307]
                %2385 = vst [vmem:[%s2317 + $0xca8] sm:%s2307] %v2384
                %v2386 = vld [vmem:[%s2316 + $0x840] sm:%s2307]
                %2387 = vst [vmem:[%s2317 + $0xcd0] sm:%s2307] %v2386
                %v2388 = vld [vmem:[%s2316 + $0x860] sm:%s2307]
                %2389 = vst [vmem:[%s2317 + $0xcf8] sm:%s2307] %v2388
                %v2390 = vld [vmem:[%s2316 + $0x880] sm:%s2307]
                %2391 = vst [vmem:[%s2317 + $0xd20] sm:%s2307] %v2390
                %v2392 = vld [vmem:[%s2316 + $0x8a0] sm:%s2307]
                %2393 = vst [vmem:[%s2317 + $0xd48] sm:%s2307] %v2392
                %v2394 = vld [vmem:[%s2316 + $0x8c0] sm:%s2307]
                %2395 = vst [vmem:[%s2317 + $0xd70] sm:%s2307] %v2394
                %v2396 = vld [vmem:[%s2316 + $0x8e0] sm:%s2307]
                %2397 = vst [vmem:[%s2317 + $0xd98] sm:%s2307] %v2396
                %v2398 = vld [vmem:[%s2316 + $0x900] sm:%s2307]
                %2399 = vst [vmem:[%s2317 + $0xdc0] sm:%s2307] %v2398
                %v2400 = vld [vmem:[%s2316 + $0x920] sm:%s2307]
                %2401 = vst [vmem:[%s2317 + $0xde8] sm:%s2307] %v2400
                %v2402 = vld [vmem:[%s2316 + $0x940] sm:%s2307]
                %2403 = vst [vmem:[%s2317 + $0xe10] sm:%s2307] %v2402
                %v2404 = vld [vmem:[%s2316 + $0x960] sm:%s2307]
                %2405 = vst [vmem:[%s2317 + $0xe38] sm:%s2307] %v2404
                %v2406 = vld [vmem:[%s2316 + $0x980] sm:%s2307]
                %2407 = vst [vmem:[%s2317 + $0xe60] sm:%s2307] %v2406
                %v2408 = vld [vmem:[%s2316 + $0x9a0] sm:%s2307]
                %2409 = vst [vmem:[%s2317 + $0xe88] sm:%s2307] %v2408
                %v2410 = vld [vmem:[%s2316 + $0x9c0] sm:%s2307]
                %2411 = vst [vmem:[%s2317 + $0xeb0] sm:%s2307] %v2410
                %v2412 = vld [vmem:[%s2316 + $0x9e0] sm:%s2307]
                %2413 = vst [vmem:[%s2317 + $0xed8] sm:%s2307] %v2412
                %v2414 = vld [vmem:[%s2316 + $0xa00] sm:%s2307]
                %2415 = vst [vmem:[%s2317 + $0xf00] sm:%s2307] %v2414
                %v2416 = vld [vmem:[%s2316 + $0xa20] sm:%s2307]
                %2417 = vst [vmem:[%s2317 + $0xf28] sm:%s2307] %v2416
                %v2418 = vld [vmem:[%s2316 + $0xa40] sm:%s2307]
                %2419 = vst [vmem:[%s2317 + $0xf50] sm:%s2307] %v2418
                %v2420 = vld [vmem:[%s2316 + $0xa60] sm:%s2307]
                %2421 = vst [vmem:[%s2317 + $0xf78] sm:%s2307] %v2420
                %v2422 = vld [vmem:[%s2316 + $0xa80] sm:%s2307]
                %2423 = vst [vmem:[%s2317 + $0xfa0] sm:%s2307] %v2422
                %v2424 = vld [vmem:[%s2316 + $0xaa0] sm:%s2307]
                %2425 = vst [vmem:[%s2317 + $0xfc8] sm:%s2307] %v2424
                %v2426 = vld [vmem:[%s2316 + $0xac0] sm:%s2307]
                %2427 = vst [vmem:[%s2317 + $0xff0] sm:%s2307] %v2426
                %v2428 = vld [vmem:[%s2316 + $0xae0] sm:%s2307]
                %2429 = vst [vmem:[%s2317 + $0x1018] sm:%s2307] %v2428
                %v2430 = vld [vmem:[%s2316 + $0xb00] sm:%s2307]
                %2431 = vst [vmem:[%s2317 + $0x1040] sm:%s2307] %v2430
                %v2432 = vld [vmem:[%s2316 + $0xb20] sm:%s2307]
                %2433 = vst [vmem:[%s2317 + $0x1068] sm:%s2307] %v2432
                %v2434 = vld [vmem:[%s2316 + $0xb40] sm:%s2307]
                %2435 = vst [vmem:[%s2317 + $0x1090] sm:%s2307] %v2434
                %v2436 = vld [vmem:[%s2316 + $0xb60] sm:%s2307]
                %2437 = vst [vmem:[%s2317 + $0x10b8] sm:%s2307] %v2436
                %v2438 = vld [vmem:[%s2316 + $0xb80] sm:%s2307]
                %2439 = vst [vmem:[%s2317 + $0x10e0] sm:%s2307] %v2438
                %v2440 = vld [vmem:[%s2316 + $0xba0] sm:%s2307]
                %2441 = vst [vmem:[%s2317 + $0x1108] sm:%s2307] %v2440
                %v2442 = vld [vmem:[%s2316 + $0xbc0] sm:%s2307]
                %2443 = vst [vmem:[%s2317 + $0x1130] sm:%s2307] %v2442
                %v2444 = vld [vmem:[%s2316 + $0xbe0] sm:%s2307]
                %2445 = vst [vmem:[%s2317 + $0x1158] sm:%s2307] %v2444
                %s2446 = sadd.s32 1, %s2315
                %p2447 = scmp.ge.s32.totalorder %s2446, %s2308
                %s2448 = scalar_select %p2447, 0, %s2446
                %s2449 = smul.u32 %s2448, 1024
                %s2450 = smul.u32 %s2448, 1280
                %s2451 = scalar_lea.vmem %s2274, %s2449 [#allocation4]
                %s2452 = scalar_lea.vmem %s2295, %s2450
              $region49: #{tpu_custom_call.1} parent=43 // loop_footer
                %s2312 = sadd.s32 %s2310, 1
              $region50: #{tpu_custom_call.1} parent=43 // loop_footer_branch
                %2309 = sbr.rel target = $region46
              $region51: #{tpu_custom_call.1} parent=43 // loop_exit
                _
              %s2453 = sshrl.u32 %s2283, 5
              %s2454 = sand.u32 %s2283, 31
              %s2455 = smul.u32 %s2453, 32
              %s2456 = smul.u32 32, %s2455
              %s2457 = scalar_lea.vmem %s2274, %s2456 [#allocation4]
              %s2458 = smul.u32 40, %s2455
              %s2459 = scalar_lea.vmem %s2295, %s2458
              // While loop
              $region52: #{tpu_custom_call.1} parent=43 // loop_pre_header
                _
              $region53: #{tpu_custom_call.1} parent=43 // loop_header
                %s2461 = sphi 0, %s2463
                %p2462 = scmp.ge.s32.totalorder %s2461, %s2454
                %s2466 = sphi 0, %s2475
                %s2467 = sphi %s2457, %s2478
                %s2468 = sphi %s2459, %s2479
              $region54: #{tpu_custom_call.1} parent=43 // loop_header_branch
                %2465 = sbr.rel (%p2462) target = $region58
              $region55: #{tpu_custom_call.1} parent=43 // loop_body
                %v2469 = vld [vmem:[%s2467] sm:%s2307]
                %2470 = vst [vmem:[%s2468] sm:%s2307] %v2469
                %v2471 = vld [vmem:[%s2467 + $0x800] sm:%s2307]
                %2472 = vst [vmem:[%s2468 + $0xc80] sm:%s2307] %v2471
                %s2473 = sadd.s32 1, %s2466
                %p2474 = scmp.ge.s32.totalorder %s2473, %s2454
                %s2475 = scalar_select %p2474, 0, %s2473
                %s2476 = smul.u32 %s2475, 32
                %s2477 = smul.u32 %s2475, 40
                %s2478 = scalar_lea.vmem %s2457, %s2476 [#allocation4]
                %s2479 = scalar_lea.vmem %s2459, %s2477
              $region56: #{tpu_custom_call.1} parent=43 // loop_footer
                %s2463 = sadd.s32 %s2461, 1
              $region57: #{tpu_custom_call.1} parent=43 // loop_footer_branch
                %2460 = sbr.rel target = $region53
              $region58: #{tpu_custom_call.1} parent=43 // loop_exit
                _
            $region44: #{tpu_custom_call.1} parent=35 // pred_fallthru
              _
          $region36: #{tpu_custom_call.1} parent=31 // pred_fallthru
            _
          %3170 = vnop
        $region32: #{tpu_custom_call.1} parent=23 // pred_fallthru
          _
      $region24: #{tpu_custom_call.1} parent=5 // pred_fallthru
        _
      %p3171 = scmp.le.s32.totalorder 2, %s10
      // Predicated region
      $region123: #{tpu_custom_call.1} parent=5 // pred_check
        %p3172 = pneg %p3171
      $region124: #{tpu_custom_call.1} parent=5 // pred_check_branch
        %3174 = sbr.rel (%p3172) target = $region126
      $region125: #{tpu_custom_call.1} parent=5 // pred_region
        %s3175 = ssub.s32 %s10, 2
        // Predicated region
        $region127: #{tpu_custom_call.1} parent=125 // pred_check
          %p3176 = pneg %p92
        $region128: #{tpu_custom_call.1} parent=125 // pred_check_branch
          %3178 = sbr.rel (%p3176) target = $region130
        $region129: #{tpu_custom_call.1} parent=125 // pred_region
          %s3179 = sand.u32 %s77, 1
          %s3180 = sand.u32 %s77, 1
          %s3181 = smul.addr %s3180, 4096
          %s3182 = scalar_lea.vmem [#allocation4], %s3181
        $region130: #{tpu_custom_call.1} parent=125 // pred_fallthru
          _
      $region126: #{tpu_custom_call.1} parent=5 // pred_fallthru
        _
    $region6: #{tpu_custom_call.1} parent=1 // loop_footer
      %s14 = sadd.s32 1, %s10
    $region7: #{tpu_custom_call.1} parent=1 // loop_footer_branch
      %9 = sbr.rel target = $region3
    $region8: #{tpu_custom_call.1} parent=1 // loop_exit
      _
    %3183 = vsyncpa [#allocation3], 1
    %s3184 = scalar_lea.sflag [#allocation3], 1
    %3185 = vsyncpa %s3184, 1

</llo_original>
